<compile_context>
chip_gen: v7x
topology: tpu7x:2x2x1
jax: 0.10.0
libtpu: 0.0.40
codegen_flags: <defaults>
</compile_context>

<pallas_src>
import numpy as np
import jax
import jax.numpy as jnp
from jax import lax
from jax.experimental import pallas as pl
from jax.experimental.pallas import tpu as pltpu

BF16 = jnp.bfloat16

TB_DEFAULT = 8   # images per grid step (sweepable 4..32)
HP = 40          # padded rows per image (32 real + 8 zero); multiple of 8, even


# ------------------------------ fused kernel -------------------------------

def lenet5_kernel(x_ref, wk1_ref, b1c_ref, wk2_ref, b2c_ref,
                  wf1_ref, bf1_ref, wf2_ref, bf2_ref, wf3_ref, bf3_ref,
                  out_ref, s1_ref, s2_ref):
    """Whole LeNet-5 forward for TB images; everything stays in VMEM.

    Row layout: image b occupies rows [b*HP, b*HP+32) of x_ref (rows 32..39
    are zero padding); after pool1 the per-image row stride is HP//2 = 20.
    Lane layout: conv input lane = w*4 + c; conv outputs lane =
    dw*128 + wo*cout_pad + o (W-pool = max of the two 128-lane halves).
    """
    tb = out_ref.shape[0]               # images in this grid step
    m1 = s1_ref.shape[0]                # = tb*HP - 8   conv1 rows carried
    m2 = s2_ref.shape[0]                # = tb*HP//2 - 8 conv2 rows carried
    half = (x_ref.shape[0] // tb) // 2  # per-image row stride after pool1 (=20)

    # ---- conv1 (3->6, k=5): 5 H-taps, batch merged into M -----------------
    # output global row g = b*HP + h (h = 0..27 valid); garbage rows are only
    # ever read by discarded outputs downstream.
    acc1 = jnp.dot(x_ref[pl.ds(0, m1), :].astype(BF16), wk1_ref[0],
                   preferred_element_type=jnp.float32)
    for kh in range(1, 5):
        acc1 += jnp.dot(x_ref[pl.ds(kh, m1), :].astype(BF16), wk1_ref[kh],
                        preferred_element_type=jnp.float32)
    acc1 += b1c_ref[...]                                   # (m1, 256) f32

    # ---- maxpool1 2x2: W = max of lane halves, H = stride-2 sublane reads --
    s1_ref[...] = jnp.maximum(acc1[:, :128], acc1[:, 128:])   # (m1, 128) full store
    l1 = tb * half - 4
    p1 = jnp.maximum(s1_ref[pl.ds(0, l1, 2), :],
                     s1_ref[pl.ds(1, l1, 2), :])           # (l1, 128) f32
    # p1 global row = b*20 + j, j = 0..13 valid, lane = w*8 + c

    # ---- conv2 (6->16, k=5) ------------------------------------------------
    acc2 = jnp.dot(p1[0:m2, :].astype(BF16), wk2_ref[0],
                   preferred_element_type=jnp.float32)
    for kh in range(1, 5):
        acc2 += jnp.dot(p1[kh:kh + m2, :].astype(BF16), wk2_ref[kh],
                        preferred_element_type=jnp.float32)
    acc2 += b2c_ref[...]                                   # (m2, 256) f32

    # ---- maxpool2: W half into scratch; H-pool fused into the fc1 gather ---
    s2_ref[...] = jnp.maximum(acc2[:, :128], acc2[:, 128:])   # (m2, 128) full store
    # s2 global row = b*20 + h2, h2 = 0..9 valid, lane = w*16 + c

    # ---- FC stack, batched across the TB images (M = TB) -------------------
    # fc1(out) = sum_ho feat[ho] @ wf1[ho]; feat row ho for image b is the
    # H-pool of s2 rows b*20 + 2*ho and b*20 + 2*ho + 1 (stride-20 gather).
    h = None
    for ho in range(5):
        row = jnp.maximum(s2_ref[pl.ds(2 * ho, tb, half), :],
                          s2_ref[pl.ds(2 * ho + 1, tb, half), :])   # (tb,128) f32
        d = jnp.dot(row.astype(BF16), wf1_ref[ho],
                    preferred_element_type=jnp.float32)
        h = d if h is None else h + d
    h = jnp.maximum(h + bf1_ref[...], 0.0)                           # ReLU
    h = jnp.dot(h.astype(BF16), wf2_ref[...],
                preferred_element_type=jnp.float32)
    h = jnp.maximum(h + bf2_ref[...], 0.0)                           # ReLU
    h = jnp.dot(h.astype(BF16), wf3_ref[...],
                preferred_element_type=jnp.float32)
    out_ref[...] = h + bf3_ref[...]                                  # (tb, 128)


# --------------------- weight repacking (one-time, numpy) -------------------

def _conv_toeplitz(w_hwio, w_in, cin_pad, cout_pad, k_rows=128, half=128):
    """(KH,KW,Cin,Cout) conv weight -> (KH, k_rows, 2*half) block-Toeplitz.

    Row    r   = x_in * cin_pad + c
    Column col = dw * half + wo * cout_pad + o, output x-position = 2*wo + dw.
    Unused (padded) rows/columns stay zero.
    """
    w = np.asarray(w_hwio, np.float32)
    kh_n, kw_n, cin, cout = w.shape
    w_out = w_in - kw_n + 1
    out = np.zeros((kh_n, k_rows, 2 * half), np.float32)
    for kh in range(kh_n):
        for kw in range(kw_n):
            for wo in range(w_out // 2):
                for dw in range(2):
                    x_in = 2 * wo + dw + kw
                    r0 = x_in * cin_pad
                    c0 = dw * half + wo * cout_pad
                    out[kh, r0:r0 + cin, c0:c0 + cout] = w[kh, kw]
    return out


def _conv_bias(b, cout_pad, n_pair, half=128):
    b = np.asarray(b, np.float32)
    out = np.zeros((1, 2 * half), np.float32)
    for wo in range(n_pair):
        for dw in range(2):
            c0 = dw * half + wo * cout_pad
            out[0, c0:c0 + b.shape[0]] = b
    return out


def prepare_params(params):
    """One-time repack of the logical LeNet weights into the kernel layout."""
    f32 = np.float32
    wk1 = _conv_toeplitz(params["conv1_w"], w_in=32, cin_pad=4, cout_pad=8)
    b1c = _conv_bias(params["conv1_b"], cout_pad=8, n_pair=14)
    wk2 = _conv_toeplitz(params["conv2_w"], w_in=14, cin_pad=8, cout_pad=16)
    b2c = _conv_bias(params["conv2_b"], cout_pad=16, n_pair=5)

    # fc1: fold PyTorch's NCHW flatten (i = c*25 + h*5 + w) into the weight
    # rows so the kernel consumes the (h, w*16 + c) feature layout directly.
    fc1_w = np.asarray(params["fc1_w"], f32)                   # (400, 120)
    wf1 = np.zeros((5, 128, 128), f32)
    wf1[:, :80, :120] = (fc1_w.reshape(16, 5, 5, 120)          # (c, h, w, j)
                         .transpose(1, 2, 0, 3)                # (h, w, c, j)
                         .reshape(5, 80, 120))
    bf1 = np.zeros((1, 128), f32)
    bf1[0, :120] = np.asarray(params["fc1_b"], f32)
    wf2 = np.zeros((128, 128), f32)
    wf2[:120, :84] = np.asarray(params["fc2_w"], f32)
    bf2 = np.zeros((1, 128), f32)
    bf2[0, :84] = np.asarray(params["fc2_b"], f32)
    wf3 = np.zeros((128, 128), f32)
    wf3[:84, :10] = np.asarray(params["fc3_w"], f32)
    bf3 = np.zeros((1, 128), f32)
    bf3[0, :10] = np.asarray(params["fc3_b"], f32)

    as_bf16 = lambda a: jnp.asarray(a, jnp.bfloat16)
    as_f32 = lambda a: jnp.asarray(a, jnp.float32)
    return {
        "wk1": as_bf16(wk1), "b1c": as_f32(b1c),
        "wk2": as_bf16(wk2), "b2c": as_f32(b2c),
        "wf1": as_bf16(wf1), "bf1": as_f32(bf1),
        "wf2": as_bf16(wf2), "bf2": as_f32(bf2),
        "wf3": as_bf16(wf3), "bf3": as_f32(bf3),
    }


# ------------------------------ pallas wrapper ------------------------------

_WEIGHT_ORDER = ("wk1", "b1c", "wk2", "b2c", "wf1", "bf1",
                 "wf2", "bf2", "wf3", "bf3")


def _resident_spec(arr):
    # Full-array block with a constant index map -> fetched once, stays
    # resident in VMEM across all grid steps.
    idx = (0,) * arr.ndim
    return pl.BlockSpec(arr.shape, lambda i, _idx=idx: _idx)


def lenet5_forward(prep, x_nchw, tb=TB_DEFAULT):
    B = x_nchw.shape[0]
    b_pad = pl.cdiv(B, tb) * tb

    # NCHW -> NHWC, pad batch to a multiple of TB, pad H 32 -> HP(=40) with
    # zero rows, pad Cin 3 -> 4, fold (W, C) into one 128-wide lane axis and
    # fold (batch, H) into one row axis: (b_pad*HP, 128).
    x = jnp.transpose(x_nchw, (0, 2, 3, 1)).astype(jnp.float32)      # (B,32,32,3)
    x = jnp.pad(x, ((0, b_pad - B), (0, HP - 32), (0, 0), (0, 1)))   # (b_pad,HP,32,4)
    x = x.reshape(b_pad * HP, 128)

    weights = [prep[name] for name in _WEIGHT_ORDER]
    in_specs = [pl.BlockSpec((tb * HP, 128), lambda i: (i, 0))]
    in_specs += [_resident_spec(w) for w in weights]

    out = pl.pallas_call(
        lenet5_kernel,
        out_shape=jax.ShapeDtypeStruct((b_pad, 128), jnp.float32),
        grid_spec=pltpu.PrefetchScalarGridSpec(
            num_scalar_prefetch=0,
            grid=(b_pad // tb,),
            in_specs=in_specs,
            out_specs=pl.BlockSpec((tb, 128), lambda i: (i, 0)),
            scratch_shapes=[
                pltpu.VMEM((tb * HP - 8, 128), jnp.float32),        # pool1 W-half
                pltpu.VMEM((tb * (HP // 2) - 8, 128), jnp.float32),  # pool2 W-half
            ],
        ),
        compiler_params=pltpu.CompilerParams(
            dimension_semantics=("parallel",)),
    )(x, *weights)
    return out[:B, :10]


# ------------------------- reference + params (JAX) -------------------------

def init_params(key):
    """Deterministic synthetic params; conv weights stored as (KH,KW,Cin,Cout)."""
    def uniform(k, shape, fan_in):
        bound = 1.0 / jnp.sqrt(jnp.float32(fan_in))
        return jax.random.uniform(k, shape, jnp.float32, -bound, bound)

    ks = jax.random.split(key, 10)
    return {
        "conv1_w": uniform(ks[0], (5, 5, 3, 6), 3 * 5 * 5),
        "conv1_b": uniform(ks[1], (6,), 3 * 5 * 5),
        "conv2_w": uniform(ks[2], (5, 5, 6, 16), 6 * 5 * 5),
        "conv2_b": uniform(ks[3], (16,), 6 * 5 * 5),
        "fc1_w": uniform(ks[4], (400, 120), 400),
        "fc1_b": uniform(ks[5], (120,), 400),
        "fc2_w": uniform(ks[6], (120, 84), 120),
        "fc2_b": uniform(ks[7], (84,), 120),
        "fc3_w": uniform(ks[8], (84, 10), 84),
        "fc3_b": uniform(ks[9], (10,), 84),
    }


def lenet5_reference(params, x_nchw):
    """Plain-JAX f32 reference (matches the PyTorch module: no conv act)."""
    dn = ("NHWC", "HWIO", "NHWC")
    hi = lax.Precision.HIGHEST
    x = jnp.transpose(x_nchw, (0, 2, 3, 1))
    y = lax.conv_general_dilated(x, params["conv1_w"], (1, 1), "VALID",
                                 dimension_numbers=dn, precision=hi)
    y = y + params["conv1_b"]
    y = lax.reduce_window(y, -jnp.inf, lax.max, (1, 2, 2, 1), (1, 2, 2, 1), "VALID")
    y = lax.conv_general_dilated(y, params["conv2_w"], (1, 1), "VALID",
                                 dimension_numbers=dn, precision=hi)
    y = y + params["conv2_b"]
    y = lax.reduce_window(y, -jnp.inf, lax.max, (1, 2, 2, 1), (1, 2, 2, 1), "VALID")
    feat = jnp.transpose(y, (0, 3, 1, 2)).reshape(x.shape[0], 400)  # NCHW flatten
    h = jnp.maximum(jnp.dot(feat, params["fc1_w"], precision=hi) + params["fc1_b"], 0.0)
    h = jnp.maximum(jnp.dot(h, params["fc2_w"], precision=hi) + params["fc2_b"], 0.0)
    return jnp.dot(h, params["fc3_w"], precision=hi) + params["fc3_b"]


if __name__ == "__main__":
    key = jax.random.PRNGKey(0)
    k_x, k_p = jax.random.split(key)

    # LeNet-5's hard-coded 16*5*5 flatten implies 32x32 RGB inputs.
    # B=12 with TB=8 exercises batch padding (->16) and a 2-step parallel grid.
    B = 12
    x = jax.random.normal(k_x, (B, 3, 32, 32), dtype=jnp.float32)
    params = init_params(k_p)
    prep = prepare_params(params)

    fwd = jax.jit(lambda inp: lenet5_forward(prep, inp))
    logits = jax.block_until_ready(fwd(x))
    assert logits.shape == (B, 10) and logits.dtype == jnp.float32

    # Loose sanity check against a plain-JAX f32 reference (the kernel uses
    # bf16 MXU inputs with f32 accumulation, so allow a small tolerance).
    ref = jax.block_until_ready(jax.jit(lambda inp: lenet5_reference(params, inp))(x))
    max_err = float(jnp.max(jnp.abs(logits - ref)))
    assert max_err < 4e-2, f"kernel deviates from reference: {max_err}"

    print("KERNEL_OK")
</pallas_src>

<mosaic_0001>
module attributes {stable_mosaic.version = 11 : i64} {
  func.func @lenet5_kernel(%arg0: i32, %arg1: memref<320x128xf32, #tpu.memory_space<vmem>>, %arg2: memref<5x128x256xbf16, #tpu.memory_space<vmem>>, %arg3: memref<1x256xf32, #tpu.memory_space<vmem>>, %arg4: memref<5x128x256xbf16, #tpu.memory_space<vmem>>, %arg5: memref<1x256xf32, #tpu.memory_space<vmem>>, %arg6: memref<5x128x128xbf16, #tpu.memory_space<vmem>>, %arg7: memref<1x128xf32, #tpu.memory_space<vmem>>, %arg8: memref<128x128xbf16, #tpu.memory_space<vmem>>, %arg9: memref<1x128xf32, #tpu.memory_space<vmem>>, %arg10: memref<128x128xbf16, #tpu.memory_space<vmem>>, %arg11: memref<1x128xf32, #tpu.memory_space<vmem>>, %arg12: memref<8x128xf32, #tpu.memory_space<vmem>>, %arg13: memref<312x128xf32, #tpu.memory_space<vmem>>, %arg14: memref<152x128xf32, #tpu.memory_space<vmem>>) attributes {dimension_semantics = [#tpu.dimension_semantics<parallel>], iteration_bounds = array<i64: 2>, scalar_prefetch = 0 : i64, scratch_operands = 2 : i64, tpu.core_type = #tpu.core_type<tc>, window_params = [{transform_indices = @transform_0, window_bounds = array<i64: 320, 128>}, {pipeline_mode = #tpu.pipeline_mode<synchronous>, transform_indices = @transform_1, window_bounds = array<i64: 5, 128, 256>}, {pipeline_mode = #tpu.pipeline_mode<synchronous>, transform_indices = @transform_2, window_bounds = array<i64: 1, 256>}, {pipeline_mode = #tpu.pipeline_mode<synchronous>, transform_indices = @transform_3, window_bounds = array<i64: 5, 128, 256>}, {pipeline_mode = #tpu.pipeline_mode<synchronous>, transform_indices = @transform_4, window_bounds = array<i64: 1, 256>}, {pipeline_mode = #tpu.pipeline_mode<synchronous>, transform_indices = @transform_5, window_bounds = array<i64: 5, 128, 128>}, {pipeline_mode = #tpu.pipeline_mode<synchronous>, transform_indices = @transform_6, window_bounds = array<i64: 1, 128>}, {pipeline_mode = #tpu.pipeline_mode<synchronous>, transform_indices = @transform_7, window_bounds = array<i64: 128, 128>}, {pipeline_mode = #tpu.pipeline_mode<synchronous>, transform_indices = @transform_8, window_bounds = array<i64: 1, 128>}, {pipeline_mode = #tpu.pipeline_mode<synchronous>, transform_indices = @transform_9, window_bounds = array<i64: 128, 128>}, {pipeline_mode = #tpu.pipeline_mode<synchronous>, transform_indices = @transform_10, window_bounds = array<i64: 1, 128>}, {transform_indices = @transform_11, window_bounds = array<i64: 8, 128>}]} {
    %c0 = arith.constant 0 : index
    %c0_0 = arith.constant 0 : index
    %0 = vector.load %arg1[%c0, %c0_0] : memref<320x128xf32, #tpu.memory_space<vmem>>, vector<312x128xf32>
    %1 = arith.truncf %0 : vector<312x128xf32> to vector<312x128xbf16>
    %c0_1 = arith.constant 0 : index
    %c0_2 = arith.constant 0 : index
    %c0_3 = arith.constant 0 : index
    %2 = vector.load %arg2[%c0_1, %c0_2, %c0_3] : memref<5x128x256xbf16, #tpu.memory_space<vmem>>, vector<1x128x256xbf16>
    %3 = vector.shape_cast %2 : vector<1x128x256xbf16> to vector<128x256xbf16>
    %cst = arith.constant dense<0.000000e+00> : vector<312x256xf32>
    %4 = tpu.matmul %1, %3, %cst {dimension_numbers = #tpu.dot_dimension_numbers<[1], [0], [0], [1], [0, 0, 1, 1], [], []>} : vector<312x128xbf16>, vector<128x256xbf16>, vector<312x256xf32> -> vector<312x256xf32>
    %c1 = arith.constant 1 : index
    %c0_4 = arith.constant 0 : index
    %5 = vector.load %arg1[%c1, %c0_4] : memref<320x128xf32, #tpu.memory_space<vmem>>, vector<312x128xf32>
    %6 = arith.truncf %5 : vector<312x128xf32> to vector<312x128xbf16>
    %c1_5 = arith.constant 1 : index
    %c0_6 = arith.constant 0 : index
    %c0_7 = arith.constant 0 : index
    %7 = vector.load %arg2[%c1_5, %c0_6, %c0_7] : memref<5x128x256xbf16, #tpu.memory_space<vmem>>, vector<1x128x256xbf16>
    %8 = vector.shape_cast %7 : vector<1x128x256xbf16> to vector<128x256xbf16>
    %cst_8 = arith.constant dense<0.000000e+00> : vector<312x256xf32>
    %9 = tpu.matmul %6, %8, %cst_8 {dimension_numbers = #tpu.dot_dimension_numbers<[1], [0], [0], [1], [0, 0, 1, 1], [], []>} : vector<312x128xbf16>, vector<128x256xbf16>, vector<312x256xf32> -> vector<312x256xf32>
    %10 = arith.addf %4, %9 : vector<312x256xf32>
    %c2 = arith.constant 2 : index
    %c0_9 = arith.constant 0 : index
    %11 = vector.load %arg1[%c2, %c0_9] : memref<320x128xf32, #tpu.memory_space<vmem>>, vector<312x128xf32>
    %12 = arith.truncf %11 : vector<312x128xf32> to vector<312x128xbf16>
    %c2_10 = arith.constant 2 : index
    %c0_11 = arith.constant 0 : index
    %c0_12 = arith.constant 0 : index
    %13 = vector.load %arg2[%c2_10, %c0_11, %c0_12] : memref<5x128x256xbf16, #tpu.memory_space<vmem>>, vector<1x128x256xbf16>
    %14 = vector.shape_cast %13 : vector<1x128x256xbf16> to vector<128x256xbf16>
    %cst_13 = arith.constant dense<0.000000e+00> : vector<312x256xf32>
    %15 = tpu.matmul %12, %14, %cst_13 {dimension_numbers = #tpu.dot_dimension_numbers<[1], [0], [0], [1], [0, 0, 1, 1], [], []>} : vector<312x128xbf16>, vector<128x256xbf16>, vector<312x256xf32> -> vector<312x256xf32>
    %16 = arith.addf %10, %15 : vector<312x256xf32>
    %c3 = arith.constant 3 : index
    %c0_14 = arith.constant 0 : index
    %17 = vector.load %arg1[%c3, %c0_14] : memref<320x128xf32, #tpu.memory_space<vmem>>, vector<312x128xf32>
    %18 = arith.truncf %17 : vector<312x128xf32> to vector<312x128xbf16>
    %c3_15 = arith.constant 3 : index
    %c0_16 = arith.constant 0 : index
    %c0_17 = arith.constant 0 : index
    %19 = vector.load %arg2[%c3_15, %c0_16, %c0_17] : memref<5x128x256xbf16, #tpu.memory_space<vmem>>, vector<1x128x256xbf16>
    %20 = vector.shape_cast %19 : vector<1x128x256xbf16> to vector<128x256xbf16>
    %cst_18 = arith.constant dense<0.000000e+00> : vector<312x256xf32>
    %21 = tpu.matmul %18, %20, %cst_18 {dimension_numbers = #tpu.dot_dimension_numbers<[1], [0], [0], [1], [0, 0, 1, 1], [], []>} : vector<312x128xbf16>, vector<128x256xbf16>, vector<312x256xf32> -> vector<312x256xf32>
    %22 = arith.addf %16, %21 : vector<312x256xf32>
    %c4 = arith.constant 4 : index
    %c0_19 = arith.constant 0 : index
    %23 = vector.load %arg1[%c4, %c0_19] : memref<320x128xf32, #tpu.memory_space<vmem>>, vector<312x128xf32>
    %24 = arith.truncf %23 : vector<312x128xf32> to vector<312x128xbf16>
    %c4_20 = arith.constant 4 : index
    %c0_21 = arith.constant 0 : index
    %c0_22 = arith.constant 0 : index
    %25 = vector.load %arg2[%c4_20, %c0_21, %c0_22] : memref<5x128x256xbf16, #tpu.memory_space<vmem>>, vector<1x128x256xbf16>
    %26 = vector.shape_cast %25 : vector<1x128x256xbf16> to vector<128x256xbf16>
    %cst_23 = arith.constant dense<0.000000e+00> : vector<312x256xf32>
    %27 = tpu.matmul %24, %26, %cst_23 {dimension_numbers = #tpu.dot_dimension_numbers<[1], [0], [0], [1], [0, 0, 1, 1], [], []>} : vector<312x128xbf16>, vector<128x256xbf16>, vector<312x256xf32> -> vector<312x256xf32>
    %28 = arith.addf %22, %27 : vector<312x256xf32>
    %c0_24 = arith.constant 0 : index
    %c0_25 = arith.constant 0 : index
    %29 = vector.load %arg3[%c0_24, %c0_25] : memref<1x256xf32, #tpu.memory_space<vmem>>, vector<1x256xf32>
    %30 = vector.broadcast %29 : vector<1x256xf32> to vector<312x256xf32>
    %31 = arith.addf %28, %30 : vector<312x256xf32>
    %32 = vector.extract_strided_slice %31 {offsets = [0, 0], sizes = [312, 128], strides = [1, 1]} : vector<312x256xf32> to vector<312x128xf32>
    %33 = vector.extract_strided_slice %31 {offsets = [0, 128], sizes = [312, 128], strides = [1, 1]} : vector<312x256xf32> to vector<312x128xf32>
    %34 = arith.maximumf %32, %33 : vector<312x128xf32>
    %c0_26 = arith.constant 0 : index
    %c0_27 = arith.constant 0 : index
    %35 = vector.load %arg13[%c0_26, %c0_27] : memref<312x128xf32, #tpu.memory_space<vmem>>, vector<312x128xf32>
    tpu.vector_store %arg13[%c0_26, %c0_27], %34 {strides = array<i32>} : memref<312x128xf32, #tpu.memory_space<vmem>>, vector<312x128xf32>,
    %c0_28 = arith.constant 0 : index
    %c0_29 = arith.constant 0 : index
    %36 = tpu.strided_load %arg13[%c0_28, %c0_29] {strides = array<i32: 2, 1>} : memref<312x128xf32, #tpu.memory_space<vmem>>, vector<156x128xf32>
    %c1_30 = arith.constant 1 : index
    %c0_31 = arith.constant 0 : index
    %37 = tpu.strided_load %arg13[%c1_30, %c0_31] {strides = array<i32: 2, 1>} : memref<312x128xf32, #tpu.memory_space<vmem>>, vector<156x128xf32>
    %38 = arith.maximumf %36, %37 : vector<156x128xf32>
    %39 = vector.extract_strided_slice %38 {offsets = [0, 0], sizes = [152, 128], strides = [1, 1]} : vector<156x128xf32> to vector<152x128xf32>
    %40 = arith.truncf %39 : vector<152x128xf32> to vector<152x128xbf16>
    %c0_32 = arith.constant 0 : index
    %c0_33 = arith.constant 0 : index
    %c0_34 = arith.constant 0 : index
    %41 = vector.load %arg4[%c0_32, %c0_33, %c0_34] : memref<5x128x256xbf16, #tpu.memory_space<vmem>>, vector<1x128x256xbf16>
    %42 = vector.shape_cast %41 : vector<1x128x256xbf16> to vector<128x256xbf16>
    %cst_35 = arith.constant dense<0.000000e+00> : vector<152x256xf32>
    %43 = tpu.matmul %40, %42, %cst_35 {dimension_numbers = #tpu.dot_dimension_numbers<[1], [0], [0], [1], [0, 0, 1, 1], [], []>} : vector<152x128xbf16>, vector<128x256xbf16>, vector<152x256xf32> -> vector<152x256xf32>
    %44 = vector.extract_strided_slice %38 {offsets = [1, 0], sizes = [152, 128], strides = [1, 1]} : vector<156x128xf32> to vector<152x128xf32>
    %45 = arith.truncf %44 : vector<152x128xf32> to vector<152x128xbf16>
    %c1_36 = arith.constant 1 : index
    %c0_37 = arith.constant 0 : index
    %c0_38 = arith.constant 0 : index
    %46 = vector.load %arg4[%c1_36, %c0_37, %c0_38] : memref<5x128x256xbf16, #tpu.memory_space<vmem>>, vector<1x128x256xbf16>
    %47 = vector.shape_cast %46 : vector<1x128x256xbf16> to vector<128x256xbf16>
    %cst_39 = arith.constant dense<0.000000e+00> : vector<152x256xf32>
    %48 = tpu.matmul %45, %47, %cst_39 {dimension_numbers = #tpu.dot_dimension_numbers<[1], [0], [0], [1], [0, 0, 1, 1], [], []>} : vector<152x128xbf16>, vector<128x256xbf16>, vector<152x256xf32> -> vector<152x256xf32>
    %49 = arith.addf %43, %48 : vector<152x256xf32>
    %50 = vector.extract_strided_slice %38 {offsets = [2, 0], sizes = [152, 128], strides = [1, 1]} : vector<156x128xf32> to vector<152x128xf32>
    %51 = arith.truncf %50 : vector<152x128xf32> to vector<152x128xbf16>
    %c2_40 = arith.constant 2 : index
    %c0_41 = arith.constant 0 : index
    %c0_42 = arith.constant 0 : index
    %52 = vector.load %arg4[%c2_40, %c0_41, %c0_42] : memref<5x128x256xbf16, #tpu.memory_space<vmem>>, vector<1x128x256xbf16>
    %53 = vector.shape_cast %52 : vector<1x128x256xbf16> to vector<128x256xbf16>
    %cst_43 = arith.constant dense<0.000000e+00> : vector<152x256xf32>
    %54 = tpu.matmul %51, %53, %cst_43 {dimension_numbers = #tpu.dot_dimension_numbers<[1], [0], [0], [1], [0, 0, 1, 1], [], []>} : vector<152x128xbf16>, vector<128x256xbf16>, vector<152x256xf32> -> vector<152x256xf32>
    %55 = arith.addf %49, %54 : vector<152x256xf32>
    %56 = vector.extract_strided_slice %38 {offsets = [3, 0], sizes = [152, 128], strides = [1, 1]} : vector<156x128xf32> to vector<152x128xf32>
    %57 = arith.truncf %56 : vector<152x128xf32> to vector<152x128xbf16>
    %c3_44 = arith.constant 3 : index
    %c0_45 = arith.constant 0 : index
    %c0_46 = arith.constant 0 : index
    %58 = vector.load %arg4[%c3_44, %c0_45, %c0_46] : memref<5x128x256xbf16, #tpu.memory_space<vmem>>, vector<1x128x256xbf16>
    %59 = vector.shape_cast %58 : vector<1x128x256xbf16> to vector<128x256xbf16>
    %cst_47 = arith.constant dense<0.000000e+00> : vector<152x256xf32>
    %60 = tpu.matmul %57, %59, %cst_47 {dimension_numbers = #tpu.dot_dimension_numbers<[1], [0], [0], [1], [0, 0, 1, 1], [], []>} : vector<152x128xbf16>, vector<128x256xbf16>, vector<152x256xf32> -> vector<152x256xf32>
    %61 = arith.addf %55, %60 : vector<152x256xf32>
    %62 = vector.extract_strided_slice %38 {offsets = [4, 0], sizes = [152, 128], strides = [1, 1]} : vector<156x128xf32> to vector<152x128xf32>
    %63 = arith.truncf %62 : vector<152x128xf32> to vector<152x128xbf16>
    %c4_48 = arith.constant 4 : index
    %c0_49 = arith.constant 0 : index
    %c0_50 = arith.constant 0 : index
    %64 = vector.load %arg4[%c4_48, %c0_49, %c0_50] : memref<5x128x256xbf16, #tpu.memory_space<vmem>>, vector<1x128x256xbf16>
    %65 = vector.shape_cast %64 : vector<1x128x256xbf16> to vector<128x256xbf16>
    %cst_51 = arith.constant dense<0.000000e+00> : vector<152x256xf32>
    %66 = tpu.matmul %63, %65, %cst_51 {dimension_numbers = #tpu.dot_dimension_numbers<[1], [0], [0], [1], [0, 0, 1, 1], [], []>} : vector<152x128xbf16>, vector<128x256xbf16>, vector<152x256xf32> -> vector<152x256xf32>
    %67 = arith.addf %61, %66 : vector<152x256xf32>
    %c0_52 = arith.constant 0 : index
    %c0_53 = arith.constant 0 : index
    %68 = vector.load %arg5[%c0_52, %c0_53] : memref<1x256xf32, #tpu.memory_space<vmem>>, vector<1x256xf32>
    %69 = vector.broadcast %68 : vector<1x256xf32> to vector<152x256xf32>
    %70 = arith.addf %67, %69 : vector<152x256xf32>
    %71 = vector.extract_strided_slice %70 {offsets = [0, 0], sizes = [152, 128], strides = [1, 1]} : vector<152x256xf32> to vector<152x128xf32>
    %72 = vector.extract_strided_slice %70 {offsets = [0, 128], sizes = [152, 128], strides = [1, 1]} : vector<152x256xf32> to vector<152x128xf32>
    %73 = arith.maximumf %71, %72 : vector<152x128xf32>
    %c0_54 = arith.constant 0 : index
    %c0_55 = arith.constant 0 : index
    %74 = vector.load %arg14[%c0_54, %c0_55] : memref<152x128xf32, #tpu.memory_space<vmem>>, vector<152x128xf32>
    tpu.vector_store %arg14[%c0_54, %c0_55], %73 {strides = array<i32>} : memref<152x128xf32, #tpu.memory_space<vmem>>, vector<152x128xf32>,
    %c0_56 = arith.constant 0 : index
    %c0_57 = arith.constant 0 : index
    %75 = tpu.strided_load %arg14[%c0_56, %c0_57] {strides = array<i32: 20, 1>} : memref<152x128xf32, #tpu.memory_space<vmem>>, vector<8x128xf32>
    %c1_58 = arith.constant 1 : index
    %c0_59 = arith.constant 0 : index
    %76 = tpu.strided_load %arg14[%c1_58, %c0_59] {strides = array<i32: 20, 1>} : memref<152x128xf32, #tpu.memory_space<vmem>>, vector<8x128xf32>
    %77 = arith.maximumf %75, %76 : vector<8x128xf32>
    %78 = arith.truncf %77 : vector<8x128xf32> to vector<8x128xbf16>
    %c0_60 = arith.constant 0 : index
    %c0_61 = arith.constant 0 : index
    %c0_62 = arith.constant 0 : index
    %79 = vector.load %arg6[%c0_60, %c0_61, %c0_62] : memref<5x128x128xbf16, #tpu.memory_space<vmem>>, vector<1x128x128xbf16>
    %80 = vector.shape_cast %79 : vector<1x128x128xbf16> to vector<128x128xbf16>
    %cst_63 = arith.constant dense<0.000000e+00> : vector<8x128xf32>
    %81 = tpu.matmul %78, %80, %cst_63 {dimension_numbers = #tpu.dot_dimension_numbers<[1], [0], [0], [1], [0, 0, 1, 1], [], []>} : vector<8x128xbf16>, vector<128x128xbf16>, vector<8x128xf32> -> vector<8x128xf32>
    %c2_64 = arith.constant 2 : index
    %c0_65 = arith.constant 0 : index
    %82 = tpu.strided_load %arg14[%c2_64, %c0_65] {strides = array<i32: 20, 1>} : memref<152x128xf32, #tpu.memory_space<vmem>>, vector<8x128xf32>
    %c3_66 = arith.constant 3 : index
    %c0_67 = arith.constant 0 : index
    %83 = tpu.strided_load %arg14[%c3_66, %c0_67] {strides = array<i32: 20, 1>} : memref<152x128xf32, #tpu.memory_space<vmem>>, vector<8x128xf32>
    %84 = arith.maximumf %82, %83 : vector<8x128xf32>
    %85 = arith.truncf %84 : vector<8x128xf32> to vector<8x128xbf16>
    %c1_68 = arith.constant 1 : index
    %c0_69 = arith.constant 0 : index
    %c0_70 = arith.constant 0 : index
    %86 = vector.load %arg6[%c1_68, %c0_69, %c0_70] : memref<5x128x128xbf16, #tpu.memory_space<vmem>>, vector<1x128x128xbf16>
    %87 = vector.shape_cast %86 : vector<1x128x128xbf16> to vector<128x128xbf16>
    %cst_71 = arith.constant dense<0.000000e+00> : vector<8x128xf32>
    %88 = tpu.matmul %85, %87, %cst_71 {dimension_numbers = #tpu.dot_dimension_numbers<[1], [0], [0], [1], [0, 0, 1, 1], [], []>} : vector<8x128xbf16>, vector<128x128xbf16>, vector<8x128xf32> -> vector<8x128xf32>
    %89 = arith.addf %81, %88 : vector<8x128xf32>
    %c4_72 = arith.constant 4 : index
    %c0_73 = arith.constant 0 : index
    %90 = tpu.strided_load %arg14[%c4_72, %c0_73] {strides = array<i32: 20, 1>} : memref<152x128xf32, #tpu.memory_space<vmem>>, vector<8x128xf32>
    %c5 = arith.constant 5 : index
    %c0_74 = arith.constant 0 : index
    %91 = tpu.strided_load %arg14[%c5, %c0_74] {strides = array<i32: 20, 1>} : memref<152x128xf32, #tpu.memory_space<vmem>>, vector<8x128xf32>
    %92 = arith.maximumf %90, %91 : vector<8x128xf32>
    %93 = arith.truncf %92 : vector<8x128xf32> to vector<8x128xbf16>
    %c2_75 = arith.constant 2 : index
    %c0_76 = arith.constant 0 : index
    %c0_77 = arith.constant 0 : index
    %94 = vector.load %arg6[%c2_75, %c0_76, %c0_77] : memref<5x128x128xbf16, #tpu.memory_space<vmem>>, vector<1x128x128xbf16>
    %95 = vector.shape_cast %94 : vector<1x128x128xbf16> to vector<128x128xbf16>
    %cst_78 = arith.constant dense<0.000000e+00> : vector<8x128xf32>
    %96 = tpu.matmul %93, %95, %cst_78 {dimension_numbers = #tpu.dot_dimension_numbers<[1], [0], [0], [1], [0, 0, 1, 1], [], []>} : vector<8x128xbf16>, vector<128x128xbf16>, vector<8x128xf32> -> vector<8x128xf32>
    %97 = arith.addf %89, %96 : vector<8x128xf32>
    %c6 = arith.constant 6 : index
    %c0_79 = arith.constant 0 : index
    %98 = tpu.strided_load %arg14[%c6, %c0_79] {strides = array<i32: 20, 1>} : memref<152x128xf32, #tpu.memory_space<vmem>>, vector<8x128xf32>
    %c7 = arith.constant 7 : index
    %c0_80 = arith.constant 0 : index
    %99 = tpu.strided_load %arg14[%c7, %c0_80] {strides = array<i32: 20, 1>} : memref<152x128xf32, #tpu.memory_space<vmem>>, vector<8x128xf32>
    %100 = arith.maximumf %98, %99 : vector<8x128xf32>
    %101 = arith.truncf %100 : vector<8x128xf32> to vector<8x128xbf16>
    %c3_81 = arith.constant 3 : index
    %c0_82 = arith.constant 0 : index
    %c0_83 = arith.constant 0 : index
    %102 = vector.load %arg6[%c3_81, %c0_82, %c0_83] : memref<5x128x128xbf16, #tpu.memory_space<vmem>>, vector<1x128x128xbf16>
    %103 = vector.shape_cast %102 : vector<1x128x128xbf16> to vector<128x128xbf16>
    %cst_84 = arith.constant dense<0.000000e+00> : vector<8x128xf32>
    %104 = tpu.matmul %101, %103, %cst_84 {dimension_numbers = #tpu.dot_dimension_numbers<[1], [0], [0], [1], [0, 0, 1, 1], [], []>} : vector<8x128xbf16>, vector<128x128xbf16>, vector<8x128xf32> -> vector<8x128xf32>
    %105 = arith.addf %97, %104 : vector<8x128xf32>
    %c8 = arith.constant 8 : index
    %c0_85 = arith.constant 0 : index
    %106 = tpu.strided_load %arg14[%c8, %c0_85] {strides = array<i32: 20, 1>} : memref<152x128xf32, #tpu.memory_space<vmem>>, vector<8x128xf32>
    %c9 = arith.constant 9 : index
    %c0_86 = arith.constant 0 : index
    %107 = tpu.strided_load %arg14[%c9, %c0_86] {strides = array<i32: 20, 1>} : memref<152x128xf32, #tpu.memory_space<vmem>>, vector<8x128xf32>
    %108 = arith.maximumf %106, %107 : vector<8x128xf32>
    %109 = arith.truncf %108 : vector<8x128xf32> to vector<8x128xbf16>
    %c4_87 = arith.constant 4 : index
    %c0_88 = arith.constant 0 : index
    %c0_89 = arith.constant 0 : index
    %110 = vector.load %arg6[%c4_87, %c0_88, %c0_89] : memref<5x128x128xbf16, #tpu.memory_space<vmem>>, vector<1x128x128xbf16>
    %111 = vector.shape_cast %110 : vector<1x128x128xbf16> to vector<128x128xbf16>
    %cst_90 = arith.constant dense<0.000000e+00> : vector<8x128xf32>
    %112 = tpu.matmul %109, %111, %cst_90 {dimension_numbers = #tpu.dot_dimension_numbers<[1], [0], [0], [1], [0, 0, 1, 1], [], []>} : vector<8x128xbf16>, vector<128x128xbf16>, vector<8x128xf32> -> vector<8x128xf32>
    %113 = arith.addf %105, %112 : vector<8x128xf32>
    %c0_91 = arith.constant 0 : index
    %c0_92 = arith.constant 0 : index
    %114 = vector.load %arg7[%c0_91, %c0_92] : memref<1x128xf32, #tpu.memory_space<vmem>>, vector<1x128xf32>
    %115 = vector.broadcast %114 : vector<1x128xf32> to vector<8x128xf32>
    %116 = arith.addf %113, %115 : vector<8x128xf32>
    %cst_93 = arith.constant 0.000000e+00 : f32
    %117 = vector.broadcast %cst_93 : f32 to vector<8x128xf32>
    %118 = arith.maximumf %116, %117 : vector<8x128xf32>
    %119 = arith.truncf %118 : vector<8x128xf32> to vector<8x128xbf16>
    %c0_94 = arith.constant 0 : index
    %c0_95 = arith.constant 0 : index
    %120 = vector.load %arg8[%c0_94, %c0_95] : memref<128x128xbf16, #tpu.memory_space<vmem>>, vector<128x128xbf16>
    %cst_96 = arith.constant dense<0.000000e+00> : vector<8x128xf32>
    %121 = tpu.matmul %119, %120, %cst_96 {dimension_numbers = #tpu.dot_dimension_numbers<[1], [0], [0], [1], [0, 0, 1, 1], [], []>} : vector<8x128xbf16>, vector<128x128xbf16>, vector<8x128xf32> -> vector<8x128xf32>
    %c0_97 = arith.constant 0 : index
    %c0_98 = arith.constant 0 : index
    %122 = vector.load %arg9[%c0_97, %c0_98] : memref<1x128xf32, #tpu.memory_space<vmem>>, vector<1x128xf32>
    %123 = vector.broadcast %122 : vector<1x128xf32> to vector<8x128xf32>
    %124 = arith.addf %121, %123 : vector<8x128xf32>
    %cst_99 = arith.constant 0.000000e+00 : f32
    %125 = vector.broadcast %cst_99 : f32 to vector<8x128xf32>
    %126 = arith.maximumf %124, %125 : vector<8x128xf32>
    %127 = arith.truncf %126 : vector<8x128xf32> to vector<8x128xbf16>
    %c0_100 = arith.constant 0 : index
    %c0_101 = arith.constant 0 : index
    %128 = vector.load %arg10[%c0_100, %c0_101] : memref<128x128xbf16, #tpu.memory_space<vmem>>, vector<128x128xbf16>
    %cst_102 = arith.constant dense<0.000000e+00> : vector<8x128xf32>
    %129 = tpu.matmul %127, %128, %cst_102 {dimension_numbers = #tpu.dot_dimension_numbers<[1], [0], [0], [1], [0, 0, 1, 1], [], []>} : vector<8x128xbf16>, vector<128x128xbf16>, vector<8x128xf32> -> vector<8x128xf32>
    %c0_103 = arith.constant 0 : index
    %c0_104 = arith.constant 0 : index
    %130 = vector.load %arg11[%c0_103, %c0_104] : memref<1x128xf32, #tpu.memory_space<vmem>>, vector<1x128xf32>
    %131 = vector.broadcast %130 : vector<1x128xf32> to vector<8x128xf32>
    %132 = arith.addf %129, %131 : vector<8x128xf32>
    %c0_105 = arith.constant 0 : index
    %c0_106 = arith.constant 0 : index
    %133 = vector.load %arg12[%c0_105, %c0_106] : memref<8x128xf32, #tpu.memory_space<vmem>>, vector<8x128xf32>
    tpu.vector_store %arg12[%c0_105, %c0_106], %132 {strides = array<i32>} : memref<8x128xf32, #tpu.memory_space<vmem>>, vector<8x128xf32>,
    return
  }
  func.func @transform_0(%arg0: i32) -> (i32, i32) {
    %c0_i32 = arith.constant 0 : i32
    %c0_i32_0 = arith.constant 0 : i32
    return %arg0, %c0_i32 : i32, i32
  }
  func.func @transform_1(%arg0: i32) -> (i32, i32, i32) {
    %c0_i32 = arith.constant 0 : i32
    %c0_i32_0 = arith.constant 0 : i32
    %c0_i32_1 = arith.constant 0 : i32
    %c0_i32_2 = arith.constant 0 : i32
    return %c0_i32, %c0_i32_0, %c0_i32_1 : i32, i32, i32
  }
  func.func @transform_2(%arg0: i32) -> (i32, i32) {
    %c0_i32 = arith.constant 0 : i32
    %c0_i32_0 = arith.constant 0 : i32
    %c0_i32_1 = arith.constant 0 : i32
    return %c0_i32, %c0_i32_0 : i32, i32
  }
  func.func @transform_3(%arg0: i32) -> (i32, i32, i32) {
    %c0_i32 = arith.constant 0 : i32
    %c0_i32_0 = arith.constant 0 : i32
    %c0_i32_1 = arith.constant 0 : i32
    %c0_i32_2 = arith.constant 0 : i32
    return %c0_i32, %c0_i32_0, %c0_i32_1 : i32, i32, i32
  }
  func.func @transform_4(%arg0: i32) -> (i32, i32) {
    %c0_i32 = arith.constant 0 : i32
    %c0_i32_0 = arith.constant 0 : i32
    %c0_i32_1 = arith.constant 0 : i32
    return %c0_i32, %c0_i32_0 : i32, i32
  }
  func.func @transform_5(%arg0: i32) -> (i32, i32, i32) {
    %c0_i32 = arith.constant 0 : i32
    %c0_i32_0 = arith.constant 0 : i32
    %c0_i32_1 = arith.constant 0 : i32
    %c0_i32_2 = arith.constant 0 : i32
    return %c0_i32, %c0_i32_0, %c0_i32_1 : i32, i32, i32
  }
  func.func @transform_6(%arg0: i32) -> (i32, i32) {
    %c0_i32 = arith.constant 0 : i32
    %c0_i32_0 = arith.constant 0 : i32
    %c0_i32_1 = arith.constant 0 : i32
    return %c0_i32, %c0_i32_0 : i32, i32
  }
  func.func @transform_7(%arg0: i32) -> (i32, i32) {
    %c0_i32 = arith.constant 0 : i32
    %c0_i32_0 = arith.constant 0 : i32
    %c0_i32_1 = arith.constant 0 : i32
    return %c0_i32, %c0_i32_0 : i32, i32
  }
  func.func @transform_8(%arg0: i32) -> (i32, i32) {
    %c0_i32 = arith.constant 0 : i32
    %c0_i32_0 = arith.constant 0 : i32
    %c0_i32_1 = arith.constant 0 : i32
    return %c0_i32, %c0_i32_0 : i32, i32
  }
  func.func @transform_9(%arg0: i32) -> (i32, i32) {
    %c0_i32 = arith.constant 0 : i32
    %c0_i32_0 = arith.constant 0 : i32
    %c0_i32_1 = arith.constant 0 : i32
    return %c0_i32, %c0_i32_0 : i32, i32
  }
  func.func @transform_10(%arg0: i32) -> (i32, i32) {
    %c0_i32 = arith.constant 0 : i32
    %c0_i32_0 = arith.constant 0 : i32
    %c0_i32_1 = arith.constant 0 : i32
    return %c0_i32, %c0_i32_0 : i32, i32
  }
  func.func @transform_11(%arg0: i32) -> (i32, i32) {
    %c0_i32 = arith.constant 0 : i32
    %c0_i32_0 = arith.constant 0 : i32
    return %arg0, %c0_i32 : i32, i32
  }
}

</mosaic_0001>

<llo_original>
// kernel: _lambda_.1
$region0: #{_lambda_.1}
  #allocation0 [shape = 'u32[]', space=smem, size = 0x4, offset = 0x4, fixed_abs, tag = 'smem constant byte address 0x4 - core index']
  #allocation1 [shape = 'u32[144,128]{1,0:T(1,128)}', space=vmem, size = 0x12000, scoped, tag = 'internal scratch']
  #allocation2 [shape = 'f32[312,128]{1,0:T(8,128)}', space=vmem, size = 0x27000, scoped, tag = 'scratch operand']
  #allocation3 [shape = 'f32[152,128]{1,0:T(8,128)}', space=vmem, size = 0x13000, scoped, tag = 'scratch operand']
  %s0 = inlined_call_operand.vmem [shape: f32[640,128], index: 0, kind: input, shape index: {}]
  %s1 = inlined_call_operand.vmem [shape: bf16[5,128,256], index: 1, kind: input, shape index: {}]
  %s2 = inlined_call_operand.vmem [shape: f32[1,256], index: 2, kind: input, shape index: {}]
  %s3 = inlined_call_operand.vmem [shape: bf16[5,128,256], index: 3, kind: input, shape index: {}]
  %s4 = inlined_call_operand.vmem [shape: f32[1,256], index: 4, kind: input, shape index: {}]
  %s5 = inlined_call_operand.vmem [shape: bf16[5,128,128], index: 5, kind: input, shape index: {}]
  %s6 = inlined_call_operand.vmem [shape: f32[1,128], index: 6, kind: input, shape index: {}]
  %s7 = inlined_call_operand.vmem [shape: bf16[128,128], index: 7, kind: input, shape index: {}]
  %s8 = inlined_call_operand.vmem [shape: f32[1,128], index: 8, kind: input, shape index: {}]
  %s9 = inlined_call_operand.vmem [shape: bf16[128,128], index: 9, kind: input, shape index: {}]
  %s10 = inlined_call_operand.vmem [shape: f32[1,128], index: 10, kind: input, shape index: {}]
  %s11 = inlined_call_operand.hbm [shape: f32[16,128], index: 11, kind: output, shape index: {}]
  %s12 = sld [smem:[#allocation0]]
  $region77: #{_lambda_.1} parent=0
    _
  %s14 = ssub.s32 1, %s12
  %s15 = scalar_select 0, %s14, %s12
  $region1: #{_lambda_.1} parent=0
    #allocation4 [shape = 'u8[8192]{0}', space=vmem, size = 0x2000, scoped, tag = 'output window, operand 0']
    #allocation5 [shape = 's32[2]{0}', space=sflag, size = 0x8, scoped, tag = 'scoped memory for _lambda_.1']
    %16 = vsyncpa [#allocation5], 0
    %s17 = scalar_lea.sflag [#allocation5], 1
    %18 = vsyncpa %s17, 0
    loop: start=0, step=1, limit=4
    $region2: #{_lambda_.1} parent=1 // loop_pre_header
      _
    $region3: #{_lambda_.1} parent=1 // loop_header
      %s20 = sphi 0, %s24
      %p21 = scmp.ge.s32.totalorder %s20, 4
      %s30 = sphi 0, %s32
      %s33 = sphi 0, %s30
      %s34 = sphi 0, %s33
      %s50 = sphi 0, %s34
      %s54 = sphi 0, %s54
      %s56 = sphi 0, %s54
      %s57 = sphi 0, %s56
      %s71 = sphi 0, %s57
      %s75 = sphi 0, %s75
      %s77 = sphi 0, %s75
      %s78 = sphi 0, %s77
      %s92 = sphi 0, %s78
      %s96 = sphi 0, %s96
      %s98 = sphi 0, %s96
      %s99 = sphi 0, %s98
      %s113 = sphi 0, %s99
      %s117 = sphi 0, %s117
      %s119 = sphi 0, %s117
      %s120 = sphi 0, %s119
      %s134 = sphi 0, %s120
      %s138 = sphi 0, %s138
      %s140 = sphi 0, %s138
      %s141 = sphi 0, %s140
      %s155 = sphi 0, %s141
      %s159 = sphi 0, %s159
      %s161 = sphi 0, %s159
      %s162 = sphi 0, %s161
      %s176 = sphi 0, %s162
      %s180 = sphi 0, %s180
      %s182 = sphi 0, %s180
      %s183 = sphi 0, %s182
      %s197 = sphi 0, %s183
      %s201 = sphi 0, %s201
      %s203 = sphi 0, %s201
      %s204 = sphi 0, %s203
      %s218 = sphi 0, %s204
      %s222 = sphi 0, %s222
      %s224 = sphi 0, %s222
      %s225 = sphi 0, %s224
      %s239 = sphi 0, %s225
      %s243 = sphi 0, %s243
      %s245 = sphi 0, %s243
      %s246 = sphi 0, %s245
      %s260 = sphi 0, %s246
      %s266 = sphi 0, %s268
      %s269 = sphi 0, %s266
      %s270 = sphi 0, %s269
      %s286 = sphi 0, %s270
    $region4: #{_lambda_.1} parent=1 // loop_header_branch
      %23 = sbr.rel (%p21) target = $region8
    $region5: #{_lambda_.1} parent=1 // loop_body
      %s25 = ssub.s32 %s20, 1
      %s26 = ssub.s32 %s20, 2
      %s27 = sadd.s32 %s20, 1
      %s28 = ssub.s32 %s20, %s27
      %p29 = scmp.eq.s32.totalorder %s28, 0
      %s31 = sadd.s32 %s30, 1
      %s32 = scalar_select %p29, %s30, %s31
      %p35 = pneg %p29
      %p36 = scmp.eq.s32.totalorder %s20, 1
      %p37 = por %p35, %p36
      %p38 = scmp.ne.s32.totalorder %s30, %s33
      %p39 = scmp.eq.s32.totalorder %s20, 0
      %p40 = por %p38, %p39
      %p41 = scmp.ne.s32.totalorder %s30, %s33
      %p42 = scmp.eq.s32.totalorder %s25, 1
      %p43 = por %p41, %p42
      %p44 = scmp.ne.s32.totalorder %s33, %s34
      %p45 = scmp.eq.s32.totalorder %s25, 0
      %p46 = por %p44, %p45
      %p47 = scmp.ne.s32.totalorder %s33, %s34
      %p48 = scmp.eq.s32.totalorder %s26, 1
      %p49 = por %p47, %p48
      %p51 = scmp.ne.s32.totalorder %s34, %s50
      %p52 = scmp.eq.s32.totalorder %s26, 0
      %p53 = por %p51, %p52
      %s55 = sadd.s32 %s54, 1
      %p58 = scmp.eq.s32.totalorder %s20, 1
      %p59 = scmp.ne.s32.totalorder %s54, %s56
      %p60 = scmp.eq.s32.totalorder %s20, 0
      %p61 = por %p59, %p60
      %p62 = scmp.ne.s32.totalorder %s54, %s56
      %p63 = scmp.eq.s32.totalorder %s25, 1
      %p64 = por %p62, %p63
      %p65 = scmp.ne.s32.totalorder %s56, %s57
      %p66 = scmp.eq.s32.totalorder %s25, 0
      %p67 = por %p65, %p66
      %p68 = scmp.ne.s32.totalorder %s56, %s57
      %p69 = scmp.eq.s32.totalorder %s26, 1
      %p70 = por %p68, %p69
      %p72 = scmp.ne.s32.totalorder %s57, %s71
      %p73 = scmp.eq.s32.totalorder %s26, 0
      %p74 = por %p72, %p73
      %s76 = sadd.s32 %s75, 1
      %p79 = scmp.eq.s32.totalorder %s20, 1
      %p80 = scmp.ne.s32.totalorder %s75, %s77
      %p81 = scmp.eq.s32.totalorder %s20, 0
      %p82 = por %p80, %p81
      %p83 = scmp.ne.s32.totalorder %s75, %s77
      %p84 = scmp.eq.s32.totalorder %s25, 1
      %p85 = por %p83, %p84
      %p86 = scmp.ne.s32.totalorder %s77, %s78
      %p87 = scmp.eq.s32.totalorder %s25, 0
      %p88 = por %p86, %p87
      %p89 = scmp.ne.s32.totalorder %s77, %s78
      %p90 = scmp.eq.s32.totalorder %s26, 1
      %p91 = por %p89, %p90
      %p93 = scmp.ne.s32.totalorder %s78, %s92
      %p94 = scmp.eq.s32.totalorder %s26, 0
      %p95 = por %p93, %p94
      %s97 = sadd.s32 %s96, 1
      %p100 = scmp.eq.s32.totalorder %s20, 1
      %p101 = scmp.ne.s32.totalorder %s96, %s98
      %p102 = scmp.eq.s32.totalorder %s20, 0
      %p103 = por %p101, %p102
      %p104 = scmp.ne.s32.totalorder %s96, %s98
      %p105 = scmp.eq.s32.totalorder %s25, 1
      %p106 = por %p104, %p105
      %p107 = scmp.ne.s32.totalorder %s98, %s99
      %p108 = scmp.eq.s32.totalorder %s25, 0
      %p109 = por %p107, %p108
      %p110 = scmp.ne.s32.totalorder %s98, %s99
      %p111 = scmp.eq.s32.totalorder %s26, 1
      %p112 = por %p110, %p111
      %p114 = scmp.ne.s32.totalorder %s99, %s113
      %p115 = scmp.eq.s32.totalorder %s26, 0
      %p116 = por %p114, %p115
      %s118 = sadd.s32 %s117, 1
      %p121 = scmp.eq.s32.totalorder %s20, 1
      %p122 = scmp.ne.s32.totalorder %s117, %s119
      %p123 = scmp.eq.s32.totalorder %s20, 0
      %p124 = por %p122, %p123
      %p125 = scmp.ne.s32.totalorder %s117, %s119
      %p126 = scmp.eq.s32.totalorder %s25, 1
      %p127 = por %p125, %p126
      %p128 = scmp.ne.s32.totalorder %s119, %s120
      %p129 = scmp.eq.s32.totalorder %s25, 0
      %p130 = por %p128, %p129
      %p131 = scmp.ne.s32.totalorder %s119, %s120
      %p132 = scmp.eq.s32.totalorder %s26, 1
      %p133 = por %p131, %p132
      %p135 = scmp.ne.s32.totalorder %s120, %s134
      %p136 = scmp.eq.s32.totalorder %s26, 0
      %p137 = por %p135, %p136
      %s139 = sadd.s32 %s138, 1
      %p142 = scmp.eq.s32.totalorder %s20, 1
      %p143 = scmp.ne.s32.totalorder %s138, %s140
      %p144 = scmp.eq.s32.totalorder %s20, 0
      %p145 = por %p143, %p144
      %p146 = scmp.ne.s32.totalorder %s138, %s140
      %p147 = scmp.eq.s32.totalorder %s25, 1
      %p148 = por %p146, %p147
      %p149 = scmp.ne.s32.totalorder %s140, %s141
      %p150 = scmp.eq.s32.totalorder %s25, 0
      %p151 = por %p149, %p150
      %p152 = scmp.ne.s32.totalorder %s140, %s141
      %p153 = scmp.eq.s32.totalorder %s26, 1
      %p154 = por %p152, %p153
      %p156 = scmp.ne.s32.totalorder %s141, %s155
      %p157 = scmp.eq.s32.totalorder %s26, 0
      %p158 = por %p156, %p157
      %s160 = sadd.s32 %s159, 1
      %p163 = scmp.eq.s32.totalorder %s20, 1
      %p164 = scmp.ne.s32.totalorder %s159, %s161
      %p165 = scmp.eq.s32.totalorder %s20, 0
      %p166 = por %p164, %p165
      %p167 = scmp.ne.s32.totalorder %s159, %s161
      %p168 = scmp.eq.s32.totalorder %s25, 1
      %p169 = por %p167, %p168
      %p170 = scmp.ne.s32.totalorder %s161, %s162
      %p171 = scmp.eq.s32.totalorder %s25, 0
      %p172 = por %p170, %p171
      %p173 = scmp.ne.s32.totalorder %s161, %s162
      %p174 = scmp.eq.s32.totalorder %s26, 1
      %p175 = por %p173, %p174
      %p177 = scmp.ne.s32.totalorder %s162, %s176
      %p178 = scmp.eq.s32.totalorder %s26, 0
      %p179 = por %p177, %p178
      %s181 = sadd.s32 %s180, 1
      %p184 = scmp.eq.s32.totalorder %s20, 1
      %p185 = scmp.ne.s32.totalorder %s180, %s182
      %p186 = scmp.eq.s32.totalorder %s20, 0
      %p187 = por %p185, %p186
      %p188 = scmp.ne.s32.totalorder %s180, %s182
      %p189 = scmp.eq.s32.totalorder %s25, 1
      %p190 = por %p188, %p189
      %p191 = scmp.ne.s32.totalorder %s182, %s183
      %p192 = scmp.eq.s32.totalorder %s25, 0
      %p193 = por %p191, %p192
      %p194 = scmp.ne.s32.totalorder %s182, %s183
      %p195 = scmp.eq.s32.totalorder %s26, 1
      %p196 = por %p194, %p195
      %p198 = scmp.ne.s32.totalorder %s183, %s197
      %p199 = scmp.eq.s32.totalorder %s26, 0
      %p200 = por %p198, %p199
      %s202 = sadd.s32 %s201, 1
      %p205 = scmp.eq.s32.totalorder %s20, 1
      %p206 = scmp.ne.s32.totalorder %s201, %s203
      %p207 = scmp.eq.s32.totalorder %s20, 0
      %p208 = por %p206, %p207
      %p209 = scmp.ne.s32.totalorder %s201, %s203
      %p210 = scmp.eq.s32.totalorder %s25, 1
      %p211 = por %p209, %p210
      %p212 = scmp.ne.s32.totalorder %s203, %s204
      %p213 = scmp.eq.s32.totalorder %s25, 0
      %p214 = por %p212, %p213
      %p215 = scmp.ne.s32.totalorder %s203, %s204
      %p216 = scmp.eq.s32.totalorder %s26, 1
      %p217 = por %p215, %p216
      %p219 = scmp.ne.s32.totalorder %s204, %s218
      %p220 = scmp.eq.s32.totalorder %s26, 0
      %p221 = por %p219, %p220
      %s223 = sadd.s32 %s222, 1
      %p226 = scmp.eq.s32.totalorder %s20, 1
      %p227 = scmp.ne.s32.totalorder %s222, %s224
      %p228 = scmp.eq.s32.totalorder %s20, 0
      %p229 = por %p227, %p228
      %p230 = scmp.ne.s32.totalorder %s222, %s224
      %p231 = scmp.eq.s32.totalorder %s25, 1
      %p232 = por %p230, %p231
      %p233 = scmp.ne.s32.totalorder %s224, %s225
      %p234 = scmp.eq.s32.totalorder %s25, 0
      %p235 = por %p233, %p234
      %p236 = scmp.ne.s32.totalorder %s224, %s225
      %p237 = scmp.eq.s32.totalorder %s26, 1
      %p238 = por %p236, %p237
      %p240 = scmp.ne.s32.totalorder %s225, %s239
      %p241 = scmp.eq.s32.totalorder %s26, 0
      %p242 = por %p240, %p241
      %s244 = sadd.s32 %s243, 1
      %p247 = scmp.eq.s32.totalorder %s20, 1
      %p248 = scmp.ne.s32.totalorder %s243, %s245
      %p249 = scmp.eq.s32.totalorder %s20, 0
      %p250 = por %p248, %p249
      %p251 = scmp.ne.s32.totalorder %s243, %s245
      %p252 = scmp.eq.s32.totalorder %s25, 1
      %p253 = por %p251, %p252
      %p254 = scmp.ne.s32.totalorder %s245, %s246
      %p255 = scmp.eq.s32.totalorder %s25, 0
      %p256 = por %p254, %p255
      %p257 = scmp.ne.s32.totalorder %s245, %s246
      %p258 = scmp.eq.s32.totalorder %s26, 1
      %p259 = por %p257, %p258
      %p261 = scmp.ne.s32.totalorder %s246, %s260
      %p262 = scmp.eq.s32.totalorder %s26, 0
      %p263 = por %p261, %p262
      %s264 = ssub.s32 %s20, %s27
      %p265 = scmp.eq.s32.totalorder %s264, 0
      %s267 = sadd.s32 %s266, 1
      %s268 = scalar_select %p265, %s266, %s267
      %p271 = pneg %p265
      %p272 = scmp.eq.s32.totalorder %s20, 1
      %p273 = por %p271, %p272
      %p274 = scmp.ne.s32.totalorder %s266, %s269
      %p275 = scmp.eq.s32.totalorder %s20, 0
      %p276 = por %p274, %p275
      %p277 = scmp.ne.s32.totalorder %s266, %s269
      %p278 = scmp.eq.s32.totalorder %s25, 1
      %p279 = por %p277, %p278
      %p280 = scmp.ne.s32.totalorder %s269, %s270
      %p281 = scmp.eq.s32.totalorder %s25, 0
      %p282 = por %p280, %p281
      %p283 = scmp.ne.s32.totalorder %s269, %s270
      %p284 = scmp.eq.s32.totalorder %s26, 1
      %p285 = por %p283, %p284
      %p287 = scmp.ne.s32.totalorder %s270, %s286
      %p288 = scmp.eq.s32.totalorder %s26, 0
      %p289 = por %p287, %p288
      %p290 = scmp.le.s32.totalorder 1, %s20
      %p291 = scmp.lt.s32.totalorder %s20, 3
      %p292 = pnand %p290, %p291
      %p293 = pneg %p292
      // Predicated region
      $region9: #{_lambda_.1} parent=5 // pred_check
        _
      $region10: #{_lambda_.1} parent=5 // pred_check_branch
        %295 = sbr.rel (%p292) target = $region12
      $region11: #{_lambda_.1} parent=5 // pred_region
        %s296 = ssub.s32 %s20, 1
        // Predicated region
        $region13: #{_lambda_.1} parent=11 // pred_check
          %p297 = pneg %p67
        $region14: #{_lambda_.1} parent=11 // pred_check_branch
          %299 = sbr.rel (%p297) target = $region16
        $region15: #{_lambda_.1} parent=11 // pred_region
          _
        $region16: #{_lambda_.1} parent=11 // pred_fallthru
          _
        // Predicated region
        $region17: #{_lambda_.1} parent=11 // pred_check
          %p300 = pneg %p88
        $region18: #{_lambda_.1} parent=11 // pred_check_branch
          %302 = sbr.rel (%p300) target = $region20
        $region19: #{_lambda_.1} parent=11 // pred_region
          _
        $region20: #{_lambda_.1} parent=11 // pred_fallthru
          _
        // Predicated region
        $region21: #{_lambda_.1} parent=11 // pred_check
          %p303 = pneg %p109
        $region22: #{_lambda_.1} parent=11 // pred_check_branch
          %305 = sbr.rel (%p303) target = $region24
        $region23: #{_lambda_.1} parent=11 // pred_region
          _
        $region24: #{_lambda_.1} parent=11 // pred_fallthru
          _
        // Predicated region
        $region25: #{_lambda_.1} parent=11 // pred_check
          %p306 = pneg %p130
        $region26: #{_lambda_.1} parent=11 // pred_check_branch
          %308 = sbr.rel (%p306) target = $region28
        $region27: #{_lambda_.1} parent=11 // pred_region
          _
        $region28: #{_lambda_.1} parent=11 // pred_fallthru
          _
        // Predicated region
        $region29: #{_lambda_.1} parent=11 // pred_check
          %p309 = pneg %p151
        $region30: #{_lambda_.1} parent=11 // pred_check_branch
          %311 = sbr.rel (%p309) target = $region32
        $region31: #{_lambda_.1} parent=11 // pred_region
          _
        $region32: #{_lambda_.1} parent=11 // pred_fallthru
          _
        // Predicated region
        $region33: #{_lambda_.1} parent=11 // pred_check
          %p312 = pneg %p172
        $region34: #{_lambda_.1} parent=11 // pred_check_branch
          %314 = sbr.rel (%p312) target = $region36
        $region35: #{_lambda_.1} parent=11 // pred_region
          _
        $region36: #{_lambda_.1} parent=11 // pred_fallthru
          _
        // Predicated region
        $region37: #{_lambda_.1} parent=11 // pred_check
          %p315 = pneg %p193
        $region38: #{_lambda_.1} parent=11 // pred_check_branch
          %317 = sbr.rel (%p315) target = $region40
        $region39: #{_lambda_.1} parent=11 // pred_region
          _
        $region40: #{_lambda_.1} parent=11 // pred_fallthru
          _
        // Predicated region
        $region41: #{_lambda_.1} parent=11 // pred_check
          %p318 = pneg %p214
        $region42: #{_lambda_.1} parent=11 // pred_check_branch
          %320 = sbr.rel (%p318) target = $region44
        $region43: #{_lambda_.1} parent=11 // pred_region
          _
        $region44: #{_lambda_.1} parent=11 // pred_fallthru
          _
        // Predicated region
        $region45: #{_lambda_.1} parent=11 // pred_check
          %p321 = pneg %p235
        $region46: #{_lambda_.1} parent=11 // pred_check_branch
          %323 = sbr.rel (%p321) target = $region48
        $region47: #{_lambda_.1} parent=11 // pred_region
          _
        $region48: #{_lambda_.1} parent=11 // pred_fallthru
          _
        // Predicated region
        $region49: #{_lambda_.1} parent=11 // pred_check
          %p324 = pneg %p256
        $region50: #{_lambda_.1} parent=11 // pred_check_branch
          %326 = sbr.rel (%p324) target = $region52
        $region51: #{_lambda_.1} parent=11 // pred_region
          _
        $region52: #{_lambda_.1} parent=11 // pred_fallthru
          _
      $region12: #{_lambda_.1} parent=5 // pred_fallthru
        _
      %p327 = scmp.lt.s32.totalorder %s20, 2
      // Predicated region
      $region53: #{_lambda_.1} parent=5 // pred_check
        %p328 = pneg %p327
      $region54: #{_lambda_.1} parent=5 // pred_check_branch
        %330 = sbr.rel (%p328) target = $region56
      $region55: #{_lambda_.1} parent=5 // pred_region
        // Predicated region
        $region57: #{_lambda_.1} parent=55 // pred_check
          %p331 = pneg %p40
        $region58: #{_lambda_.1} parent=55 // pred_check_branch
          %333 = sbr.rel (%p331) target = $region60
        $region59: #{_lambda_.1} parent=55 // pred_region
          %s334 = smul.u32 40, %s20
          %p335 = scmp.lt.s32.totalorder %s334, 79
          %s336 = scalar_select %p335, %s334, 79
          %s337 = smul.addr %s336, 8
          %s338 = scalar_lea.vmem %s0, %s337
          %s339 = smul.u32 40, %s20
        $region60: #{_lambda_.1} parent=55 // pred_fallthru
          _
      $region56: #{_lambda_.1} parent=5 // pred_fallthru
        _
      %p340 = scmp.le.s32.totalorder 1, %s20
      %p341 = scmp.lt.s32.totalorder %s20, 3
      %p342 = pnand %p340, %p341
      %p343 = pneg %p342
      // Predicated region
      $region61: #{_lambda_.1} parent=5 // pred_check
        _
      $region62: #{_lambda_.1} parent=5 // pred_check_branch
        %345 = sbr.rel (%p342) target = $region64
      $region63: #{_lambda_.1} parent=5 // pred_region
        %s346 = ssub.s32 %s20, 1
        %s347 = smul.u32 40, %s25
        %p348 = scmp.lt.s32.totalorder %s347, 79
        %s349 = scalar_select %p348, %s347, 79
        %s350 = smul.addr %s349, 8
        %s351 = scalar_lea.vmem %s0, %s350
        %p352 = pneg %p46
        %p353 = pneg %p43
        %p354 = pneg %p67
        %p355 = pneg %p64
        %p356 = pneg %p88
        %p357 = pneg %p85
        %p358 = pneg %p109
        %p359 = pneg %p106
        %p360 = pneg %p130
        %p361 = pneg %p127
        %p362 = pneg %p151
        %p363 = pneg %p148
        %p364 = pneg %p172
        %p365 = pneg %p169
        %p366 = pneg %p193
        %p367 = pneg %p190
        %p368 = pneg %p214
        %p369 = pneg %p211
        %p370 = pneg %p235
        %p371 = pneg %p232
        %p372 = pneg %p256
        %p373 = pneg %p253
        %p374 = pneg %p282
        %p375 = pneg %p279
        %s376 = sand.u32 %s269, 1
        %s377 = scalar_lea.sflag [#allocation5], %s376
        %s378 = sand.u32 %s269, 1
        %s379 = smul.addr %s378, 8
        %s380 = scalar_lea.vmem [#allocation4], %s379
        %s381 = smul.u32 40, %s25
        %p382 = scmp.lt.s32.totalorder %s381, 79
        %s383 = scalar_select %p382, %s381, 79
        %s384 = smul.addr %s383, 8
        %s385 = scalar_lea.vmem %s0, %s384
        %s386 = smul.u32 40, %s25
        %v388 = vld [vmem:[%s385] sm:$0xff]
        %v389 = vld [vmem:[%s385 + $0x8] sm:$0xff]
        %v390 = vld [vmem:[%s385 + $0x10] sm:$0xff]
        %v391 = vld [vmem:[%s385 + $0x18] sm:$0xff]
        %v392 = vld [vmem:[%s385 + $0x20] sm:$0xff]
        %v393 = vld [vmem:[%s385 + $0x28] sm:$0xff]
        %v394 = vld [vmem:[%s385 + $0x30] sm:$0xff]
        %v395 = vld [vmem:[%s385 + $0x38] sm:$0xff]
        %v396 = vld [vmem:[%s385 + $0x40] sm:$0xff]
        %v397 = vld [vmem:[%s385 + $0x48] sm:$0xff]
        %v398 = vld [vmem:[%s385 + $0x50] sm:$0xff]
        %v399 = vld [vmem:[%s385 + $0x58] sm:$0xff]
        %v400 = vld [vmem:[%s385 + $0x60] sm:$0xff]
        %v401 = vld [vmem:[%s385 + $0x68] sm:$0xff]
        %v402 = vld [vmem:[%s385 + $0x70] sm:$0xff]
        %v403 = vld [vmem:[%s385 + $0x78] sm:$0xff]
        %v404 = vld [vmem:[%s385 + $0x80] sm:$0xff]
        %v405 = vld [vmem:[%s385 + $0x88] sm:$0xff]
        %v406 = vld [vmem:[%s385 + $0x90] sm:$0xff]
        %v407 = vld [vmem:[%s385 + $0x98] sm:$0xff]
        %v408 = vld [vmem:[%s385 + $0xa0] sm:$0xff]
        %v409 = vld [vmem:[%s385 + $0xa8] sm:$0xff]
        %v410 = vld [vmem:[%s385 + $0xb0] sm:$0xff]
        %v411 = vld [vmem:[%s385 + $0xb8] sm:$0xff]
        %v412 = vld [vmem:[%s385 + $0xc0] sm:$0xff]
        %v413 = vld [vmem:[%s385 + $0xc8] sm:$0xff]
        %v414 = vld [vmem:[%s385 + $0xd0] sm:$0xff]
        %v415 = vld [vmem:[%s385 + $0xd8] sm:$0xff]
        %v416 = vld [vmem:[%s385 + $0xe0] sm:$0xff]
        %v417 = vld [vmem:[%s385 + $0xe8] sm:$0xff]
        %v418 = vld [vmem:[%s385 + $0xf0] sm:$0xff]
        %v419 = vld [vmem:[%s385 + $0xf8] sm:$0xff]
        %v420 = vld [vmem:[%s385 + $0x100] sm:$0xff]
        %v421 = vld [vmem:[%s385 + $0x108] sm:$0xff]
        %v422 = vld [vmem:[%s385 + $0x110] sm:$0xff]
        %v423 = vld [vmem:[%s385 + $0x118] sm:$0xff]
        %v424 = vld [vmem:[%s385 + $0x120] sm:$0xff]
        %v425 = vld [vmem:[%s385 + $0x128] sm:$0xff]
        %v426 = vld [vmem:[%s385 + $0x130] sm:$0xff]
        %v427 = vpack.c.bf16 %v389, %v388
        %v428 = vpack.c.bf16 %v391, %v390
        %v429 = vpack.c.bf16 %v393, %v392
        %v430 = vpack.c.bf16 %v395, %v394
        %v431 = vpack.c.bf16 %v397, %v396
        %v432 = vpack.c.bf16 %v399, %v398
        %v433 = vpack.c.bf16 %v401, %v400
        %v434 = vpack.c.bf16 %v403, %v402
        %v435 = vpack.c.bf16 %v405, %v404
        %v436 = vpack.c.bf16 %v407, %v406
        %v437 = vpack.c.bf16 %v409, %v408
        %v438 = vpack.c.bf16 %v411, %v410
        %v439 = vpack.c.bf16 %v413, %v412
        %v440 = vpack.c.bf16 %v415, %v414
        %v441 = vpack.c.bf16 %v417, %v416
        %v442 = vpack.c.bf16 %v419, %v418
        %v443 = vpack.c.bf16 %v421, %v420
        %v444 = vpack.c.bf16 %v423, %v422
        %v445 = vpack.c.bf16 %v425, %v424
        %v446 = vpack.c.bf16 %v426, %v426
        %v447 = vld [vmem:[%s1] sm:$0xff]
        %v448 = vld [vmem:[%s1 + $0x8] sm:$0xff]
        %v449 = vld [vmem:[%s1 + $0x10] sm:$0xff]
        %v450 = vld [vmem:[%s1 + $0x18] sm:$0xff]
        %v451 = vld [vmem:[%s1 + $0x20] sm:$0xff]
        %v452 = vld [vmem:[%s1 + $0x28] sm:$0xff]
        %v453 = vld [vmem:[%s1 + $0x30] sm:$0xff]
        %v454 = vld [vmem:[%s1 + $0x38] sm:$0xff]
        %v455 = vld [vmem:[%s1 + $0x40] sm:$0xff]
        %v456 = vld [vmem:[%s1 + $0x48] sm:$0xff]
        %v457 = vld [vmem:[%s1 + $0x50] sm:$0xff]
        %v458 = vld [vmem:[%s1 + $0x58] sm:$0xff]
        %v459 = vld [vmem:[%s1 + $0x60] sm:$0xff]
        %v460 = vld [vmem:[%s1 + $0x68] sm:$0xff]
        %v461 = vld [vmem:[%s1 + $0x70] sm:$0xff]
        %v462 = vld [vmem:[%s1 + $0x78] sm:$0xff]
        %v463 = vld [vmem:[%s385 + $0x1] sm:$0xff]
        %v464 = vld [vmem:[%s385 + $0x9] sm:$0xff]
        %v465 = vld [vmem:[%s385 + $0x11] sm:$0xff]
        %v466 = vld [vmem:[%s385 + $0x19] sm:$0xff]
        %v467 = vld [vmem:[%s385 + $0x21] sm:$0xff]
        %v468 = vld [vmem:[%s385 + $0x29] sm:$0xff]
        %v469 = vld [vmem:[%s385 + $0x31] sm:$0xff]
        %v470 = vld [vmem:[%s385 + $0x39] sm:$0xff]
        %v471 = vld [vmem:[%s385 + $0x41] sm:$0xff]
        %v472 = vld [vmem:[%s385 + $0x49] sm:$0xff]
        %v473 = vld [vmem:[%s385 + $0x51] sm:$0xff]
        %v474 = vld [vmem:[%s385 + $0x59] sm:$0xff]
        %v475 = vld [vmem:[%s385 + $0x61] sm:$0xff]
        %v476 = vld [vmem:[%s385 + $0x69] sm:$0xff]
        %v477 = vld [vmem:[%s385 + $0x71] sm:$0xff]
        %v478 = vld [vmem:[%s385 + $0x79] sm:$0xff]
        %v479 = vld [vmem:[%s385 + $0x81] sm:$0xff]
        %v480 = vld [vmem:[%s385 + $0x89] sm:$0xff]
        %v481 = vld [vmem:[%s385 + $0x91] sm:$0xff]
        %v482 = vld [vmem:[%s385 + $0x99] sm:$0xff]
        %v483 = vld [vmem:[%s385 + $0xa1] sm:$0xff]
        %v484 = vld [vmem:[%s385 + $0xa9] sm:$0xff]
        %v485 = vld [vmem:[%s385 + $0xb1] sm:$0xff]
        %v486 = vld [vmem:[%s385 + $0xb9] sm:$0xff]
        %v487 = vld [vmem:[%s385 + $0xc1] sm:$0xff]
        %v488 = vld [vmem:[%s385 + $0xc9] sm:$0xff]
        %v489 = vld [vmem:[%s385 + $0xd1] sm:$0xff]
        %v490 = vld [vmem:[%s385 + $0xd9] sm:$0xff]
        %v491 = vld [vmem:[%s385 + $0xe1] sm:$0xff]
        %v492 = vld [vmem:[%s385 + $0xe9] sm:$0xff]
        %v493 = vld [vmem:[%s385 + $0xf1] sm:$0xff]
        %v494 = vld [vmem:[%s385 + $0xf9] sm:$0xff]
        %v495 = vld [vmem:[%s385 + $0x101] sm:$0xff]
        %v496 = vld [vmem:[%s385 + $0x109] sm:$0xff]
        %v497 = vld [vmem:[%s385 + $0x111] sm:$0xff]
        %v498 = vld [vmem:[%s385 + $0x119] sm:$0xff]
        %v499 = vld [vmem:[%s385 + $0x121] sm:$0xff]
        %v500 = vld [vmem:[%s385 + $0x129] sm:$0xff]
        %v501 = vld [vmem:[%s385 + $0x131] sm:$0xff]
        %v502 = vpack.c.bf16 %v464, %v463
        %v503 = vpack.c.bf16 %v466, %v465
        %v504 = vpack.c.bf16 %v468, %v467
        %v505 = vpack.c.bf16 %v470, %v469
        %v506 = vpack.c.bf16 %v472, %v471
        %v507 = vpack.c.bf16 %v474, %v473
        %v508 = vpack.c.bf16 %v476, %v475
        %v509 = vpack.c.bf16 %v478, %v477
        %v510 = vpack.c.bf16 %v480, %v479
        %v511 = vpack.c.bf16 %v482, %v481
        %v512 = vpack.c.bf16 %v484, %v483
        %v513 = vpack.c.bf16 %v486, %v485
        %v514 = vpack.c.bf16 %v488, %v487
        %v515 = vpack.c.bf16 %v490, %v489
        %v516 = vpack.c.bf16 %v492, %v491
        %v517 = vpack.c.bf16 %v494, %v493
        %v518 = vpack.c.bf16 %v496, %v495
        %v519 = vpack.c.bf16 %v498, %v497
        %v520 = vpack.c.bf16 %v500, %v499
        %v521 = vpack.c.bf16 %v501, %v501
        %s522 = scalar_lea.vmem %s1, 128
        %v523 = vld [vmem:[%s522] sm:$0xff]
        %v524 = vld [vmem:[%s522 + $0x8] sm:$0xff]
        %v525 = vld [vmem:[%s522 + $0x10] sm:$0xff]
        %v526 = vld [vmem:[%s522 + $0x18] sm:$0xff]
        %v527 = vld [vmem:[%s522 + $0x20] sm:$0xff]
        %v528 = vld [vmem:[%s522 + $0x28] sm:$0xff]
        %v529 = vld [vmem:[%s522 + $0x30] sm:$0xff]
        %v530 = vld [vmem:[%s522 + $0x38] sm:$0xff]
        %v531 = vld [vmem:[%s522 + $0x40] sm:$0xff]
        %v532 = vld [vmem:[%s522 + $0x48] sm:$0xff]
        %v533 = vld [vmem:[%s522 + $0x50] sm:$0xff]
        %v534 = vld [vmem:[%s522 + $0x58] sm:$0xff]
        %v535 = vld [vmem:[%s522 + $0x60] sm:$0xff]
        %v536 = vld [vmem:[%s522 + $0x68] sm:$0xff]
        %v537 = vld [vmem:[%s522 + $0x70] sm:$0xff]
        %v538 = vld [vmem:[%s522 + $0x78] sm:$0xff]
        %v555 = vunpack.c.l.b16 %v523
        %v556 = vunpack.c.h.b16 %v523
        %v557 = vunpack.c.l.b16 %v524
        %v558 = vunpack.c.h.b16 %v524
        %v559 = vunpack.c.l.b16 %v525
        %v560 = vunpack.c.h.b16 %v525
        %v561 = vunpack.c.l.b16 %v526
        %v562 = vunpack.c.h.b16 %v526
        %v563 = vunpack.c.l.b16 %v527
        %v564 = vunpack.c.h.b16 %v527
        %v565 = vunpack.c.l.b16 %v528
        %v566 = vunpack.c.h.b16 %v528
        %v567 = vunpack.c.l.b16 %v529
        %v568 = vunpack.c.h.b16 %v529
        %v569 = vunpack.c.l.b16 %v530
        %v570 = vunpack.c.h.b16 %v530
        %v571 = vunpack.c.l.b16 %v531
        %v572 = vunpack.c.h.b16 %v531
        %v573 = vunpack.c.l.b16 %v532
        %v574 = vunpack.c.h.b16 %v532
        %v575 = vunpack.c.l.b16 %v533
        %v576 = vunpack.c.h.b16 %v533
        %v577 = vunpack.c.l.b16 %v534
        %v578 = vunpack.c.h.b16 %v534
        %v579 = vunpack.c.l.b16 %v535
        %v580 = vunpack.c.h.b16 %v535
        %v581 = vunpack.c.l.b16 %v536
        %v582 = vunpack.c.h.b16 %v536
        %v583 = vunpack.c.l.b16 %v537
        %v584 = vunpack.c.h.b16 %v537
        %v585 = vunpack.c.l.b16 %v538
        %v586 = vunpack.c.h.b16 %v538
        %v587 = vpack.c.b16 %v557, %v555
        %v588 = vpack.c.b16 %v558, %v556
        %v589 = vpack.c.b16 %v561, %v559
        %v590 = vpack.c.b16 %v562, %v560
        %v591 = vpack.c.b16 %v565, %v563
        %v592 = vpack.c.b16 %v566, %v564
        %v593 = vpack.c.b16 %v569, %v567
        %v594 = vpack.c.b16 %v570, %v568
        %v595 = vpack.c.b16 %v573, %v571
        %v596 = vpack.c.b16 %v574, %v572
        %v597 = vpack.c.b16 %v577, %v575
        %v598 = vpack.c.b16 %v578, %v576
        %v599 = vpack.c.b16 %v581, %v579
        %v600 = vpack.c.b16 %v582, %v580
        %v601 = vpack.c.b16 %v585, %v583
        %v602 = vpack.c.b16 %v586, %v584
        %619 = vmatprep.subr.bf16.mxu0 %v588
        %620 = vmatpush1.bf16.msra.mxu0 %v587
        %621 = vmatprep.subr.bf16.mxu0 %v590
        %622 = vmatpush1.bf16.msra.mxu0 %v589
        %623 = vmatprep.subr.bf16.mxu0 %v592
        %624 = vmatpush1.bf16.msra.mxu0 %v591
        %625 = vmatprep.subr.bf16.mxu0 %v594
        %626 = vmatpush1.bf16.msra.mxu0 %v593
        %627 = vmatprep.subr.bf16.mxu0 %v596
        %628 = vmatpush1.bf16.msra.mxu0 %v595
        %629 = vmatprep.subr.bf16.mxu0 %v598
        %630 = vmatpush1.bf16.msra.mxu0 %v597
        %631 = vmatprep.subr.bf16.mxu0 %v600
        %632 = vmatpush1.bf16.msra.mxu0 %v599
        %633 = vmatprep.subr.bf16.mxu0 %v602
        %634 = vmatpush1.bf16.msra.mxu0 %v601
        %635 = vmatprep.subr.bf16.mxu0 0
        %636 = vmatpush1.bf16.msra.mxu0 0
        %637 = vmatprep.subr.bf16.mxu0 0
        %638 = vmatpush1.bf16.msra.mxu0 0
        %639 = vmatprep.subr.bf16.mxu0 0
        %640 = vmatpush1.bf16.msra.mxu0 0
        %641 = vmatprep.subr.bf16.mxu0 0
        %642 = vmatpush1.bf16.msra.mxu0 0
        %643 = vmatprep.subr.bf16.mxu0 0
        %644 = vmatpush1.bf16.msra.mxu0 0
        %645 = vmatprep.subr.bf16.mxu0 0
        %646 = vmatpush1.bf16.msra.mxu0 0
        %647 = vmatprep.subr.bf16.mxu0 0
        %648 = vmatpush1.bf16.msra.mxu0 0
        %649 = vmatprep.subr.bf16.mxu0 0
        %650 = vmatpush1.bf16.msra.mxu0 0
        %651 = vmatprep.mubr.bf16.mxu0 0
        %652 = vmatmul.mubr.bf16.gmra.mrb[0].mxu0 %v502
        %v653 = vpop.f32.mrb[0].mxu0
        %v654 = vadd.f32 0.0, %v653
        %v655 = vpop.f32.mrb[0].mxu0
        %v656 = vadd.f32 0.0, %v655
        %v657 = vpop.f32.mrb[0].mxu0
        %v658 = vadd.f32 0.0, %v657
        %v659 = vpop.f32.mrb[0].mxu0
        %v660 = vadd.f32 0.0, %v659
        %661 = vmatprep.mubr.bf16.mxu0 0
        %662 = vmatmul.mubr.bf16.gmra.mrb[0].mxu0 %v503
        %v663 = vpop.f32.mrb[0].mxu0
        %v664 = vadd.f32 0.0, %v663
        %v665 = vpop.f32.mrb[0].mxu0
        %v666 = vadd.f32 0.0, %v665
        %v667 = vpop.f32.mrb[0].mxu0
        %v668 = vadd.f32 0.0, %v667
        %v669 = vpop.f32.mrb[0].mxu0
        %v670 = vadd.f32 0.0, %v669
        %671 = vmatprep.mubr.bf16.mxu0 0
        %672 = vmatmul.mubr.bf16.gmra.mrb[0].mxu0 %v504
        %v673 = vpop.f32.mrb[0].mxu0
        %v674 = vadd.f32 0.0, %v673
        %v675 = vpop.f32.mrb[0].mxu0
        %v676 = vadd.f32 0.0, %v675
        %v677 = vpop.f32.mrb[0].mxu0
        %v678 = vadd.f32 0.0, %v677
        %v679 = vpop.f32.mrb[0].mxu0
        %v680 = vadd.f32 0.0, %v679
        %681 = vmatprep.mubr.bf16.mxu0 0
        %682 = vmatmul.mubr.bf16.gmra.mrb[0].mxu0 %v505
        %v683 = vpop.f32.mrb[0].mxu0
        %v684 = vadd.f32 0.0, %v683
        %v685 = vpop.f32.mrb[0].mxu0
        %v686 = vadd.f32 0.0, %v685
        %v687 = vpop.f32.mrb[0].mxu0
        %v688 = vadd.f32 0.0, %v687
        %v689 = vpop.f32.mrb[0].mxu0
        %v690 = vadd.f32 0.0, %v689
        %691 = vmatprep.mubr.bf16.mxu0 0
        %692 = vmatmul.mubr.bf16.gmra.mrb[0].mxu0 %v506
        %v693 = vpop.f32.mrb[0].mxu0
        %v694 = vadd.f32 0.0, %v693
        %v695 = vpop.f32.mrb[0].mxu0
        %v696 = vadd.f32 0.0, %v695
        %v697 = vpop.f32.mrb[0].mxu0
        %v698 = vadd.f32 0.0, %v697
        %v699 = vpop.f32.mrb[0].mxu0
        %v700 = vadd.f32 0.0, %v699
        %701 = vmatprep.mubr.bf16.mxu0 0
        %702 = vmatmul.mubr.bf16.gmra.mrb[0].mxu0 %v507
        %v703 = vpop.f32.mrb[0].mxu0
        %v704 = vadd.f32 0.0, %v703
        %v705 = vpop.f32.mrb[0].mxu0
        %v706 = vadd.f32 0.0, %v705
        %v707 = vpop.f32.mrb[0].mxu0
        %v708 = vadd.f32 0.0, %v707
        %v709 = vpop.f32.mrb[0].mxu0
        %v710 = vadd.f32 0.0, %v709
        %711 = vmatprep.mubr.bf16.mxu0 0
        %712 = vmatmul.mubr.bf16.gmra.mrb[0].mxu0 %v508
        %v713 = vpop.f32.mrb[0].mxu0
        %v714 = vadd.f32 0.0, %v713
        %v715 = vpop.f32.mrb[0].mxu0
        %v716 = vadd.f32 0.0, %v715
        %v717 = vpop.f32.mrb[0].mxu0
        %v718 = vadd.f32 0.0, %v717
        %v719 = vpop.f32.mrb[0].mxu0
        %v720 = vadd.f32 0.0, %v719
        %721 = vmatprep.mubr.bf16.mxu0 0
        %722 = vmatmul.mubr.bf16.gmra.mrb[0].mxu0 %v509
        %v723 = vpop.f32.mrb[0].mxu0
        %v724 = vadd.f32 0.0, %v723
        %v725 = vpop.f32.mrb[0].mxu0
        %v726 = vadd.f32 0.0, %v725
        %v727 = vpop.f32.mrb[0].mxu0
        %v728 = vadd.f32 0.0, %v727
        %v729 = vpop.f32.mrb[0].mxu0
        %v730 = vadd.f32 0.0, %v729
        %731 = vmatprep.mubr.bf16.mxu0 0
        %732 = vmatmul.mubr.bf16.gmra.mrb[0].mxu0 %v510
        %v733 = vpop.f32.mrb[0].mxu0
        %v734 = vadd.f32 0.0, %v733
        %v735 = vpop.f32.mrb[0].mxu0
        %v736 = vadd.f32 0.0, %v735
        %v737 = vpop.f32.mrb[0].mxu0
        %v738 = vadd.f32 0.0, %v737
        %v739 = vpop.f32.mrb[0].mxu0
        %v740 = vadd.f32 0.0, %v739
        %741 = vmatprep.mubr.bf16.mxu0 0
        %742 = vmatmul.mubr.bf16.gmra.mrb[0].mxu0 %v511
        %v743 = vpop.f32.mrb[0].mxu0
        %v744 = vadd.f32 0.0, %v743
        %v745 = vpop.f32.mrb[0].mxu0
        %v746 = vadd.f32 0.0, %v745
        %v747 = vpop.f32.mrb[0].mxu0
        %v748 = vadd.f32 0.0, %v747
        %v749 = vpop.f32.mrb[0].mxu0
        %v750 = vadd.f32 0.0, %v749
        %751 = vmatprep.mubr.bf16.mxu0 0
        %752 = vmatmul.mubr.bf16.gmra.mrb[0].mxu0 %v512
        %v753 = vpop.f32.mrb[0].mxu0
        %v754 = vadd.f32 0.0, %v753
        %v755 = vpop.f32.mrb[0].mxu0
        %v756 = vadd.f32 0.0, %v755
        %v757 = vpop.f32.mrb[0].mxu0
        %v758 = vadd.f32 0.0, %v757
        %v759 = vpop.f32.mrb[0].mxu0
        %v760 = vadd.f32 0.0, %v759
        %761 = vmatprep.mubr.bf16.mxu0 0
        %762 = vmatmul.mubr.bf16.gmra.mrb[0].mxu0 %v513
        %v763 = vpop.f32.mrb[0].mxu0
        %v764 = vadd.f32 0.0, %v763
        %v765 = vpop.f32.mrb[0].mxu0
        %v766 = vadd.f32 0.0, %v765
        %v767 = vpop.f32.mrb[0].mxu0
        %v768 = vadd.f32 0.0, %v767
        %v769 = vpop.f32.mrb[0].mxu0
        %v770 = vadd.f32 0.0, %v769
        %771 = vmatprep.mubr.bf16.mxu0 0
        %772 = vmatmul.mubr.bf16.gmra.mrb[0].mxu0 %v514
        %v773 = vpop.f32.mrb[0].mxu0
        %v774 = vadd.f32 0.0, %v773
        %v775 = vpop.f32.mrb[0].mxu0
        %v776 = vadd.f32 0.0, %v775
        %v777 = vpop.f32.mrb[0].mxu0
        %v778 = vadd.f32 0.0, %v777
        %v779 = vpop.f32.mrb[0].mxu0
        %v780 = vadd.f32 0.0, %v779
        %781 = vmatprep.mubr.bf16.mxu0 0
        %782 = vmatmul.mubr.bf16.gmra.mrb[0].mxu0 %v515
        %v783 = vpop.f32.mrb[0].mxu0
        %v784 = vadd.f32 0.0, %v783
        %v785 = vpop.f32.mrb[0].mxu0
        %v786 = vadd.f32 0.0, %v785
        %v787 = vpop.f32.mrb[0].mxu0
        %v788 = vadd.f32 0.0, %v787
        %v789 = vpop.f32.mrb[0].mxu0
        %v790 = vadd.f32 0.0, %v789
        %791 = vmatprep.mubr.bf16.mxu0 0
        %792 = vmatmul.mubr.bf16.gmra.mrb[0].mxu0 %v516
        %v793 = vpop.f32.mrb[0].mxu0
        %v794 = vadd.f32 0.0, %v793
        %v795 = vpop.f32.mrb[0].mxu0
        %v796 = vadd.f32 0.0, %v795
        %v797 = vpop.f32.mrb[0].mxu0
        %v798 = vadd.f32 0.0, %v797
        %v799 = vpop.f32.mrb[0].mxu0
        %v800 = vadd.f32 0.0, %v799
        %801 = vmatprep.mubr.bf16.mxu0 0
        %802 = vmatmul.mubr.bf16.gmra.mrb[0].mxu0 %v517
        %v803 = vpop.f32.mrb[0].mxu0
        %v804 = vadd.f32 0.0, %v803
        %v805 = vpop.f32.mrb[0].mxu0
        %v806 = vadd.f32 0.0, %v805
        %v807 = vpop.f32.mrb[0].mxu0
        %v808 = vadd.f32 0.0, %v807
        %v809 = vpop.f32.mrb[0].mxu0
        %v810 = vadd.f32 0.0, %v809
        %811 = vmatprep.mubr.bf16.mxu0 0
        %812 = vmatmul.mubr.bf16.gmra.mrb[0].mxu0 %v518
        %v813 = vpop.f32.mrb[0].mxu0
        %v814 = vadd.f32 0.0, %v813
        %v815 = vpop.f32.mrb[0].mxu0
        %v816 = vadd.f32 0.0, %v815
        %v817 = vpop.f32.mrb[0].mxu0
        %v818 = vadd.f32 0.0, %v817
        %v819 = vpop.f32.mrb[0].mxu0
        %v820 = vadd.f32 0.0, %v819
        %821 = vmatprep.mubr.bf16.mxu0 0
        %822 = vmatmul.mubr.bf16.gmra.mrb[0].mxu0 %v519
        %v823 = vpop.f32.mrb[0].mxu0
        %v824 = vadd.f32 0.0, %v823
        %v825 = vpop.f32.mrb[0].mxu0
        %v826 = vadd.f32 0.0, %v825
        %v827 = vpop.f32.mrb[0].mxu0
        %v828 = vadd.f32 0.0, %v827
        %v829 = vpop.f32.mrb[0].mxu0
        %v830 = vadd.f32 0.0, %v829
        %831 = vmatprep.mubr.bf16.mxu0 0
        %832 = vmatmul.mubr.bf16.gmra.mrb[0].mxu0 %v520
        %v833 = vpop.f32.mrb[0].mxu0
        %v834 = vadd.f32 0.0, %v833
        %v835 = vpop.f32.mrb[0].mxu0
        %v836 = vadd.f32 0.0, %v835
        %v837 = vpop.f32.mrb[0].mxu0
        %v838 = vadd.f32 0.0, %v837
        %v839 = vpop.f32.mrb[0].mxu0
        %v840 = vadd.f32 0.0, %v839
        %841 = vmatprep.mubr.bf16.mxu0 0
        %842 = vmatmul.mubr.bf16.gmra.mrb[0].mxu0 %v521
        %v843 = vpop.f32.mrb[0].mxu0
        %v844 = vadd.f32 0.0, %v843
        %v845 = vpop.f32.mrb[0].mxu0
        %v846 = vadd.f32 0.0, %v845
        %v847 = vpop.f32.mrb[0].mxu0
        %v848 = vpop.f32.mrb[0].mxu0
        %849 = vdwg.mxu0
        %v866 = vunpack.c.l.b16 %v447
        %v867 = vunpack.c.h.b16 %v447
        %v868 = vunpack.c.l.b16 %v448
        %v869 = vunpack.c.h.b16 %v448
        %v870 = vunpack.c.l.b16 %v449
        %v871 = vunpack.c.h.b16 %v449
        %v872 = vunpack.c.l.b16 %v450
        %v873 = vunpack.c.h.b16 %v450
        %v874 = vunpack.c.l.b16 %v451
        %v875 = vunpack.c.h.b16 %v451
        %v876 = vunpack.c.l.b16 %v452
        %v877 = vunpack.c.h.b16 %v452
        %v878 = vunpack.c.l.b16 %v453
        %v879 = vunpack.c.h.b16 %v453
        %v880 = vunpack.c.l.b16 %v454
        %v881 = vunpack.c.h.b16 %v454
        %v882 = vunpack.c.l.b16 %v455
        %v883 = vunpack.c.h.b16 %v455
        %v884 = vunpack.c.l.b16 %v456
        %v885 = vunpack.c.h.b16 %v456
        %v886 = vunpack.c.l.b16 %v457
        %v887 = vunpack.c.h.b16 %v457
        %v888 = vunpack.c.l.b16 %v458
        %v889 = vunpack.c.h.b16 %v458
        %v890 = vunpack.c.l.b16 %v459
        %v891 = vunpack.c.h.b16 %v459
        %v892 = vunpack.c.l.b16 %v460
        %v893 = vunpack.c.h.b16 %v460
        %v894 = vunpack.c.l.b16 %v461
        %v895 = vunpack.c.h.b16 %v461
        %v896 = vunpack.c.l.b16 %v462
        %v897 = vunpack.c.h.b16 %v462
        %v898 = vpack.c.b16 %v868, %v866
        %v899 = vpack.c.b16 %v869, %v867
        %v900 = vpack.c.b16 %v872, %v870
        %v901 = vpack.c.b16 %v873, %v871
        %v902 = vpack.c.b16 %v876, %v874
        %v903 = vpack.c.b16 %v877, %v875
        %v904 = vpack.c.b16 %v880, %v878
        %v905 = vpack.c.b16 %v881, %v879
        %v906 = vpack.c.b16 %v884, %v882
        %v907 = vpack.c.b16 %v885, %v883
        %v908 = vpack.c.b16 %v888, %v886
        %v909 = vpack.c.b16 %v889, %v887
        %v910 = vpack.c.b16 %v892, %v890
        %v911 = vpack.c.b16 %v893, %v891
        %v912 = vpack.c.b16 %v896, %v894
        %v913 = vpack.c.b16 %v897, %v895
        %930 = vmatprep.subr.bf16.mxu0 %v899
        %931 = vmatpush1.bf16.msra.mxu0 %v898
        %932 = vmatprep.subr.bf16.mxu0 %v901
        %933 = vmatpush1.bf16.msra.mxu0 %v900
        %934 = vmatprep.subr.bf16.mxu0 %v903
        %935 = vmatpush1.bf16.msra.mxu0 %v902
        %936 = vmatprep.subr.bf16.mxu0 %v905
        %937 = vmatpush1.bf16.msra.mxu0 %v904
        %938 = vmatprep.subr.bf16.mxu0 %v907
        %939 = vmatpush1.bf16.msra.mxu0 %v906
        %940 = vmatprep.subr.bf16.mxu0 %v909
        %941 = vmatpush1.bf16.msra.mxu0 %v908
        %942 = vmatprep.subr.bf16.mxu0 %v911
        %943 = vmatpush1.bf16.msra.mxu0 %v910
        %944 = vmatprep.subr.bf16.mxu0 %v913
        %945 = vmatpush1.bf16.msra.mxu0 %v912
        %946 = vmatprep.subr.bf16.mxu0 0
        %947 = vmatpush1.bf16.msra.mxu0 0
        %948 = vmatprep.subr.bf16.mxu0 0
        %949 = vmatpush1.bf16.msra.mxu0 0
        %950 = vmatprep.subr.bf16.mxu0 0
        %951 = vmatpush1.bf16.msra.mxu0 0
        %952 = vmatprep.subr.bf16.mxu0 0
        %953 = vmatpush1.bf16.msra.mxu0 0
        %954 = vmatprep.subr.bf16.mxu0 0
        %955 = vmatpush1.bf16.msra.mxu0 0
        %956 = vmatprep.subr.bf16.mxu0 0
        %957 = vmatpush1.bf16.msra.mxu0 0
        %958 = vmatprep.subr.bf16.mxu0 0
        %959 = vmatpush1.bf16.msra.mxu0 0
        %960 = vmatprep.subr.bf16.mxu0 0
        %961 = vmatpush1.bf16.msra.mxu0 0
        %962 = vmatprep.mubr.bf16.mxu0 0
        %963 = vmatmul.mubr.bf16.gmra.mrb[0].mxu0 %v427
        %v964 = vpop.f32.mrb[0].mxu0
        %v965 = vadd.f32 %v654, %v964
        %v966 = vpop.f32.mrb[0].mxu0
        %v967 = vadd.f32 %v656, %v966
        %v968 = vpop.f32.mrb[0].mxu0
        %v969 = vadd.f32 %v658, %v968
        %v970 = vpop.f32.mrb[0].mxu0
        %v971 = vadd.f32 %v660, %v970
        %972 = vmatprep.mubr.bf16.mxu0 0
        %973 = vmatmul.mubr.bf16.gmra.mrb[0].mxu0 %v428
        %v974 = vpop.f32.mrb[0].mxu0
        %v975 = vadd.f32 %v664, %v974
        %v976 = vpop.f32.mrb[0].mxu0
        %v977 = vadd.f32 %v666, %v976
        %v978 = vpop.f32.mrb[0].mxu0
        %v979 = vadd.f32 %v668, %v978
        %v980 = vpop.f32.mrb[0].mxu0
        %v981 = vadd.f32 %v670, %v980
        %982 = vmatprep.mubr.bf16.mxu0 0
        %983 = vmatmul.mubr.bf16.gmra.mrb[0].mxu0 %v429
        %v984 = vpop.f32.mrb[0].mxu0
        %v985 = vadd.f32 %v674, %v984
        %v986 = vpop.f32.mrb[0].mxu0
        %v987 = vadd.f32 %v676, %v986
        %v988 = vpop.f32.mrb[0].mxu0
        %v989 = vadd.f32 %v678, %v988
        %v990 = vpop.f32.mrb[0].mxu0
        %v991 = vadd.f32 %v680, %v990
        %992 = vmatprep.mubr.bf16.mxu0 0
        %993 = vmatmul.mubr.bf16.gmra.mrb[0].mxu0 %v430
        %v994 = vpop.f32.mrb[0].mxu0
        %v995 = vadd.f32 %v684, %v994
        %v996 = vpop.f32.mrb[0].mxu0
        %v997 = vadd.f32 %v686, %v996
        %v998 = vpop.f32.mrb[0].mxu0
        %v999 = vadd.f32 %v688, %v998
        %v1000 = vpop.f32.mrb[0].mxu0
        %v1001 = vadd.f32 %v690, %v1000
        %1002 = vmatprep.mubr.bf16.mxu0 0
        %1003 = vmatmul.mubr.bf16.gmra.mrb[0].mxu0 %v431
        %v1004 = vpop.f32.mrb[0].mxu0
        %v1005 = vadd.f32 %v694, %v1004
        %v1006 = vpop.f32.mrb[0].mxu0
        %v1007 = vadd.f32 %v696, %v1006
        %v1008 = vpop.f32.mrb[0].mxu0
        %v1009 = vadd.f32 %v698, %v1008
        %v1010 = vpop.f32.mrb[0].mxu0
        %v1011 = vadd.f32 %v700, %v1010
        %1012 = vmatprep.mubr.bf16.mxu0 0
        %1013 = vmatmul.mubr.bf16.gmra.mrb[0].mxu0 %v432
        %v1014 = vpop.f32.mrb[0].mxu0
        %v1015 = vadd.f32 %v704, %v1014
        %v1016 = vpop.f32.mrb[0].mxu0
        %v1017 = vadd.f32 %v706, %v1016
        %v1018 = vpop.f32.mrb[0].mxu0
        %v1019 = vadd.f32 %v708, %v1018
        %v1020 = vpop.f32.mrb[0].mxu0
        %v1021 = vadd.f32 %v710, %v1020
        %1022 = vmatprep.mubr.bf16.mxu0 0
        %1023 = vmatmul.mubr.bf16.gmra.mrb[0].mxu0 %v433
        %v1024 = vpop.f32.mrb[0].mxu0
        %v1025 = vadd.f32 %v714, %v1024
        %v1026 = vpop.f32.mrb[0].mxu0
        %v1027 = vadd.f32 %v716, %v1026
        %v1028 = vpop.f32.mrb[0].mxu0
        %v1029 = vadd.f32 %v718, %v1028
        %v1030 = vpop.f32.mrb[0].mxu0
        %v1031 = vadd.f32 %v720, %v1030
        %1032 = vmatprep.mubr.bf16.mxu0 0
        %1033 = vmatmul.mubr.bf16.gmra.mrb[0].mxu0 %v434
        %v1034 = vpop.f32.mrb[0].mxu0
        %v1035 = vadd.f32 %v724, %v1034
        %v1036 = vpop.f32.mrb[0].mxu0
        %v1037 = vadd.f32 %v726, %v1036
        %v1038 = vpop.f32.mrb[0].mxu0
        %v1039 = vadd.f32 %v728, %v1038
        %v1040 = vpop.f32.mrb[0].mxu0
        %v1041 = vadd.f32 %v730, %v1040
        %1042 = vmatprep.mubr.bf16.mxu0 0
        %1043 = vmatmul.mubr.bf16.gmra.mrb[0].mxu0 %v435
        %v1044 = vpop.f32.mrb[0].mxu0
        %v1045 = vadd.f32 %v734, %v1044
        %v1046 = vpop.f32.mrb[0].mxu0
        %v1047 = vadd.f32 %v736, %v1046
        %v1048 = vpop.f32.mrb[0].mxu0
        %v1049 = vadd.f32 %v738, %v1048
        %v1050 = vpop.f32.mrb[0].mxu0
        %v1051 = vadd.f32 %v740, %v1050
        %1052 = vmatprep.mubr.bf16.mxu0 0
        %1053 = vmatmul.mubr.bf16.gmra.mrb[0].mxu0 %v436
        %v1054 = vpop.f32.mrb[0].mxu0
        %v1055 = vadd.f32 %v744, %v1054
        %v1056 = vpop.f32.mrb[0].mxu0
        %v1057 = vadd.f32 %v746, %v1056
        %v1058 = vpop.f32.mrb[0].mxu0
        %v1059 = vadd.f32 %v748, %v1058
        %v1060 = vpop.f32.mrb[0].mxu0
        %v1061 = vadd.f32 %v750, %v1060
        %1062 = vmatprep.mubr.bf16.mxu0 0
        %1063 = vmatmul.mubr.bf16.gmra.mrb[0].mxu0 %v437
        %v1064 = vpop.f32.mrb[0].mxu0
        %v1065 = vadd.f32 %v754, %v1064
        %v1066 = vpop.f32.mrb[0].mxu0
        %v1067 = vadd.f32 %v756, %v1066
        %v1068 = vpop.f32.mrb[0].mxu0
        %v1069 = vadd.f32 %v758, %v1068
        %v1070 = vpop.f32.mrb[0].mxu0
        %v1071 = vadd.f32 %v760, %v1070
        %1072 = vmatprep.mubr.bf16.mxu0 0
        %1073 = vmatmul.mubr.bf16.gmra.mrb[0].mxu0 %v438
        %v1074 = vpop.f32.mrb[0].mxu0
        %v1075 = vadd.f32 %v764, %v1074
        %v1076 = vpop.f32.mrb[0].mxu0
        %v1077 = vadd.f32 %v766, %v1076
        %v1078 = vpop.f32.mrb[0].mxu0
        %v1079 = vadd.f32 %v768, %v1078
        %v1080 = vpop.f32.mrb[0].mxu0
        %v1081 = vadd.f32 %v770, %v1080
        %1082 = vmatprep.mubr.bf16.mxu0 0
        %1083 = vmatmul.mubr.bf16.gmra.mrb[0].mxu0 %v439
        %v1084 = vpop.f32.mrb[0].mxu0
        %v1085 = vadd.f32 %v774, %v1084
        %v1086 = vpop.f32.mrb[0].mxu0
        %v1087 = vadd.f32 %v776, %v1086
        %v1088 = vpop.f32.mrb[0].mxu0
        %v1089 = vadd.f32 %v778, %v1088
        %v1090 = vpop.f32.mrb[0].mxu0
        %v1091 = vadd.f32 %v780, %v1090
        %1092 = vmatprep.mubr.bf16.mxu0 0
        %1093 = vmatmul.mubr.bf16.gmra.mrb[0].mxu0 %v440
        %v1094 = vpop.f32.mrb[0].mxu0
        %v1095 = vadd.f32 %v784, %v1094
        %v1096 = vpop.f32.mrb[0].mxu0
        %v1097 = vadd.f32 %v786, %v1096
        %v1098 = vpop.f32.mrb[0].mxu0
        %v1099 = vadd.f32 %v788, %v1098
        %v1100 = vpop.f32.mrb[0].mxu0
        %v1101 = vadd.f32 %v790, %v1100
        %1102 = vmatprep.mubr.bf16.mxu0 0
        %1103 = vmatmul.mubr.bf16.gmra.mrb[0].mxu0 %v441
        %v1104 = vpop.f32.mrb[0].mxu0
        %v1105 = vadd.f32 %v794, %v1104
        %v1106 = vpop.f32.mrb[0].mxu0
        %v1107 = vadd.f32 %v796, %v1106
        %v1108 = vpop.f32.mrb[0].mxu0
        %v1109 = vadd.f32 %v798, %v1108
        %v1110 = vpop.f32.mrb[0].mxu0
        %v1111 = vadd.f32 %v800, %v1110
        %1112 = vmatprep.mubr.bf16.mxu0 0
        %1113 = vmatmul.mubr.bf16.gmra.mrb[0].mxu0 %v442
        %v1114 = vpop.f32.mrb[0].mxu0
        %v1115 = vadd.f32 %v804, %v1114
        %v1116 = vpop.f32.mrb[0].mxu0
        %v1117 = vadd.f32 %v806, %v1116
        %v1118 = vpop.f32.mrb[0].mxu0
        %v1119 = vadd.f32 %v808, %v1118
        %v1120 = vpop.f32.mrb[0].mxu0
        %v1121 = vadd.f32 %v810, %v1120
        %1122 = vmatprep.mubr.bf16.mxu0 0
        %1123 = vmatmul.mubr.bf16.gmra.mrb[0].mxu0 %v443
        %v1124 = vpop.f32.mrb[0].mxu0
        %v1125 = vadd.f32 %v814, %v1124
        %v1126 = vpop.f32.mrb[0].mxu0
        %v1127 = vadd.f32 %v816, %v1126
        %v1128 = vpop.f32.mrb[0].mxu0
        %v1129 = vadd.f32 %v818, %v1128
        %v1130 = vpop.f32.mrb[0].mxu0
        %v1131 = vadd.f32 %v820, %v1130
        %1132 = vmatprep.mubr.bf16.mxu0 0
        %1133 = vmatmul.mubr.bf16.gmra.mrb[0].mxu0 %v444
        %v1134 = vpop.f32.mrb[0].mxu0
        %v1135 = vadd.f32 %v824, %v1134
        %v1136 = vpop.f32.mrb[0].mxu0
        %v1137 = vadd.f32 %v826, %v1136
        %v1138 = vpop.f32.mrb[0].mxu0
        %v1139 = vadd.f32 %v828, %v1138
        %v1140 = vpop.f32.mrb[0].mxu0
        %v1141 = vadd.f32 %v830, %v1140
        %1142 = vmatprep.mubr.bf16.mxu0 0
        %1143 = vmatmul.mubr.bf16.gmra.mrb[0].mxu0 %v445
        %v1144 = vpop.f32.mrb[0].mxu0
        %v1145 = vadd.f32 %v834, %v1144
        %v1146 = vpop.f32.mrb[0].mxu0
        %v1147 = vadd.f32 %v836, %v1146
        %v1148 = vpop.f32.mrb[0].mxu0
        %v1149 = vadd.f32 %v838, %v1148
        %v1150 = vpop.f32.mrb[0].mxu0
        %v1151 = vadd.f32 %v840, %v1150
        %1152 = vmatprep.mubr.bf16.mxu0 0
        %1153 = vmatmul.mubr.bf16.gmra.mrb[0].mxu0 %v446
        %v1154 = vpop.f32.mrb[0].mxu0
        %v1155 = vadd.f32 %v844, %v1154
        %v1156 = vpop.f32.mrb[0].mxu0
        %v1157 = vadd.f32 %v846, %v1156
        %v1158 = vpop.f32.mrb[0].mxu0
        %v1159 = vpop.f32.mrb[0].mxu0
        %1160 = vdwg.mxu0
        %v1161 = vld [vmem:[%s385 + $0x2] sm:$0xff]
        %v1162 = vld [vmem:[%s385 + $0xa] sm:$0xff]
        %v1163 = vld [vmem:[%s385 + $0x12] sm:$0xff]
        %v1164 = vld [vmem:[%s385 + $0x1a] sm:$0xff]
        %v1165 = vld [vmem:[%s385 + $0x22] sm:$0xff]
        %v1166 = vld [vmem:[%s385 + $0x2a] sm:$0xff]
        %v1167 = vld [vmem:[%s385 + $0x32] sm:$0xff]
        %v1168 = vld [vmem:[%s385 + $0x3a] sm:$0xff]
        %v1169 = vld [vmem:[%s385 + $0x42] sm:$0xff]
        %v1170 = vld [vmem:[%s385 + $0x4a] sm:$0xff]
        %v1171 = vld [vmem:[%s385 + $0x52] sm:$0xff]
        %v1172 = vld [vmem:[%s385 + $0x5a] sm:$0xff]
        %v1173 = vld [vmem:[%s385 + $0x62] sm:$0xff]
        %v1174 = vld [vmem:[%s385 + $0x6a] sm:$0xff]
        %v1175 = vld [vmem:[%s385 + $0x72] sm:$0xff]
        %v1176 = vld [vmem:[%s385 + $0x7a] sm:$0xff]
        %v1177 = vld [vmem:[%s385 + $0x82] sm:$0xff]
        %v1178 = vld [vmem:[%s385 + $0x8a] sm:$0xff]
        %v1179 = vld [vmem:[%s385 + $0x92] sm:$0xff]
        %v1180 = vld [vmem:[%s385 + $0x9a] sm:$0xff]
        %v1181 = vld [vmem:[%s385 + $0xa2] sm:$0xff]
        %v1182 = vld [vmem:[%s385 + $0xaa] sm:$0xff]
        %v1183 = vld [vmem:[%s385 + $0xb2] sm:$0xff]
        %v1184 = vld [vmem:[%s385 + $0xba] sm:$0xff]
        %v1185 = vld [vmem:[%s385 + $0xc2] sm:$0xff]
        %v1186 = vld [vmem:[%s385 + $0xca] sm:$0xff]
        %v1187 = vld [vmem:[%s385 + $0xd2] sm:$0xff]
        %v1188 = vld [vmem:[%s385 + $0xda] sm:$0xff]
        %v1189 = vld [vmem:[%s385 + $0xe2] sm:$0xff]
        %v1190 = vld [vmem:[%s385 + $0xea] sm:$0xff]
        %v1191 = vld [vmem:[%s385 + $0xf2] sm:$0xff]
        %v1192 = vld [vmem:[%s385 + $0xfa] sm:$0xff]
        %v1193 = vld [vmem:[%s385 + $0x102] sm:$0xff]
        %v1194 = vld [vmem:[%s385 + $0x10a] sm:$0xff]
        %v1195 = vld [vmem:[%s385 + $0x112] sm:$0xff]
        %v1196 = vld [vmem:[%s385 + $0x11a] sm:$0xff]
        %v1197 = vld [vmem:[%s385 + $0x122] sm:$0xff]
        %v1198 = vld [vmem:[%s385 + $0x12a] sm:$0xff]
        %v1199 = vld [vmem:[%s385 + $0x132] sm:$0xff]
        %v1200 = vpack.c.bf16 %v1162, %v1161
        %v1201 = vpack.c.bf16 %v1164, %v1163
        %v1202 = vpack.c.bf16 %v1166, %v1165
        %v1203 = vpack.c.bf16 %v1168, %v1167
        %v1204 = vpack.c.bf16 %v1170, %v1169
        %v1205 = vpack.c.bf16 %v1172, %v1171
        %v1206 = vpack.c.bf16 %v1174, %v1173
        %v1207 = vpack.c.bf16 %v1176, %v1175
        %v1208 = vpack.c.bf16 %v1178, %v1177
        %v1209 = vpack.c.bf16 %v1180, %v1179
        %v1210 = vpack.c.bf16 %v1182, %v1181
        %v1211 = vpack.c.bf16 %v1184, %v1183
        %v1212 = vpack.c.bf16 %v1186, %v1185
        %v1213 = vpack.c.bf16 %v1188, %v1187
        %v1214 = vpack.c.bf16 %v1190, %v1189
        %v1215 = vpack.c.bf16 %v1192, %v1191
        %v1216 = vpack.c.bf16 %v1194, %v1193
        %v1217 = vpack.c.bf16 %v1196, %v1195
        %v1218 = vpack.c.bf16 %v1198, %v1197
        %v1219 = vpack.c.bf16 %v1199, %v1199
        %s1220 = scalar_lea.vmem %s1, 256
        %v1221 = vld [vmem:[%s1220] sm:$0xff]
        %v1222 = vld [vmem:[%s1220 + $0x8] sm:$0xff]
        %v1223 = vld [vmem:[%s1220 + $0x10] sm:$0xff]
        %v1224 = vld [vmem:[%s1220 + $0x18] sm:$0xff]
        %v1225 = vld [vmem:[%s1220 + $0x20] sm:$0xff]
        %v1226 = vld [vmem:[%s1220 + $0x28] sm:$0xff]
        %v1227 = vld [vmem:[%s1220 + $0x30] sm:$0xff]
        %v1228 = vld [vmem:[%s1220 + $0x38] sm:$0xff]
        %v1229 = vld [vmem:[%s1220 + $0x40] sm:$0xff]
        %v1230 = vld [vmem:[%s1220 + $0x48] sm:$0xff]
        %v1231 = vld [vmem:[%s1220 + $0x50] sm:$0xff]
        %v1232 = vld [vmem:[%s1220 + $0x58] sm:$0xff]
        %v1233 = vld [vmem:[%s1220 + $0x60] sm:$0xff]
        %v1234 = vld [vmem:[%s1220 + $0x68] sm:$0xff]
        %v1235 = vld [vmem:[%s1220 + $0x70] sm:$0xff]
        %v1236 = vld [vmem:[%s1220 + $0x78] sm:$0xff]
        %v1253 = vunpack.c.l.b16 %v1221
        %v1254 = vunpack.c.h.b16 %v1221
        %v1255 = vunpack.c.l.b16 %v1222
        %v1256 = vunpack.c.h.b16 %v1222
        %v1257 = vunpack.c.l.b16 %v1223
        %v1258 = vunpack.c.h.b16 %v1223
        %v1259 = vunpack.c.l.b16 %v1224
        %v1260 = vunpack.c.h.b16 %v1224
        %v1261 = vunpack.c.l.b16 %v1225
        %v1262 = vunpack.c.h.b16 %v1225
        %v1263 = vunpack.c.l.b16 %v1226
        %v1264 = vunpack.c.h.b16 %v1226
        %v1265 = vunpack.c.l.b16 %v1227
        %v1266 = vunpack.c.h.b16 %v1227
        %v1267 = vunpack.c.l.b16 %v1228
        %v1268 = vunpack.c.h.b16 %v1228
        %v1269 = vunpack.c.l.b16 %v1229
        %v1270 = vunpack.c.h.b16 %v1229
        %v1271 = vunpack.c.l.b16 %v1230
        %v1272 = vunpack.c.h.b16 %v1230
        %v1273 = vunpack.c.l.b16 %v1231
        %v1274 = vunpack.c.h.b16 %v1231
        %v1275 = vunpack.c.l.b16 %v1232
        %v1276 = vunpack.c.h.b16 %v1232
        %v1277 = vunpack.c.l.b16 %v1233
        %v1278 = vunpack.c.h.b16 %v1233
        %v1279 = vunpack.c.l.b16 %v1234
        %v1280 = vunpack.c.h.b16 %v1234
        %v1281 = vunpack.c.l.b16 %v1235
        %v1282 = vunpack.c.h.b16 %v1235
        %v1283 = vunpack.c.l.b16 %v1236
        %v1284 = vunpack.c.h.b16 %v1236
        %v1285 = vpack.c.b16 %v1255, %v1253
        %v1286 = vpack.c.b16 %v1256, %v1254
        %v1287 = vpack.c.b16 %v1259, %v1257
        %v1288 = vpack.c.b16 %v1260, %v1258
        %v1289 = vpack.c.b16 %v1263, %v1261
        %v1290 = vpack.c.b16 %v1264, %v1262
        %v1291 = vpack.c.b16 %v1267, %v1265
        %v1292 = vpack.c.b16 %v1268, %v1266
        %v1293 = vpack.c.b16 %v1271, %v1269
        %v1294 = vpack.c.b16 %v1272, %v1270
        %v1295 = vpack.c.b16 %v1275, %v1273
        %v1296 = vpack.c.b16 %v1276, %v1274
        %v1297 = vpack.c.b16 %v1279, %v1277
        %v1298 = vpack.c.b16 %v1280, %v1278
        %v1299 = vpack.c.b16 %v1283, %v1281
        %v1300 = vpack.c.b16 %v1284, %v1282
        %1317 = vmatprep.subr.bf16.mxu0 %v1286
        %1318 = vmatpush1.bf16.msra.mxu0 %v1285
        %1319 = vmatprep.subr.bf16.mxu0 %v1288
        %1320 = vmatpush1.bf16.msra.mxu0 %v1287
        %1321 = vmatprep.subr.bf16.mxu0 %v1290
        %1322 = vmatpush1.bf16.msra.mxu0 %v1289
        %1323 = vmatprep.subr.bf16.mxu0 %v1292
        %1324 = vmatpush1.bf16.msra.mxu0 %v1291
        %1325 = vmatprep.subr.bf16.mxu0 %v1294
        %1326 = vmatpush1.bf16.msra.mxu0 %v1293
        %1327 = vmatprep.subr.bf16.mxu0 %v1296
        %1328 = vmatpush1.bf16.msra.mxu0 %v1295
        %1329 = vmatprep.subr.bf16.mxu0 %v1298
        %1330 = vmatpush1.bf16.msra.mxu0 %v1297
        %1331 = vmatprep.subr.bf16.mxu0 %v1300
        %1332 = vmatpush1.bf16.msra.mxu0 %v1299
        %1333 = vmatprep.subr.bf16.mxu0 0
        %1334 = vmatpush1.bf16.msra.mxu0 0
        %1335 = vmatprep.subr.bf16.mxu0 0
        %1336 = vmatpush1.bf16.msra.mxu0 0
        %1337 = vmatprep.subr.bf16.mxu0 0
        %1338 = vmatpush1.bf16.msra.mxu0 0
        %1339 = vmatprep.subr.bf16.mxu0 0
        %1340 = vmatpush1.bf16.msra.mxu0 0
        %1341 = vmatprep.subr.bf16.mxu0 0
        %1342 = vmatpush1.bf16.msra.mxu0 0
        %1343 = vmatprep.subr.bf16.mxu0 0
        %1344 = vmatpush1.bf16.msra.mxu0 0
        %1345 = vmatprep.subr.bf16.mxu0 0
        %1346 = vmatpush1.bf16.msra.mxu0 0
        %1347 = vmatprep.subr.bf16.mxu0 0
        %1348 = vmatpush1.bf16.msra.mxu0 0
        %1349 = vmatprep.mubr.bf16.mxu0 0
        %1350 = vmatmul.mubr.bf16.gmra.mrb[0].mxu0 %v1200
        %v1351 = vpop.f32.mrb[0].mxu0
        %v1352 = vadd.f32 0.0, %v1351
        %v1353 = vpop.f32.mrb[0].mxu0
        %v1354 = vadd.f32 0.0, %v1353
        %v1355 = vpop.f32.mrb[0].mxu0
        %v1356 = vadd.f32 0.0, %v1355
        %v1357 = vpop.f32.mrb[0].mxu0
        %v1358 = vadd.f32 0.0, %v1357
        %1359 = vmatprep.mubr.bf16.mxu0 0
        %1360 = vmatmul.mubr.bf16.gmra.mrb[0].mxu0 %v1201
        %v1361 = vpop.f32.mrb[0].mxu0
        %v1362 = vadd.f32 0.0, %v1361
        %v1363 = vpop.f32.mrb[0].mxu0
        %v1364 = vadd.f32 0.0, %v1363
        %v1365 = vpop.f32.mrb[0].mxu0
        %v1366 = vadd.f32 0.0, %v1365
        %v1367 = vpop.f32.mrb[0].mxu0
        %v1368 = vadd.f32 0.0, %v1367
        %1369 = vmatprep.mubr.bf16.mxu0 0
        %1370 = vmatmul.mubr.bf16.gmra.mrb[0].mxu0 %v1202
        %v1371 = vpop.f32.mrb[0].mxu0
        %v1372 = vadd.f32 0.0, %v1371
        %v1373 = vpop.f32.mrb[0].mxu0
        %v1374 = vadd.f32 0.0, %v1373
        %v1375 = vpop.f32.mrb[0].mxu0
        %v1376 = vadd.f32 0.0, %v1375
        %v1377 = vpop.f32.mrb[0].mxu0
        %v1378 = vadd.f32 0.0, %v1377
        %1379 = vmatprep.mubr.bf16.mxu0 0
        %1380 = vmatmul.mubr.bf16.gmra.mrb[0].mxu0 %v1203
        %v1381 = vpop.f32.mrb[0].mxu0
        %v1382 = vadd.f32 0.0, %v1381
        %v1383 = vpop.f32.mrb[0].mxu0
        %v1384 = vadd.f32 0.0, %v1383
        %v1385 = vpop.f32.mrb[0].mxu0
        %v1386 = vadd.f32 0.0, %v1385
        %v1387 = vpop.f32.mrb[0].mxu0
        %v1388 = vadd.f32 0.0, %v1387
        %1389 = vmatprep.mubr.bf16.mxu0 0
        %1390 = vmatmul.mubr.bf16.gmra.mrb[0].mxu0 %v1204
        %v1391 = vpop.f32.mrb[0].mxu0
        %v1392 = vadd.f32 0.0, %v1391
        %v1393 = vpop.f32.mrb[0].mxu0
        %v1394 = vadd.f32 0.0, %v1393
        %v1395 = vpop.f32.mrb[0].mxu0
        %v1396 = vadd.f32 0.0, %v1395
        %v1397 = vpop.f32.mrb[0].mxu0
        %v1398 = vadd.f32 0.0, %v1397
        %1399 = vmatprep.mubr.bf16.mxu0 0
        %1400 = vmatmul.mubr.bf16.gmra.mrb[0].mxu0 %v1205
        %v1401 = vpop.f32.mrb[0].mxu0
        %v1402 = vadd.f32 0.0, %v1401
        %v1403 = vpop.f32.mrb[0].mxu0
        %v1404 = vadd.f32 0.0, %v1403
        %v1405 = vpop.f32.mrb[0].mxu0
        %v1406 = vadd.f32 0.0, %v1405
        %v1407 = vpop.f32.mrb[0].mxu0
        %v1408 = vadd.f32 0.0, %v1407
        %1409 = vmatprep.mubr.bf16.mxu0 0
        %1410 = vmatmul.mubr.bf16.gmra.mrb[0].mxu0 %v1206
        %v1411 = vpop.f32.mrb[0].mxu0
        %v1412 = vadd.f32 0.0, %v1411
        %v1413 = vpop.f32.mrb[0].mxu0
        %v1414 = vadd.f32 0.0, %v1413
        %v1415 = vpop.f32.mrb[0].mxu0
        %v1416 = vadd.f32 0.0, %v1415
        %v1417 = vpop.f32.mrb[0].mxu0
        %v1418 = vadd.f32 0.0, %v1417
        %1419 = vmatprep.mubr.bf16.mxu0 0
        %1420 = vmatmul.mubr.bf16.gmra.mrb[0].mxu0 %v1207
        %v1421 = vpop.f32.mrb[0].mxu0
        %v1422 = vadd.f32 0.0, %v1421
        %v1423 = vpop.f32.mrb[0].mxu0
        %v1424 = vadd.f32 0.0, %v1423
        %v1425 = vpop.f32.mrb[0].mxu0
        %v1426 = vadd.f32 0.0, %v1425
        %v1427 = vpop.f32.mrb[0].mxu0
        %v1428 = vadd.f32 0.0, %v1427
        %1429 = vmatprep.mubr.bf16.mxu0 0
        %1430 = vmatmul.mubr.bf16.gmra.mrb[0].mxu0 %v1208
        %v1431 = vpop.f32.mrb[0].mxu0
        %v1432 = vadd.f32 0.0, %v1431
        %v1433 = vpop.f32.mrb[0].mxu0
        %v1434 = vadd.f32 0.0, %v1433
        %v1435 = vpop.f32.mrb[0].mxu0
        %v1436 = vadd.f32 0.0, %v1435
        %v1437 = vpop.f32.mrb[0].mxu0
        %v1438 = vadd.f32 0.0, %v1437
        %1439 = vmatprep.mubr.bf16.mxu0 0
        %1440 = vmatmul.mubr.bf16.gmra.mrb[0].mxu0 %v1209
        %v1441 = vpop.f32.mrb[0].mxu0
        %v1442 = vadd.f32 0.0, %v1441
        %v1443 = vpop.f32.mrb[0].mxu0
        %v1444 = vadd.f32 0.0, %v1443
        %v1445 = vpop.f32.mrb[0].mxu0
        %v1446 = vadd.f32 0.0, %v1445
        %v1447 = vpop.f32.mrb[0].mxu0
        %v1448 = vadd.f32 0.0, %v1447
        %1449 = vmatprep.mubr.bf16.mxu0 0
        %1450 = vmatmul.mubr.bf16.gmra.mrb[0].mxu0 %v1210
        %v1451 = vpop.f32.mrb[0].mxu0
        %v1452 = vadd.f32 0.0, %v1451
        %v1453 = vpop.f32.mrb[0].mxu0
        %v1454 = vadd.f32 0.0, %v1453
        %v1455 = vpop.f32.mrb[0].mxu0
        %v1456 = vadd.f32 0.0, %v1455
        %v1457 = vpop.f32.mrb[0].mxu0
        %v1458 = vadd.f32 0.0, %v1457
        %1459 = vmatprep.mubr.bf16.mxu0 0
        %1460 = vmatmul.mubr.bf16.gmra.mrb[0].mxu0 %v1211
        %v1461 = vpop.f32.mrb[0].mxu0
        %v1462 = vadd.f32 0.0, %v1461
        %v1463 = vpop.f32.mrb[0].mxu0
        %v1464 = vadd.f32 0.0, %v1463
        %v1465 = vpop.f32.mrb[0].mxu0
        %v1466 = vadd.f32 0.0, %v1465
        %v1467 = vpop.f32.mrb[0].mxu0
        %v1468 = vadd.f32 0.0, %v1467
        %1469 = vmatprep.mubr.bf16.mxu0 0
        %1470 = vmatmul.mubr.bf16.gmra.mrb[0].mxu0 %v1212
        %v1471 = vpop.f32.mrb[0].mxu0
        %v1472 = vadd.f32 0.0, %v1471
        %v1473 = vpop.f32.mrb[0].mxu0
        %v1474 = vadd.f32 0.0, %v1473
        %v1475 = vpop.f32.mrb[0].mxu0
        %v1476 = vadd.f32 0.0, %v1475
        %v1477 = vpop.f32.mrb[0].mxu0
        %v1478 = vadd.f32 0.0, %v1477
        %1479 = vmatprep.mubr.bf16.mxu0 0
        %1480 = vmatmul.mubr.bf16.gmra.mrb[0].mxu0 %v1213
        %v1481 = vpop.f32.mrb[0].mxu0
        %v1482 = vadd.f32 0.0, %v1481
        %v1483 = vpop.f32.mrb[0].mxu0
        %v1484 = vadd.f32 0.0, %v1483
        %v1485 = vpop.f32.mrb[0].mxu0
        %v1486 = vadd.f32 0.0, %v1485
        %v1487 = vpop.f32.mrb[0].mxu0
        %v1488 = vadd.f32 0.0, %v1487
        %1489 = vmatprep.mubr.bf16.mxu0 0
        %1490 = vmatmul.mubr.bf16.gmra.mrb[0].mxu0 %v1214
        %v1491 = vpop.f32.mrb[0].mxu0
        %v1492 = vadd.f32 0.0, %v1491
        %v1493 = vpop.f32.mrb[0].mxu0
        %v1494 = vadd.f32 0.0, %v1493
        %v1495 = vpop.f32.mrb[0].mxu0
        %v1496 = vadd.f32 0.0, %v1495
        %v1497 = vpop.f32.mrb[0].mxu0
        %v1498 = vadd.f32 0.0, %v1497
        %1499 = vmatprep.mubr.bf16.mxu0 0
        %1500 = vmatmul.mubr.bf16.gmra.mrb[0].mxu0 %v1215
        %v1501 = vpop.f32.mrb[0].mxu0
        %v1502 = vadd.f32 0.0, %v1501
        %v1503 = vpop.f32.mrb[0].mxu0
        %v1504 = vadd.f32 0.0, %v1503
        %v1505 = vpop.f32.mrb[0].mxu0
        %v1506 = vadd.f32 0.0, %v1505
        %v1507 = vpop.f32.mrb[0].mxu0
        %v1508 = vadd.f32 0.0, %v1507
        %1509 = vmatprep.mubr.bf16.mxu0 0
        %1510 = vmatmul.mubr.bf16.gmra.mrb[0].mxu0 %v1216
        %v1511 = vpop.f32.mrb[0].mxu0
        %v1512 = vadd.f32 0.0, %v1511
        %v1513 = vpop.f32.mrb[0].mxu0
        %v1514 = vadd.f32 0.0, %v1513
        %v1515 = vpop.f32.mrb[0].mxu0
        %v1516 = vadd.f32 0.0, %v1515
        %v1517 = vpop.f32.mrb[0].mxu0
        %v1518 = vadd.f32 0.0, %v1517
        %1519 = vmatprep.mubr.bf16.mxu0 0
        %1520 = vmatmul.mubr.bf16.gmra.mrb[0].mxu0 %v1217
        %v1521 = vpop.f32.mrb[0].mxu0
        %v1522 = vadd.f32 0.0, %v1521
        %v1523 = vpop.f32.mrb[0].mxu0
        %v1524 = vadd.f32 0.0, %v1523
        %v1525 = vpop.f32.mrb[0].mxu0
        %v1526 = vadd.f32 0.0, %v1525
        %v1527 = vpop.f32.mrb[0].mxu0
        %v1528 = vadd.f32 0.0, %v1527
        %1529 = vmatprep.mubr.bf16.mxu0 0
        %1530 = vmatmul.mubr.bf16.gmra.mrb[0].mxu0 %v1218
        %v1531 = vpop.f32.mrb[0].mxu0
        %v1532 = vadd.f32 0.0, %v1531
        %v1533 = vpop.f32.mrb[0].mxu0
        %v1534 = vadd.f32 0.0, %v1533
        %v1535 = vpop.f32.mrb[0].mxu0
        %v1536 = vadd.f32 0.0, %v1535
        %v1537 = vpop.f32.mrb[0].mxu0
        %v1538 = vadd.f32 0.0, %v1537
        %1539 = vmatprep.mubr.bf16.mxu0 0
        %1540 = vmatmul.mubr.bf16.gmra.mrb[0].mxu0 %v1219
        %v1541 = vpop.f32.mrb[0].mxu0
        %v1542 = vadd.f32 0.0, %v1541
        %v1543 = vpop.f32.mrb[0].mxu0
        %v1544 = vadd.f32 0.0, %v1543
        %v1545 = vpop.f32.mrb[0].mxu0
        %v1546 = vpop.f32.mrb[0].mxu0
        %1547 = vdwg.mxu0
        %v1548 = vadd.f32 %v965, %v1352
        %v1549 = vadd.f32 %v967, %v1354
        %v1550 = vadd.f32 %v969, %v1356
        %v1551 = vadd.f32 %v971, %v1358
        %v1552 = vadd.f32 %v975, %v1362
        %v1553 = vadd.f32 %v977, %v1364
        %v1554 = vadd.f32 %v979, %v1366
        %v1555 = vadd.f32 %v981, %v1368
        %v1556 = vadd.f32 %v985, %v1372
        %v1557 = vadd.f32 %v987, %v1374
        %v1558 = vadd.f32 %v989, %v1376
        %v1559 = vadd.f32 %v991, %v1378
        %v1560 = vadd.f32 %v995, %v1382
        %v1561 = vadd.f32 %v997, %v1384
        %v1562 = vadd.f32 %v999, %v1386
        %v1563 = vadd.f32 %v1001, %v1388
        %v1564 = vadd.f32 %v1005, %v1392
        %v1565 = vadd.f32 %v1007, %v1394
        %v1566 = vadd.f32 %v1009, %v1396
        %v1567 = vadd.f32 %v1011, %v1398
        %v1568 = vadd.f32 %v1015, %v1402
        %v1569 = vadd.f32 %v1017, %v1404
        %v1570 = vadd.f32 %v1019, %v1406
        %v1571 = vadd.f32 %v1021, %v1408
        %v1572 = vadd.f32 %v1025, %v1412
        %v1573 = vadd.f32 %v1027, %v1414
        %v1574 = vadd.f32 %v1029, %v1416
        %v1575 = vadd.f32 %v1031, %v1418
        %v1576 = vadd.f32 %v1035, %v1422
        %v1577 = vadd.f32 %v1037, %v1424
        %v1578 = vadd.f32 %v1039, %v1426
        %v1579 = vadd.f32 %v1041, %v1428
        %v1580 = vadd.f32 %v1045, %v1432
        %v1581 = vadd.f32 %v1047, %v1434
        %v1582 = vadd.f32 %v1049, %v1436
        %v1583 = vadd.f32 %v1051, %v1438
        %v1584 = vadd.f32 %v1055, %v1442
        %v1585 = vadd.f32 %v1057, %v1444
        %v1586 = vadd.f32 %v1059, %v1446
        %v1587 = vadd.f32 %v1061, %v1448
        %v1588 = vadd.f32 %v1065, %v1452
        %v1589 = vadd.f32 %v1067, %v1454
        %v1590 = vadd.f32 %v1069, %v1456
        %v1591 = vadd.f32 %v1071, %v1458
        %v1592 = vadd.f32 %v1075, %v1462
        %v1593 = vadd.f32 %v1077, %v1464
        %v1594 = vadd.f32 %v1079, %v1466
        %v1595 = vadd.f32 %v1081, %v1468
        %v1596 = vadd.f32 %v1085, %v1472
        %v1597 = vadd.f32 %v1087, %v1474
        %v1598 = vadd.f32 %v1089, %v1476
        %v1599 = vadd.f32 %v1091, %v1478
        %v1600 = vadd.f32 %v1095, %v1482
        %v1601 = vadd.f32 %v1097, %v1484
        %v1602 = vadd.f32 %v1099, %v1486
        %v1603 = vadd.f32 %v1101, %v1488
        %v1604 = vadd.f32 %v1105, %v1492
        %v1605 = vadd.f32 %v1107, %v1494
        %v1606 = vadd.f32 %v1109, %v1496
        %v1607 = vadd.f32 %v1111, %v1498
        %v1608 = vadd.f32 %v1115, %v1502
        %v1609 = vadd.f32 %v1117, %v1504
        %v1610 = vadd.f32 %v1119, %v1506
        %v1611 = vadd.f32 %v1121, %v1508
        %v1612 = vadd.f32 %v1125, %v1512
        %v1613 = vadd.f32 %v1127, %v1514
        %v1614 = vadd.f32 %v1129, %v1516
        %v1615 = vadd.f32 %v1131, %v1518
        %v1616 = vadd.f32 %v1135, %v1522
        %v1617 = vadd.f32 %v1137, %v1524
        %v1618 = vadd.f32 %v1139, %v1526
        %v1619 = vadd.f32 %v1141, %v1528
        %v1620 = vadd.f32 %v1145, %v1532
        %v1621 = vadd.f32 %v1147, %v1534
        %v1622 = vadd.f32 %v1149, %v1536
        %v1623 = vadd.f32 %v1151, %v1538
        %v1624 = vadd.f32 %v1155, %v1542
        %v1625 = vadd.f32 %v1157, %v1544
        %v1626 = vld [vmem:[%s385 + $0x3] sm:$0xff]
        %v1627 = vld [vmem:[%s385 + $0xb] sm:$0xff]
        %v1628 = vld [vmem:[%s385 + $0x13] sm:$0xff]
        %v1629 = vld [vmem:[%s385 + $0x1b] sm:$0xff]
        %v1630 = vld [vmem:[%s385 + $0x23] sm:$0xff]
        %v1631 = vld [vmem:[%s385 + $0x2b] sm:$0xff]
        %v1632 = vld [vmem:[%s385 + $0x33] sm:$0xff]
        %v1633 = vld [vmem:[%s385 + $0x3b] sm:$0xff]
        %v1634 = vld [vmem:[%s385 + $0x43] sm:$0xff]
        %v1635 = vld [vmem:[%s385 + $0x4b] sm:$0xff]
        %v1636 = vld [vmem:[%s385 + $0x53] sm:$0xff]
        %v1637 = vld [vmem:[%s385 + $0x5b] sm:$0xff]
        %v1638 = vld [vmem:[%s385 + $0x63] sm:$0xff]
        %v1639 = vld [vmem:[%s385 + $0x6b] sm:$0xff]
        %v1640 = vld [vmem:[%s385 + $0x73] sm:$0xff]
        %v1641 = vld [vmem:[%s385 + $0x7b] sm:$0xff]
        %v1642 = vld [vmem:[%s385 + $0x83] sm:$0xff]
        %v1643 = vld [vmem:[%s385 + $0x8b] sm:$0xff]
        %v1644 = vld [vmem:[%s385 + $0x93] sm:$0xff]
        %v1645 = vld [vmem:[%s385 + $0x9b] sm:$0xff]
        %v1646 = vld [vmem:[%s385 + $0xa3] sm:$0xff]
        %v1647 = vld [vmem:[%s385 + $0xab] sm:$0xff]
        %v1648 = vld [vmem:[%s385 + $0xb3] sm:$0xff]
        %v1649 = vld [vmem:[%s385 + $0xbb] sm:$0xff]
        %v1650 = vld [vmem:[%s385 + $0xc3] sm:$0xff]
        %v1651 = vld [vmem:[%s385 + $0xcb] sm:$0xff]
        %v1652 = vld [vmem:[%s385 + $0xd3] sm:$0xff]
        %v1653 = vld [vmem:[%s385 + $0xdb] sm:$0xff]
        %v1654 = vld [vmem:[%s385 + $0xe3] sm:$0xff]
        %v1655 = vld [vmem:[%s385 + $0xeb] sm:$0xff]
        %v1656 = vld [vmem:[%s385 + $0xf3] sm:$0xff]
        %v1657 = vld [vmem:[%s385 + $0xfb] sm:$0xff]
        %v1658 = vld [vmem:[%s385 + $0x103] sm:$0xff]
        %v1659 = vld [vmem:[%s385 + $0x10b] sm:$0xff]
        %v1660 = vld [vmem:[%s385 + $0x113] sm:$0xff]
        %v1661 = vld [vmem:[%s385 + $0x11b] sm:$0xff]
        %v1662 = vld [vmem:[%s385 + $0x123] sm:$0xff]
        %v1663 = vld [vmem:[%s385 + $0x12b] sm:$0xff]
        %v1664 = vld [vmem:[%s385 + $0x133] sm:$0xff]
        %v1665 = vpack.c.bf16 %v1627, %v1626
        %v1666 = vpack.c.bf16 %v1629, %v1628
        %v1667 = vpack.c.bf16 %v1631, %v1630
        %v1668 = vpack.c.bf16 %v1633, %v1632
        %v1669 = vpack.c.bf16 %v1635, %v1634
        %v1670 = vpack.c.bf16 %v1637, %v1636
        %v1671 = vpack.c.bf16 %v1639, %v1638
        %v1672 = vpack.c.bf16 %v1641, %v1640
        %v1673 = vpack.c.bf16 %v1643, %v1642
        %v1674 = vpack.c.bf16 %v1645, %v1644
        %v1675 = vpack.c.bf16 %v1647, %v1646
        %v1676 = vpack.c.bf16 %v1649, %v1648
        %v1677 = vpack.c.bf16 %v1651, %v1650
        %v1678 = vpack.c.bf16 %v1653, %v1652
        %v1679 = vpack.c.bf16 %v1655, %v1654
        %v1680 = vpack.c.bf16 %v1657, %v1656
        %v1681 = vpack.c.bf16 %v1659, %v1658
        %v1682 = vpack.c.bf16 %v1661, %v1660
        %v1683 = vpack.c.bf16 %v1663, %v1662
        %v1684 = vpack.c.bf16 %v1664, %v1664
        %s1685 = scalar_lea.vmem %s1, 384
        %v1686 = vld [vmem:[%s1685] sm:$0xff]
        %v1687 = vld [vmem:[%s1685 + $0x8] sm:$0xff]
        %v1688 = vld [vmem:[%s1685 + $0x10] sm:$0xff]
        %v1689 = vld [vmem:[%s1685 + $0x18] sm:$0xff]
        %v1690 = vld [vmem:[%s1685 + $0x20] sm:$0xff]
        %v1691 = vld [vmem:[%s1685 + $0x28] sm:$0xff]
        %v1692 = vld [vmem:[%s1685 + $0x30] sm:$0xff]
        %v1693 = vld [vmem:[%s1685 + $0x38] sm:$0xff]
        %v1694 = vld [vmem:[%s1685 + $0x40] sm:$0xff]
        %v1695 = vld [vmem:[%s1685 + $0x48] sm:$0xff]
        %v1696 = vld [vmem:[%s1685 + $0x50] sm:$0xff]
        %v1697 = vld [vmem:[%s1685 + $0x58] sm:$0xff]
        %v1698 = vld [vmem:[%s1685 + $0x60] sm:$0xff]
        %v1699 = vld [vmem:[%s1685 + $0x68] sm:$0xff]
        %v1700 = vld [vmem:[%s1685 + $0x70] sm:$0xff]
        %v1701 = vld [vmem:[%s1685 + $0x78] sm:$0xff]
        %v1718 = vunpack.c.l.b16 %v1686
        %v1719 = vunpack.c.h.b16 %v1686
        %v1720 = vunpack.c.l.b16 %v1687
        %v1721 = vunpack.c.h.b16 %v1687
        %v1722 = vunpack.c.l.b16 %v1688
        %v1723 = vunpack.c.h.b16 %v1688
        %v1724 = vunpack.c.l.b16 %v1689
        %v1725 = vunpack.c.h.b16 %v1689
        %v1726 = vunpack.c.l.b16 %v1690
        %v1727 = vunpack.c.h.b16 %v1690
        %v1728 = vunpack.c.l.b16 %v1691
        %v1729 = vunpack.c.h.b16 %v1691
        %v1730 = vunpack.c.l.b16 %v1692
        %v1731 = vunpack.c.h.b16 %v1692
        %v1732 = vunpack.c.l.b16 %v1693
        %v1733 = vunpack.c.h.b16 %v1693
        %v1734 = vunpack.c.l.b16 %v1694
        %v1735 = vunpack.c.h.b16 %v1694
        %v1736 = vunpack.c.l.b16 %v1695
        %v1737 = vunpack.c.h.b16 %v1695
        %v1738 = vunpack.c.l.b16 %v1696
        %v1739 = vunpack.c.h.b16 %v1696
        %v1740 = vunpack.c.l.b16 %v1697
        %v1741 = vunpack.c.h.b16 %v1697
        %v1742 = vunpack.c.l.b16 %v1698
        %v1743 = vunpack.c.h.b16 %v1698
        %v1744 = vunpack.c.l.b16 %v1699
        %v1745 = vunpack.c.h.b16 %v1699
        %v1746 = vunpack.c.l.b16 %v1700
        %v1747 = vunpack.c.h.b16 %v1700
        %v1748 = vunpack.c.l.b16 %v1701
        %v1749 = vunpack.c.h.b16 %v1701
        %v1750 = vpack.c.b16 %v1720, %v1718
        %v1751 = vpack.c.b16 %v1721, %v1719
        %v1752 = vpack.c.b16 %v1724, %v1722
        %v1753 = vpack.c.b16 %v1725, %v1723
        %v1754 = vpack.c.b16 %v1728, %v1726
        %v1755 = vpack.c.b16 %v1729, %v1727
        %v1756 = vpack.c.b16 %v1732, %v1730
        %v1757 = vpack.c.b16 %v1733, %v1731
        %v1758 = vpack.c.b16 %v1736, %v1734
        %v1759 = vpack.c.b16 %v1737, %v1735
        %v1760 = vpack.c.b16 %v1740, %v1738
        %v1761 = vpack.c.b16 %v1741, %v1739
        %v1762 = vpack.c.b16 %v1744, %v1742
        %v1763 = vpack.c.b16 %v1745, %v1743
        %v1764 = vpack.c.b16 %v1748, %v1746
        %v1765 = vpack.c.b16 %v1749, %v1747
        %1782 = vmatprep.subr.bf16.mxu0 %v1751
        %1783 = vmatpush1.bf16.msra.mxu0 %v1750
        %1784 = vmatprep.subr.bf16.mxu0 %v1753
        %1785 = vmatpush1.bf16.msra.mxu0 %v1752
        %1786 = vmatprep.subr.bf16.mxu0 %v1755
        %1787 = vmatpush1.bf16.msra.mxu0 %v1754
        %1788 = vmatprep.subr.bf16.mxu0 %v1757
        %1789 = vmatpush1.bf16.msra.mxu0 %v1756
        %1790 = vmatprep.subr.bf16.mxu0 %v1759
        %1791 = vmatpush1.bf16.msra.mxu0 %v1758
        %1792 = vmatprep.subr.bf16.mxu0 %v1761
        %1793 = vmatpush1.bf16.msra.mxu0 %v1760
        %1794 = vmatprep.subr.bf16.mxu0 %v1763
        %1795 = vmatpush1.bf16.msra.mxu0 %v1762
        %1796 = vmatprep.subr.bf16.mxu0 %v1765
        %1797 = vmatpush1.bf16.msra.mxu0 %v1764
        %1798 = vmatprep.subr.bf16.mxu0 0
        %1799 = vmatpush1.bf16.msra.mxu0 0
        %1800 = vmatprep.subr.bf16.mxu0 0
        %1801 = vmatpush1.bf16.msra.mxu0 0
        %1802 = vmatprep.subr.bf16.mxu0 0
        %1803 = vmatpush1.bf16.msra.mxu0 0
        %1804 = vmatprep.subr.bf16.mxu0 0
        %1805 = vmatpush1.bf16.msra.mxu0 0
        %1806 = vmatprep.subr.bf16.mxu0 0
        %1807 = vmatpush1.bf16.msra.mxu0 0
        %1808 = vmatprep.subr.bf16.mxu0 0
        %1809 = vmatpush1.bf16.msra.mxu0 0
        %1810 = vmatprep.subr.bf16.mxu0 0
        %1811 = vmatpush1.bf16.msra.mxu0 0
        %1812 = vmatprep.subr.bf16.mxu0 0
        %1813 = vmatpush1.bf16.msra.mxu0 0
        %1814 = vmatprep.mubr.bf16.mxu0 0
        %1815 = vmatmul.mubr.bf16.gmra.mrb[0].mxu0 %v1665
        %v1816 = vpop.f32.mrb[0].mxu0
        %v1817 = vadd.f32 0.0, %v1816
        %v1818 = vpop.f32.mrb[0].mxu0
        %v1819 = vadd.f32 0.0, %v1818
        %v1820 = vpop.f32.mrb[0].mxu0
        %v1821 = vadd.f32 0.0, %v1820
        %v1822 = vpop.f32.mrb[0].mxu0
        %v1823 = vadd.f32 0.0, %v1822
        %1824 = vmatprep.mubr.bf16.mxu0 0
        %1825 = vmatmul.mubr.bf16.gmra.mrb[0].mxu0 %v1666
        %v1826 = vpop.f32.mrb[0].mxu0
        %v1827 = vadd.f32 0.0, %v1826
        %v1828 = vpop.f32.mrb[0].mxu0
        %v1829 = vadd.f32 0.0, %v1828
        %v1830 = vpop.f32.mrb[0].mxu0
        %v1831 = vadd.f32 0.0, %v1830
        %v1832 = vpop.f32.mrb[0].mxu0
        %v1833 = vadd.f32 0.0, %v1832
        %1834 = vmatprep.mubr.bf16.mxu0 0
        %1835 = vmatmul.mubr.bf16.gmra.mrb[0].mxu0 %v1667
        %v1836 = vpop.f32.mrb[0].mxu0
        %v1837 = vadd.f32 0.0, %v1836
        %v1838 = vpop.f32.mrb[0].mxu0
        %v1839 = vadd.f32 0.0, %v1838
        %v1840 = vpop.f32.mrb[0].mxu0
        %v1841 = vadd.f32 0.0, %v1840
        %v1842 = vpop.f32.mrb[0].mxu0
        %v1843 = vadd.f32 0.0, %v1842
        %1844 = vmatprep.mubr.bf16.mxu0 0
        %1845 = vmatmul.mubr.bf16.gmra.mrb[0].mxu0 %v1668
        %v1846 = vpop.f32.mrb[0].mxu0
        %v1847 = vadd.f32 0.0, %v1846
        %v1848 = vpop.f32.mrb[0].mxu0
        %v1849 = vadd.f32 0.0, %v1848
        %v1850 = vpop.f32.mrb[0].mxu0
        %v1851 = vadd.f32 0.0, %v1850
        %v1852 = vpop.f32.mrb[0].mxu0
        %v1853 = vadd.f32 0.0, %v1852
        %1854 = vmatprep.mubr.bf16.mxu0 0
        %1855 = vmatmul.mubr.bf16.gmra.mrb[0].mxu0 %v1669
        %v1856 = vpop.f32.mrb[0].mxu0
        %v1857 = vadd.f32 0.0, %v1856
        %v1858 = vpop.f32.mrb[0].mxu0
        %v1859 = vadd.f32 0.0, %v1858
        %v1860 = vpop.f32.mrb[0].mxu0
        %v1861 = vadd.f32 0.0, %v1860
        %v1862 = vpop.f32.mrb[0].mxu0
        %v1863 = vadd.f32 0.0, %v1862
        %1864 = vmatprep.mubr.bf16.mxu0 0
        %1865 = vmatmul.mubr.bf16.gmra.mrb[0].mxu0 %v1670
        %v1866 = vpop.f32.mrb[0].mxu0
        %v1867 = vadd.f32 0.0, %v1866
        %v1868 = vpop.f32.mrb[0].mxu0
        %v1869 = vadd.f32 0.0, %v1868
        %v1870 = vpop.f32.mrb[0].mxu0
        %v1871 = vadd.f32 0.0, %v1870
        %v1872 = vpop.f32.mrb[0].mxu0
        %v1873 = vadd.f32 0.0, %v1872
        %1874 = vmatprep.mubr.bf16.mxu0 0
        %1875 = vmatmul.mubr.bf16.gmra.mrb[0].mxu0 %v1671
        %v1876 = vpop.f32.mrb[0].mxu0
        %v1877 = vadd.f32 0.0, %v1876
        %v1878 = vpop.f32.mrb[0].mxu0
        %v1879 = vadd.f32 0.0, %v1878
        %v1880 = vpop.f32.mrb[0].mxu0
        %v1881 = vadd.f32 0.0, %v1880
        %v1882 = vpop.f32.mrb[0].mxu0
        %v1883 = vadd.f32 0.0, %v1882
        %1884 = vmatprep.mubr.bf16.mxu0 0
        %1885 = vmatmul.mubr.bf16.gmra.mrb[0].mxu0 %v1672
        %v1886 = vpop.f32.mrb[0].mxu0
        %v1887 = vadd.f32 0.0, %v1886
        %v1888 = vpop.f32.mrb[0].mxu0
        %v1889 = vadd.f32 0.0, %v1888
        %v1890 = vpop.f32.mrb[0].mxu0
        %v1891 = vadd.f32 0.0, %v1890
        %v1892 = vpop.f32.mrb[0].mxu0
        %v1893 = vadd.f32 0.0, %v1892
        %1894 = vmatprep.mubr.bf16.mxu0 0
        %1895 = vmatmul.mubr.bf16.gmra.mrb[0].mxu0 %v1673
        %v1896 = vpop.f32.mrb[0].mxu0
        %v1897 = vadd.f32 0.0, %v1896
        %v1898 = vpop.f32.mrb[0].mxu0
        %v1899 = vadd.f32 0.0, %v1898
        %v1900 = vpop.f32.mrb[0].mxu0
        %v1901 = vadd.f32 0.0, %v1900
        %v1902 = vpop.f32.mrb[0].mxu0
        %v1903 = vadd.f32 0.0, %v1902
        %1904 = vmatprep.mubr.bf16.mxu0 0
        %1905 = vmatmul.mubr.bf16.gmra.mrb[0].mxu0 %v1674
        %v1906 = vpop.f32.mrb[0].mxu0
        %v1907 = vadd.f32 0.0, %v1906
        %v1908 = vpop.f32.mrb[0].mxu0
        %v1909 = vadd.f32 0.0, %v1908
        %v1910 = vpop.f32.mrb[0].mxu0
        %v1911 = vadd.f32 0.0, %v1910
        %v1912 = vpop.f32.mrb[0].mxu0
        %v1913 = vadd.f32 0.0, %v1912
        %1914 = vmatprep.mubr.bf16.mxu0 0
        %1915 = vmatmul.mubr.bf16.gmra.mrb[0].mxu0 %v1675
        %v1916 = vpop.f32.mrb[0].mxu0
        %v1917 = vadd.f32 0.0, %v1916
        %v1918 = vpop.f32.mrb[0].mxu0
        %v1919 = vadd.f32 0.0, %v1918
        %v1920 = vpop.f32.mrb[0].mxu0
        %v1921 = vadd.f32 0.0, %v1920
        %v1922 = vpop.f32.mrb[0].mxu0
        %v1923 = vadd.f32 0.0, %v1922
        %1924 = vmatprep.mubr.bf16.mxu0 0
        %1925 = vmatmul.mubr.bf16.gmra.mrb[0].mxu0 %v1676
        %v1926 = vpop.f32.mrb[0].mxu0
        %v1927 = vadd.f32 0.0, %v1926
        %v1928 = vpop.f32.mrb[0].mxu0
        %v1929 = vadd.f32 0.0, %v1928
        %v1930 = vpop.f32.mrb[0].mxu0
        %v1931 = vadd.f32 0.0, %v1930
        %v1932 = vpop.f32.mrb[0].mxu0
        %v1933 = vadd.f32 0.0, %v1932
        %1934 = vmatprep.mubr.bf16.mxu0 0
        %1935 = vmatmul.mubr.bf16.gmra.mrb[0].mxu0 %v1677
        %v1936 = vpop.f32.mrb[0].mxu0
        %v1937 = vadd.f32 0.0, %v1936
        %v1938 = vpop.f32.mrb[0].mxu0
        %v1939 = vadd.f32 0.0, %v1938
        %v1940 = vpop.f32.mrb[0].mxu0
        %v1941 = vadd.f32 0.0, %v1940
        %v1942 = vpop.f32.mrb[0].mxu0
        %v1943 = vadd.f32 0.0, %v1942
        %1944 = vmatprep.mubr.bf16.mxu0 0
        %1945 = vmatmul.mubr.bf16.gmra.mrb[0].mxu0 %v1678
        %v1946 = vpop.f32.mrb[0].mxu0
        %v1947 = vadd.f32 0.0, %v1946
        %v1948 = vpop.f32.mrb[0].mxu0
        %v1949 = vadd.f32 0.0, %v1948
        %v1950 = vpop.f32.mrb[0].mxu0
        %v1951 = vadd.f32 0.0, %v1950
        %v1952 = vpop.f32.mrb[0].mxu0
        %v1953 = vadd.f32 0.0, %v1952
        %1954 = vmatprep.mubr.bf16.mxu0 0
        %1955 = vmatmul.mubr.bf16.gmra.mrb[0].mxu0 %v1679
        %v1956 = vpop.f32.mrb[0].mxu0
        %v1957 = vadd.f32 0.0, %v1956
        %v1958 = vpop.f32.mrb[0].mxu0
        %v1959 = vadd.f32 0.0, %v1958
        %v1960 = vpop.f32.mrb[0].mxu0
        %v1961 = vadd.f32 0.0, %v1960
        %v1962 = vpop.f32.mrb[0].mxu0
        %v1963 = vadd.f32 0.0, %v1962
        %1964 = vmatprep.mubr.bf16.mxu0 0
        %1965 = vmatmul.mubr.bf16.gmra.mrb[0].mxu0 %v1680
        %v1966 = vpop.f32.mrb[0].mxu0
        %v1967 = vadd.f32 0.0, %v1966
        %v1968 = vpop.f32.mrb[0].mxu0
        %v1969 = vadd.f32 0.0, %v1968
        %v1970 = vpop.f32.mrb[0].mxu0
        %v1971 = vadd.f32 0.0, %v1970
        %v1972 = vpop.f32.mrb[0].mxu0
        %v1973 = vadd.f32 0.0, %v1972
        %1974 = vmatprep.mubr.bf16.mxu0 0
        %1975 = vmatmul.mubr.bf16.gmra.mrb[0].mxu0 %v1681
        %v1976 = vpop.f32.mrb[0].mxu0
        %v1977 = vadd.f32 0.0, %v1976
        %v1978 = vpop.f32.mrb[0].mxu0
        %v1979 = vadd.f32 0.0, %v1978
        %v1980 = vpop.f32.mrb[0].mxu0
        %v1981 = vadd.f32 0.0, %v1980
        %v1982 = vpop.f32.mrb[0].mxu0
        %v1983 = vadd.f32 0.0, %v1982
        %1984 = vmatprep.mubr.bf16.mxu0 0
        %1985 = vmatmul.mubr.bf16.gmra.mrb[0].mxu0 %v1682
        %v1986 = vpop.f32.mrb[0].mxu0
        %v1987 = vadd.f32 0.0, %v1986
        %v1988 = vpop.f32.mrb[0].mxu0
        %v1989 = vadd.f32 0.0, %v1988
        %v1990 = vpop.f32.mrb[0].mxu0
        %v1991 = vadd.f32 0.0, %v1990
        %v1992 = vpop.f32.mrb[0].mxu0
        %v1993 = vadd.f32 0.0, %v1992
        %1994 = vmatprep.mubr.bf16.mxu0 0
        %1995 = vmatmul.mubr.bf16.gmra.mrb[0].mxu0 %v1683
        %v1996 = vpop.f32.mrb[0].mxu0
        %v1997 = vadd.f32 0.0, %v1996
        %v1998 = vpop.f32.mrb[0].mxu0
        %v1999 = vadd.f32 0.0, %v1998
        %v2000 = vpop.f32.mrb[0].mxu0
        %v2001 = vadd.f32 0.0, %v2000
        %v2002 = vpop.f32.mrb[0].mxu0
        %v2003 = vadd.f32 0.0, %v2002
        %2004 = vmatprep.mubr.bf16.mxu0 0
        %2005 = vmatmul.mubr.bf16.gmra.mrb[0].mxu0 %v1684
        %v2006 = vpop.f32.mrb[0].mxu0
        %v2007 = vadd.f32 0.0, %v2006
        %v2008 = vpop.f32.mrb[0].mxu0
        %v2009 = vadd.f32 0.0, %v2008
        %v2010 = vpop.f32.mrb[0].mxu0
        %v2011 = vpop.f32.mrb[0].mxu0
        %2012 = vdwg.mxu0
        %v2013 = vadd.f32 %v1548, %v1817
        %v2014 = vadd.f32 %v1549, %v1819
        %v2015 = vadd.f32 %v1550, %v1821
        %v2016 = vadd.f32 %v1551, %v1823
        %v2017 = vadd.f32 %v1552, %v1827
        %v2018 = vadd.f32 %v1553, %v1829
        %v2019 = vadd.f32 %v1554, %v1831
        %v2020 = vadd.f32 %v1555, %v1833
        %v2021 = vadd.f32 %v1556, %v1837
        %v2022 = vadd.f32 %v1557, %v1839
        %v2023 = vadd.f32 %v1558, %v1841
        %v2024 = vadd.f32 %v1559, %v1843
        %v2025 = vadd.f32 %v1560, %v1847
        %v2026 = vadd.f32 %v1561, %v1849
        %v2027 = vadd.f32 %v1562, %v1851
        %v2028 = vadd.f32 %v1563, %v1853
        %v2029 = vadd.f32 %v1564, %v1857
        %v2030 = vadd.f32 %v1565, %v1859
        %v2031 = vadd.f32 %v1566, %v1861
        %v2032 = vadd.f32 %v1567, %v1863
        %v2033 = vadd.f32 %v1568, %v1867
        %v2034 = vadd.f32 %v1569, %v1869
        %v2035 = vadd.f32 %v1570, %v1871
        %v2036 = vadd.f32 %v1571, %v1873
        %v2037 = vadd.f32 %v1572, %v1877
        %v2038 = vadd.f32 %v1573, %v1879
        %v2039 = vadd.f32 %v1574, %v1881
        %v2040 = vadd.f32 %v1575, %v1883
        %v2041 = vadd.f32 %v1576, %v1887
        %v2042 = vadd.f32 %v1577, %v1889
        %v2043 = vadd.f32 %v1578, %v1891
        %v2044 = vadd.f32 %v1579, %v1893
        %v2045 = vadd.f32 %v1580, %v1897
        %v2046 = vadd.f32 %v1581, %v1899
        %v2047 = vadd.f32 %v1582, %v1901
        %v2048 = vadd.f32 %v1583, %v1903
        %v2049 = vadd.f32 %v1584, %v1907
        %v2050 = vadd.f32 %v1585, %v1909
        %v2051 = vadd.f32 %v1586, %v1911
        %v2052 = vadd.f32 %v1587, %v1913
        %v2053 = vadd.f32 %v1588, %v1917
        %v2054 = vadd.f32 %v1589, %v1919
        %v2055 = vadd.f32 %v1590, %v1921
        %v2056 = vadd.f32 %v1591, %v1923
        %v2057 = vadd.f32 %v1592, %v1927
        %v2058 = vadd.f32 %v1593, %v1929
        %v2059 = vadd.f32 %v1594, %v1931
        %v2060 = vadd.f32 %v1595, %v1933
        %v2061 = vadd.f32 %v1596, %v1937
        %v2062 = vadd.f32 %v1597, %v1939
        %v2063 = vadd.f32 %v1598, %v1941
        %v2064 = vadd.f32 %v1599, %v1943
        %v2065 = vadd.f32 %v1600, %v1947
        %v2066 = vadd.f32 %v1601, %v1949
        %v2067 = vadd.f32 %v1602, %v1951
        %v2068 = vadd.f32 %v1603, %v1953
        %v2069 = vadd.f32 %v1604, %v1957
        %v2070 = vadd.f32 %v1605, %v1959
        %v2071 = vadd.f32 %v1606, %v1961
        %v2072 = vadd.f32 %v1607, %v1963
        %v2073 = vadd.f32 %v1608, %v1967
        %v2074 = vadd.f32 %v1609, %v1969
        %v2075 = vadd.f32 %v1610, %v1971
        %v2076 = vadd.f32 %v1611, %v1973
        %v2077 = vadd.f32 %v1612, %v1977
        %v2078 = vadd.f32 %v1613, %v1979
        %v2079 = vadd.f32 %v1614, %v1981
        %v2080 = vadd.f32 %v1615, %v1983
        %v2081 = vadd.f32 %v1616, %v1987
        %v2082 = vadd.f32 %v1617, %v1989
        %v2083 = vadd.f32 %v1618, %v1991
        %v2084 = vadd.f32 %v1619, %v1993
        %v2085 = vadd.f32 %v1620, %v1997
        %v2086 = vadd.f32 %v1621, %v1999
        %v2087 = vadd.f32 %v1622, %v2001
        %v2088 = vadd.f32 %v1623, %v2003
        %v2089 = vadd.f32 %v1624, %v2007
        %v2090 = vadd.f32 %v1625, %v2009
        %v2091 = vld [vmem:[%s385 + $0x4] sm:$0xff]
        %v2092 = vld [vmem:[%s385 + $0xc] sm:$0xff]
        %v2093 = vld [vmem:[%s385 + $0x14] sm:$0xff]
        %v2094 = vld [vmem:[%s385 + $0x1c] sm:$0xff]
        %v2095 = vld [vmem:[%s385 + $0x24] sm:$0xff]
        %v2096 = vld [vmem:[%s385 + $0x2c] sm:$0xff]
        %v2097 = vld [vmem:[%s385 + $0x34] sm:$0xff]
        %v2098 = vld [vmem:[%s385 + $0x3c] sm:$0xff]
        %v2099 = vld [vmem:[%s385 + $0x44] sm:$0xff]
        %v2100 = vld [vmem:[%s385 + $0x4c] sm:$0xff]
        %v2101 = vld [vmem:[%s385 + $0x54] sm:$0xff]
        %v2102 = vld [vmem:[%s385 + $0x5c] sm:$0xff]
        %v2103 = vld [vmem:[%s385 + $0x64] sm:$0xff]
        %v2104 = vld [vmem:[%s385 + $0x6c] sm:$0xff]
        %v2105 = vld [vmem:[%s385 + $0x74] sm:$0xff]
        %v2106 = vld [vmem:[%s385 + $0x7c] sm:$0xff]
        %v2107 = vld [vmem:[%s385 + $0x84] sm:$0xff]
        %v2108 = vld [vmem:[%s385 + $0x8c] sm:$0xff]
        %v2109 = vld [vmem:[%s385 + $0x94] sm:$0xff]
        %v2110 = vld [vmem:[%s385 + $0x9c] sm:$0xff]
        %v2111 = vld [vmem:[%s385 + $0xa4] sm:$0xff]
        %v2112 = vld [vmem:[%s385 + $0xac] sm:$0xff]
        %v2113 = vld [vmem:[%s385 + $0xb4] sm:$0xff]
        %v2114 = vld [vmem:[%s385 + $0xbc] sm:$0xff]
        %v2115 = vld [vmem:[%s385 + $0xc4] sm:$0xff]
        %v2116 = vld [vmem:[%s385 + $0xcc] sm:$0xff]
        %v2117 = vld [vmem:[%s385 + $0xd4] sm:$0xff]
        %v2118 = vld [vmem:[%s385 + $0xdc] sm:$0xff]
        %v2119 = vld [vmem:[%s385 + $0xe4] sm:$0xff]
        %v2120 = vld [vmem:[%s385 + $0xec] sm:$0xff]
        %v2121 = vld [vmem:[%s385 + $0xf4] sm:$0xff]
        %v2122 = vld [vmem:[%s385 + $0xfc] sm:$0xff]
        %v2123 = vld [vmem:[%s385 + $0x104] sm:$0xff]
        %v2124 = vld [vmem:[%s385 + $0x10c] sm:$0xff]
        %v2125 = vld [vmem:[%s385 + $0x114] sm:$0xff]
        %v2126 = vld [vmem:[%s385 + $0x11c] sm:$0xff]
        %v2127 = vld [vmem:[%s385 + $0x124] sm:$0xff]
        %v2128 = vld [vmem:[%s385 + $0x12c] sm:$0xff]
        %v2129 = vld [vmem:[%s385 + $0x134] sm:$0xff]
        %v2130 = vpack.c.bf16 %v2092, %v2091
        %v2131 = vpack.c.bf16 %v2094, %v2093
        %v2132 = vpack.c.bf16 %v2096, %v2095
        %v2133 = vpack.c.bf16 %v2098, %v2097
        %v2134 = vpack.c.bf16 %v2100, %v2099
        %v2135 = vpack.c.bf16 %v2102, %v2101
        %v2136 = vpack.c.bf16 %v2104, %v2103
        %v2137 = vpack.c.bf16 %v2106, %v2105
        %v2138 = vpack.c.bf16 %v2108, %v2107
        %v2139 = vpack.c.bf16 %v2110, %v2109
        %v2140 = vpack.c.bf16 %v2112, %v2111
        %v2141 = vpack.c.bf16 %v2114, %v2113
        %v2142 = vpack.c.bf16 %v2116, %v2115
        %v2143 = vpack.c.bf16 %v2118, %v2117
        %v2144 = vpack.c.bf16 %v2120, %v2119
        %v2145 = vpack.c.bf16 %v2122, %v2121
        %v2146 = vpack.c.bf16 %v2124, %v2123
        %v2147 = vpack.c.bf16 %v2126, %v2125
        %v2148 = vpack.c.bf16 %v2128, %v2127
        %v2149 = vpack.c.bf16 %v2129, %v2129
        %s2150 = scalar_lea.vmem %s1, 512
        %v2151 = vld [vmem:[%s2150] sm:$0xff]
        %v2152 = vld [vmem:[%s2150 + $0x8] sm:$0xff]
        %v2153 = vld [vmem:[%s2150 + $0x10] sm:$0xff]
        %v2154 = vld [vmem:[%s2150 + $0x18] sm:$0xff]
        %v2155 = vld [vmem:[%s2150 + $0x20] sm:$0xff]
        %v2156 = vld [vmem:[%s2150 + $0x28] sm:$0xff]
        %v2157 = vld [vmem:[%s2150 + $0x30] sm:$0xff]
        %v2158 = vld [vmem:[%s2150 + $0x38] sm:$0xff]
        %v2159 = vld [vmem:[%s2150 + $0x40] sm:$0xff]
        %v2160 = vld [vmem:[%s2150 + $0x48] sm:$0xff]
        %v2161 = vld [vmem:[%s2150 + $0x50] sm:$0xff]
        %v2162 = vld [vmem:[%s2150 + $0x58] sm:$0xff]
        %v2163 = vld [vmem:[%s2150 + $0x60] sm:$0xff]
        %v2164 = vld [vmem:[%s2150 + $0x68] sm:$0xff]
        %v2165 = vld [vmem:[%s2150 + $0x70] sm:$0xff]
        %v2166 = vld [vmem:[%s2150 + $0x78] sm:$0xff]
        %v2183 = vunpack.c.l.b16 %v2151
        %v2184 = vunpack.c.h.b16 %v2151
        %v2185 = vunpack.c.l.b16 %v2152
        %v2186 = vunpack.c.h.b16 %v2152
        %v2187 = vunpack.c.l.b16 %v2153
        %v2188 = vunpack.c.h.b16 %v2153
        %v2189 = vunpack.c.l.b16 %v2154
        %v2190 = vunpack.c.h.b16 %v2154
        %v2191 = vunpack.c.l.b16 %v2155
        %v2192 = vunpack.c.h.b16 %v2155
        %v2193 = vunpack.c.l.b16 %v2156
        %v2194 = vunpack.c.h.b16 %v2156
        %v2195 = vunpack.c.l.b16 %v2157
        %v2196 = vunpack.c.h.b16 %v2157
        %v2197 = vunpack.c.l.b16 %v2158
        %v2198 = vunpack.c.h.b16 %v2158
        %v2199 = vunpack.c.l.b16 %v2159
        %v2200 = vunpack.c.h.b16 %v2159
        %v2201 = vunpack.c.l.b16 %v2160
        %v2202 = vunpack.c.h.b16 %v2160
        %v2203 = vunpack.c.l.b16 %v2161
        %v2204 = vunpack.c.h.b16 %v2161
        %v2205 = vunpack.c.l.b16 %v2162
        %v2206 = vunpack.c.h.b16 %v2162
        %v2207 = vunpack.c.l.b16 %v2163
        %v2208 = vunpack.c.h.b16 %v2163
        %v2209 = vunpack.c.l.b16 %v2164
        %v2210 = vunpack.c.h.b16 %v2164
        %v2211 = vunpack.c.l.b16 %v2165
        %v2212 = vunpack.c.h.b16 %v2165
        %v2213 = vunpack.c.l.b16 %v2166
        %v2214 = vunpack.c.h.b16 %v2166
        %v2215 = vpack.c.b16 %v2185, %v2183
        %v2216 = vpack.c.b16 %v2186, %v2184
        %v2217 = vpack.c.b16 %v2189, %v2187
        %v2218 = vpack.c.b16 %v2190, %v2188
        %v2219 = vpack.c.b16 %v2193, %v2191
        %v2220 = vpack.c.b16 %v2194, %v2192
        %v2221 = vpack.c.b16 %v2197, %v2195
        %v2222 = vpack.c.b16 %v2198, %v2196
        %v2223 = vpack.c.b16 %v2201, %v2199
        %v2224 = vpack.c.b16 %v2202, %v2200
        %v2225 = vpack.c.b16 %v2205, %v2203
        %v2226 = vpack.c.b16 %v2206, %v2204
        %v2227 = vpack.c.b16 %v2209, %v2207
        %v2228 = vpack.c.b16 %v2210, %v2208
        %v2229 = vpack.c.b16 %v2213, %v2211
        %v2230 = vpack.c.b16 %v2214, %v2212
        %2247 = vmatprep.subr.bf16.mxu0 %v2216
        %2248 = vmatpush1.bf16.msra.mxu0 %v2215
        %2249 = vmatprep.subr.bf16.mxu0 %v2218
        %2250 = vmatpush1.bf16.msra.mxu0 %v2217
        %2251 = vmatprep.subr.bf16.mxu0 %v2220
        %2252 = vmatpush1.bf16.msra.mxu0 %v2219
        %2253 = vmatprep.subr.bf16.mxu0 %v2222
        %2254 = vmatpush1.bf16.msra.mxu0 %v2221
        %2255 = vmatprep.subr.bf16.mxu0 %v2224
        %2256 = vmatpush1.bf16.msra.mxu0 %v2223
        %2257 = vmatprep.subr.bf16.mxu0 %v2226
        %2258 = vmatpush1.bf16.msra.mxu0 %v2225
        %2259 = vmatprep.subr.bf16.mxu0 %v2228
        %2260 = vmatpush1.bf16.msra.mxu0 %v2227
        %2261 = vmatprep.subr.bf16.mxu0 %v2230
        %2262 = vmatpush1.bf16.msra.mxu0 %v2229
        %2263 = vmatprep.subr.bf16.mxu0 0
        %2264 = vmatpush1.bf16.msra.mxu0 0
        %2265 = vmatprep.subr.bf16.mxu0 0
        %2266 = vmatpush1.bf16.msra.mxu0 0
        %2267 = vmatprep.subr.bf16.mxu0 0
        %2268 = vmatpush1.bf16.msra.mxu0 0
        %2269 = vmatprep.subr.bf16.mxu0 0
        %2270 = vmatpush1.bf16.msra.mxu0 0
        %2271 = vmatprep.subr.bf16.mxu0 0
        %2272 = vmatpush1.bf16.msra.mxu0 0
        %2273 = vmatprep.subr.bf16.mxu0 0
        %2274 = vmatpush1.bf16.msra.mxu0 0
        %2275 = vmatprep.subr.bf16.mxu0 0
        %2276 = vmatpush1.bf16.msra.mxu0 0
        %2277 = vmatprep.subr.bf16.mxu0 0
        %2278 = vmatpush1.bf16.msra.mxu0 0
        %2279 = vmatprep.mubr.bf16.mxu0 0
        %2280 = vmatmul.mubr.bf16.gmra.mrb[0].mxu0 %v2130
        %v2281 = vpop.f32.mrb[0].mxu0
        %v2282 = vadd.f32 0.0, %v2281
        %v2283 = vpop.f32.mrb[0].mxu0
        %v2284 = vadd.f32 0.0, %v2283
        %v2285 = vpop.f32.mrb[0].mxu0
        %v2286 = vadd.f32 0.0, %v2285
        %v2287 = vpop.f32.mrb[0].mxu0
        %v2288 = vadd.f32 0.0, %v2287
        %2289 = vmatprep.mubr.bf16.mxu0 0
        %2290 = vmatmul.mubr.bf16.gmra.mrb[0].mxu0 %v2131
        %v2291 = vpop.f32.mrb[0].mxu0
        %v2292 = vadd.f32 0.0, %v2291
        %v2293 = vpop.f32.mrb[0].mxu0
        %v2294 = vadd.f32 0.0, %v2293
        %v2295 = vpop.f32.mrb[0].mxu0
        %v2296 = vadd.f32 0.0, %v2295
        %v2297 = vpop.f32.mrb[0].mxu0
        %v2298 = vadd.f32 0.0, %v2297
        %2299 = vmatprep.mubr.bf16.mxu0 0
        %2300 = vmatmul.mubr.bf16.gmra.mrb[0].mxu0 %v2132
        %v2301 = vpop.f32.mrb[0].mxu0
        %v2302 = vadd.f32 0.0, %v2301
        %v2303 = vpop.f32.mrb[0].mxu0
        %v2304 = vadd.f32 0.0, %v2303
        %v2305 = vpop.f32.mrb[0].mxu0
        %v2306 = vadd.f32 0.0, %v2305
        %v2307 = vpop.f32.mrb[0].mxu0
        %v2308 = vadd.f32 0.0, %v2307
        %2309 = vmatprep.mubr.bf16.mxu0 0
        %2310 = vmatmul.mubr.bf16.gmra.mrb[0].mxu0 %v2133
        %v2311 = vpop.f32.mrb[0].mxu0
        %v2312 = vadd.f32 0.0, %v2311
        %v2313 = vpop.f32.mrb[0].mxu0
        %v2314 = vadd.f32 0.0, %v2313
        %v2315 = vpop.f32.mrb[0].mxu0
        %v2316 = vadd.f32 0.0, %v2315
        %v2317 = vpop.f32.mrb[0].mxu0
        %v2318 = vadd.f32 0.0, %v2317
        %2319 = vmatprep.mubr.bf16.mxu0 0
        %2320 = vmatmul.mubr.bf16.gmra.mrb[0].mxu0 %v2134
        %v2321 = vpop.f32.mrb[0].mxu0
        %v2322 = vadd.f32 0.0, %v2321
        %v2323 = vpop.f32.mrb[0].mxu0
        %v2324 = vadd.f32 0.0, %v2323
        %v2325 = vpop.f32.mrb[0].mxu0
        %v2326 = vadd.f32 0.0, %v2325
        %v2327 = vpop.f32.mrb[0].mxu0
        %v2328 = vadd.f32 0.0, %v2327
        %2329 = vmatprep.mubr.bf16.mxu0 0
        %2330 = vmatmul.mubr.bf16.gmra.mrb[0].mxu0 %v2135
        %v2331 = vpop.f32.mrb[0].mxu0
        %v2332 = vadd.f32 0.0, %v2331
        %v2333 = vpop.f32.mrb[0].mxu0
        %v2334 = vadd.f32 0.0, %v2333
        %v2335 = vpop.f32.mrb[0].mxu0
        %v2336 = vadd.f32 0.0, %v2335
        %v2337 = vpop.f32.mrb[0].mxu0
        %v2338 = vadd.f32 0.0, %v2337
        %2339 = vmatprep.mubr.bf16.mxu0 0
        %2340 = vmatmul.mubr.bf16.gmra.mrb[0].mxu0 %v2136
        %v2341 = vpop.f32.mrb[0].mxu0
        %v2342 = vadd.f32 0.0, %v2341
        %v2343 = vpop.f32.mrb[0].mxu0
        %v2344 = vadd.f32 0.0, %v2343
        %v2345 = vpop.f32.mrb[0].mxu0
        %v2346 = vadd.f32 0.0, %v2345
        %v2347 = vpop.f32.mrb[0].mxu0
        %v2348 = vadd.f32 0.0, %v2347
        %2349 = vmatprep.mubr.bf16.mxu0 0
        %2350 = vmatmul.mubr.bf16.gmra.mrb[0].mxu0 %v2137
        %v2351 = vpop.f32.mrb[0].mxu0
        %v2352 = vadd.f32 0.0, %v2351
        %v2353 = vpop.f32.mrb[0].mxu0
        %v2354 = vadd.f32 0.0, %v2353
        %v2355 = vpop.f32.mrb[0].mxu0
        %v2356 = vadd.f32 0.0, %v2355
        %v2357 = vpop.f32.mrb[0].mxu0
        %v2358 = vadd.f32 0.0, %v2357
        %2359 = vmatprep.mubr.bf16.mxu0 0
        %2360 = vmatmul.mubr.bf16.gmra.mrb[0].mxu0 %v2138
        %v2361 = vpop.f32.mrb[0].mxu0
        %v2362 = vadd.f32 0.0, %v2361
        %v2363 = vpop.f32.mrb[0].mxu0
        %v2364 = vadd.f32 0.0, %v2363
        %v2365 = vpop.f32.mrb[0].mxu0
        %v2366 = vadd.f32 0.0, %v2365
        %v2367 = vpop.f32.mrb[0].mxu0
        %v2368 = vadd.f32 0.0, %v2367
        %2369 = vmatprep.mubr.bf16.mxu0 0
        %2370 = vmatmul.mubr.bf16.gmra.mrb[0].mxu0 %v2139
        %v2371 = vpop.f32.mrb[0].mxu0
        %v2372 = vadd.f32 0.0, %v2371
        %v2373 = vpop.f32.mrb[0].mxu0
        %v2374 = vadd.f32 0.0, %v2373
        %v2375 = vpop.f32.mrb[0].mxu0
        %v2376 = vadd.f32 0.0, %v2375
        %v2377 = vpop.f32.mrb[0].mxu0
        %v2378 = vadd.f32 0.0, %v2377
        %2379 = vmatprep.mubr.bf16.mxu0 0
        %2380 = vmatmul.mubr.bf16.gmra.mrb[0].mxu0 %v2140
        %v2381 = vpop.f32.mrb[0].mxu0
        %v2382 = vadd.f32 0.0, %v2381
        %v2383 = vpop.f32.mrb[0].mxu0
        %v2384 = vadd.f32 0.0, %v2383
        %v2385 = vpop.f32.mrb[0].mxu0
        %v2386 = vadd.f32 0.0, %v2385
        %v2387 = vpop.f32.mrb[0].mxu0
        %v2388 = vadd.f32 0.0, %v2387
        %2389 = vmatprep.mubr.bf16.mxu0 0
        %2390 = vmatmul.mubr.bf16.gmra.mrb[0].mxu0 %v2141
        %v2391 = vpop.f32.mrb[0].mxu0
        %v2392 = vadd.f32 0.0, %v2391
        %v2393 = vpop.f32.mrb[0].mxu0
        %v2394 = vadd.f32 0.0, %v2393
        %v2395 = vpop.f32.mrb[0].mxu0
        %v2396 = vadd.f32 0.0, %v2395
        %v2397 = vpop.f32.mrb[0].mxu0
        %v2398 = vadd.f32 0.0, %v2397
        %2399 = vmatprep.mubr.bf16.mxu0 0
        %2400 = vmatmul.mubr.bf16.gmra.mrb[0].mxu0 %v2142
        %v2401 = vpop.f32.mrb[0].mxu0
        %v2402 = vadd.f32 0.0, %v2401
        %v2403 = vpop.f32.mrb[0].mxu0
        %v2404 = vadd.f32 0.0, %v2403
        %v2405 = vpop.f32.mrb[0].mxu0
        %v2406 = vadd.f32 0.0, %v2405
        %v2407 = vpop.f32.mrb[0].mxu0
        %v2408 = vadd.f32 0.0, %v2407
        %2409 = vmatprep.mubr.bf16.mxu0 0
        %2410 = vmatmul.mubr.bf16.gmra.mrb[0].mxu0 %v2143
        %v2411 = vpop.f32.mrb[0].mxu0
        %v2412 = vadd.f32 0.0, %v2411
        %v2413 = vpop.f32.mrb[0].mxu0
        %v2414 = vadd.f32 0.0, %v2413
        %v2415 = vpop.f32.mrb[0].mxu0
        %v2416 = vadd.f32 0.0, %v2415
        %v2417 = vpop.f32.mrb[0].mxu0
        %v2418 = vadd.f32 0.0, %v2417
        %2419 = vmatprep.mubr.bf16.mxu0 0
        %2420 = vmatmul.mubr.bf16.gmra.mrb[0].mxu0 %v2144
        %v2421 = vpop.f32.mrb[0].mxu0
        %v2422 = vadd.f32 0.0, %v2421
        %v2423 = vpop.f32.mrb[0].mxu0
        %v2424 = vadd.f32 0.0, %v2423
        %v2425 = vpop.f32.mrb[0].mxu0
        %v2426 = vadd.f32 0.0, %v2425
        %v2427 = vpop.f32.mrb[0].mxu0
        %v2428 = vadd.f32 0.0, %v2427
        %2429 = vmatprep.mubr.bf16.mxu0 0
        %2430 = vmatmul.mubr.bf16.gmra.mrb[0].mxu0 %v2145
        %v2431 = vpop.f32.mrb[0].mxu0
        %v2432 = vadd.f32 0.0, %v2431
        %v2433 = vpop.f32.mrb[0].mxu0
        %v2434 = vadd.f32 0.0, %v2433
        %v2435 = vpop.f32.mrb[0].mxu0
        %v2436 = vadd.f32 0.0, %v2435
        %v2437 = vpop.f32.mrb[0].mxu0
        %v2438 = vadd.f32 0.0, %v2437
        %2439 = vmatprep.mubr.bf16.mxu0 0
        %2440 = vmatmul.mubr.bf16.gmra.mrb[0].mxu0 %v2146
        %v2441 = vpop.f32.mrb[0].mxu0
        %v2442 = vadd.f32 0.0, %v2441
        %v2443 = vpop.f32.mrb[0].mxu0
        %v2444 = vadd.f32 0.0, %v2443
        %v2445 = vpop.f32.mrb[0].mxu0
        %v2446 = vadd.f32 0.0, %v2445
        %v2447 = vpop.f32.mrb[0].mxu0
        %v2448 = vadd.f32 0.0, %v2447
        %2449 = vmatprep.mubr.bf16.mxu0 0
        %2450 = vmatmul.mubr.bf16.gmra.mrb[0].mxu0 %v2147
        %v2451 = vpop.f32.mrb[0].mxu0
        %v2452 = vadd.f32 0.0, %v2451
        %v2453 = vpop.f32.mrb[0].mxu0
        %v2454 = vadd.f32 0.0, %v2453
        %v2455 = vpop.f32.mrb[0].mxu0
        %v2456 = vadd.f32 0.0, %v2455
        %v2457 = vpop.f32.mrb[0].mxu0
        %v2458 = vadd.f32 0.0, %v2457
        %2459 = vmatprep.mubr.bf16.mxu0 0
        %2460 = vmatmul.mubr.bf16.gmra.mrb[0].mxu0 %v2148
        %v2461 = vpop.f32.mrb[0].mxu0
        %v2462 = vadd.f32 0.0, %v2461
        %v2463 = vpop.f32.mrb[0].mxu0
        %v2464 = vadd.f32 0.0, %v2463
        %v2465 = vpop.f32.mrb[0].mxu0
        %v2466 = vadd.f32 0.0, %v2465
        %v2467 = vpop.f32.mrb[0].mxu0
        %v2468 = vadd.f32 0.0, %v2467
        %2469 = vmatprep.mubr.bf16.mxu0 0
        %2470 = vmatmul.mubr.bf16.gmra.mrb[0].mxu0 %v2149
        %v2471 = vpop.f32.mrb[0].mxu0
        %v2472 = vadd.f32 0.0, %v2471
        %v2473 = vpop.f32.mrb[0].mxu0
        %v2474 = vadd.f32 0.0, %v2473
        %v2475 = vpop.f32.mrb[0].mxu0
        %v2476 = vpop.f32.mrb[0].mxu0
        %2477 = vdwg.mxu0
        %v2478 = vadd.f32 %v2013, %v2282
        %v2479 = vadd.f32 %v2014, %v2284
        %v2480 = vadd.f32 %v2015, %v2286
        %v2481 = vadd.f32 %v2016, %v2288
        %v2482 = vadd.f32 %v2017, %v2292
        %v2483 = vadd.f32 %v2018, %v2294
        %v2484 = vadd.f32 %v2019, %v2296
        %v2485 = vadd.f32 %v2020, %v2298
        %v2486 = vadd.f32 %v2021, %v2302
        %v2487 = vadd.f32 %v2022, %v2304
        %v2488 = vadd.f32 %v2023, %v2306
        %v2489 = vadd.f32 %v2024, %v2308
        %v2490 = vadd.f32 %v2025, %v2312
        %v2491 = vadd.f32 %v2026, %v2314
        %v2492 = vadd.f32 %v2027, %v2316
        %v2493 = vadd.f32 %v2028, %v2318
        %v2494 = vadd.f32 %v2029, %v2322
        %v2495 = vadd.f32 %v2030, %v2324
        %v2496 = vadd.f32 %v2031, %v2326
        %v2497 = vadd.f32 %v2032, %v2328
        %v2498 = vadd.f32 %v2033, %v2332
        %v2499 = vadd.f32 %v2034, %v2334
        %v2500 = vadd.f32 %v2035, %v2336
        %v2501 = vadd.f32 %v2036, %v2338
        %v2502 = vadd.f32 %v2037, %v2342
        %v2503 = vadd.f32 %v2038, %v2344
        %v2504 = vadd.f32 %v2039, %v2346
        %v2505 = vadd.f32 %v2040, %v2348
        %v2506 = vadd.f32 %v2041, %v2352
        %v2507 = vadd.f32 %v2042, %v2354
        %v2508 = vadd.f32 %v2043, %v2356
        %v2509 = vadd.f32 %v2044, %v2358
        %v2510 = vadd.f32 %v2045, %v2362
        %v2511 = vadd.f32 %v2046, %v2364
        %v2512 = vadd.f32 %v2047, %v2366
        %v2513 = vadd.f32 %v2048, %v2368
        %v2514 = vadd.f32 %v2049, %v2372
        %v2515 = vadd.f32 %v2050, %v2374
        %v2516 = vadd.f32 %v2051, %v2376
        %v2517 = vadd.f32 %v2052, %v2378
        %v2518 = vadd.f32 %v2053, %v2382
        %v2519 = vadd.f32 %v2054, %v2384
        %v2520 = vadd.f32 %v2055, %v2386
        %v2521 = vadd.f32 %v2056, %v2388
        %v2522 = vadd.f32 %v2057, %v2392
        %v2523 = vadd.f32 %v2058, %v2394
        %v2524 = vadd.f32 %v2059, %v2396
        %v2525 = vadd.f32 %v2060, %v2398
        %v2526 = vadd.f32 %v2061, %v2402
        %v2527 = vadd.f32 %v2062, %v2404
        %v2528 = vadd.f32 %v2063, %v2406
        %v2529 = vadd.f32 %v2064, %v2408
        %v2530 = vadd.f32 %v2065, %v2412
        %v2531 = vadd.f32 %v2066, %v2414
        %v2532 = vadd.f32 %v2067, %v2416
        %v2533 = vadd.f32 %v2068, %v2418
        %v2534 = vadd.f32 %v2069, %v2422
        %v2535 = vadd.f32 %v2070, %v2424
        %v2536 = vadd.f32 %v2071, %v2426
        %v2537 = vadd.f32 %v2072, %v2428
        %v2538 = vadd.f32 %v2073, %v2432
        %v2539 = vadd.f32 %v2074, %v2434
        %v2540 = vadd.f32 %v2075, %v2436
        %v2541 = vadd.f32 %v2076, %v2438
        %v2542 = vadd.f32 %v2077, %v2442
        %v2543 = vadd.f32 %v2078, %v2444
        %v2544 = vadd.f32 %v2079, %v2446
        %v2545 = vadd.f32 %v2080, %v2448
        %v2546 = vadd.f32 %v2081, %v2452
        %v2547 = vadd.f32 %v2082, %v2454
        %v2548 = vadd.f32 %v2083, %v2456
        %v2549 = vadd.f32 %v2084, %v2458
        %v2550 = vadd.f32 %v2085, %v2462
        %v2551 = vadd.f32 %v2086, %v2464
        %v2552 = vadd.f32 %v2087, %v2466
        %v2553 = vadd.f32 %v2088, %v2468
        %v2554 = vadd.f32 %v2089, %v2472
        %v2555 = vadd.f32 %v2090, %v2474
        %v2556 = vld [vmem:[%s2] sm:$0x3]
        %v2558 = vlaneseq
        %v2559 = vshrl.u32 %v2558, 7
        %v2560 = vsub.s32 0, %v2559
        %v2561 = vrot.slane %v2556, %v2560
        %v2562 = vlaneseq
        %v2563 = vshrl.u32 %v2562, 7
        %v2564 = vsub.s32 1, %v2563
        %v2565 = vrot.slane %v2556, %v2564
        %v2568 = vadd.f32 %v2478, %v2561
        %v2569 = vadd.f32 %v2479, %v2565
        %v2570 = vadd.f32 %v2480, %v2561
        %v2571 = vadd.f32 %v2481, %v2565
        %v2572 = vadd.f32 %v2482, %v2561
        %v2573 = vadd.f32 %v2483, %v2565
        %v2574 = vadd.f32 %v2484, %v2561
        %v2575 = vadd.f32 %v2485, %v2565
        %v2576 = vadd.f32 %v2486, %v2561
        %v2577 = vadd.f32 %v2487, %v2565
        %v2578 = vadd.f32 %v2488, %v2561
        %v2579 = vadd.f32 %v2489, %v2565
        %v2580 = vadd.f32 %v2490, %v2561
        %v2581 = vadd.f32 %v2491, %v2565
        %v2582 = vadd.f32 %v2492, %v2561
        %v2583 = vadd.f32 %v2493, %v2565
        %v2584 = vadd.f32 %v2494, %v2561
        %v2585 = vadd.f32 %v2495, %v2565
        %v2586 = vadd.f32 %v2496, %v2561
        %v2587 = vadd.f32 %v2497, %v2565
        %v2588 = vadd.f32 %v2498, %v2561
        %v2589 = vadd.f32 %v2499, %v2565
        %v2590 = vadd.f32 %v2500, %v2561
        %v2591 = vadd.f32 %v2501, %v2565
        %v2592 = vadd.f32 %v2502, %v2561
        %v2593 = vadd.f32 %v2503, %v2565
        %v2594 = vadd.f32 %v2504, %v2561
        %v2595 = vadd.f32 %v2505, %v2565
        %v2596 = vadd.f32 %v2506, %v2561
        %v2597 = vadd.f32 %v2507, %v2565
        %v2598 = vadd.f32 %v2508, %v2561
        %v2599 = vadd.f32 %v2509, %v2565
        %v2600 = vadd.f32 %v2510, %v2561
        %v2601 = vadd.f32 %v2511, %v2565
        %v2602 = vadd.f32 %v2512, %v2561
        %v2603 = vadd.f32 %v2513, %v2565
        %v2604 = vadd.f32 %v2514, %v2561
        %v2605 = vadd.f32 %v2515, %v2565
        %v2606 = vadd.f32 %v2516, %v2561
        %v2607 = vadd.f32 %v2517, %v2565
        %v2608 = vadd.f32 %v2518, %v2561
        %v2609 = vadd.f32 %v2519, %v2565
        %v2610 = vadd.f32 %v2520, %v2561
        %v2611 = vadd.f32 %v2521, %v2565
        %v2612 = vadd.f32 %v2522, %v2561
        %v2613 = vadd.f32 %v2523, %v2565
        %v2614 = vadd.f32 %v2524, %v2561
        %v2615 = vadd.f32 %v2525, %v2565
        %v2616 = vadd.f32 %v2526, %v2561
        %v2617 = vadd.f32 %v2527, %v2565
        %v2618 = vadd.f32 %v2528, %v2561
        %v2619 = vadd.f32 %v2529, %v2565
        %v2620 = vadd.f32 %v2530, %v2561
        %v2621 = vadd.f32 %v2531, %v2565
        %v2622 = vadd.f32 %v2532, %v2561
        %v2623 = vadd.f32 %v2533, %v2565
        %v2624 = vadd.f32 %v2534, %v2561
        %v2625 = vadd.f32 %v2535, %v2565
        %v2626 = vadd.f32 %v2536, %v2561
        %v2627 = vadd.f32 %v2537, %v2565
        %v2628 = vadd.f32 %v2538, %v2561
        %v2629 = vadd.f32 %v2539, %v2565
        %v2630 = vadd.f32 %v2540, %v2561
        %v2631 = vadd.f32 %v2541, %v2565
        %v2632 = vadd.f32 %v2542, %v2561
        %v2633 = vadd.f32 %v2543, %v2565
        %v2634 = vadd.f32 %v2544, %v2561
        %v2635 = vadd.f32 %v2545, %v2565
        %v2636 = vadd.f32 %v2546, %v2561
        %v2637 = vadd.f32 %v2547, %v2565
        %v2638 = vadd.f32 %v2548, %v2561
        %v2639 = vadd.f32 %v2549, %v2565
        %v2640 = vadd.f32 %v2550, %v2561
        %v2641 = vadd.f32 %v2551, %v2565
        %v2642 = vadd.f32 %v2552, %v2561
        %v2643 = vadd.f32 %v2553, %v2565
        %v2644 = vadd.f32 %v2554, %v2561
        %v2645 = vadd.f32 %v2555, %v2565
        %v2646 = vmax.f32 %v2568, %v2569
        %v2647 = vmax.f32 %v2570, %v2571
        %v2648 = vmax.f32 %v2572, %v2573
        %v2649 = vmax.f32 %v2574, %v2575
        %v2650 = vmax.f32 %v2576, %v2577
        %v2651 = vmax.f32 %v2578, %v2579
        %v2652 = vmax.f32 %v2580, %v2581
        %v2653 = vmax.f32 %v2582, %v2583
        %v2654 = vmax.f32 %v2584, %v2585
        %v2655 = vmax.f32 %v2586, %v2587
        %v2656 = vmax.f32 %v2588, %v2589
        %v2657 = vmax.f32 %v2590, %v2591
        %v2658 = vmax.f32 %v2592, %v2593
        %v2659 = vmax.f32 %v2594, %v2595
        %v2660 = vmax.f32 %v2596, %v2597
        %v2661 = vmax.f32 %v2598, %v2599
        %v2662 = vmax.f32 %v2600, %v2601
        %v2663 = vmax.f32 %v2602, %v2603
        %v2664 = vmax.f32 %v2604, %v2605
        %v2665 = vmax.f32 %v2606, %v2607
        %v2666 = vmax.f32 %v2608, %v2609
        %v2667 = vmax.f32 %v2610, %v2611
        %v2668 = vmax.f32 %v2612, %v2613
        %v2669 = vmax.f32 %v2614, %v2615
        %v2670 = vmax.f32 %v2616, %v2617
        %v2671 = vmax.f32 %v2618, %v2619
        %v2672 = vmax.f32 %v2620, %v2621
        %v2673 = vmax.f32 %v2622, %v2623
        %v2674 = vmax.f32 %v2624, %v2625
        %v2675 = vmax.f32 %v2626, %v2627
        %v2676 = vmax.f32 %v2628, %v2629
        %v2677 = vmax.f32 %v2630, %v2631
        %v2678 = vmax.f32 %v2632, %v2633
        %v2679 = vmax.f32 %v2634, %v2635
        %v2680 = vmax.f32 %v2636, %v2637
        %v2681 = vmax.f32 %v2638, %v2639
        %v2682 = vmax.f32 %v2640, %v2641
        %v2683 = vmax.f32 %v2642, %v2643
        %v2684 = vmax.f32 %v2644, %v2645
        %2685 = vst [vmem:[#allocation2] sm:$0xff] %v2646
        %2686 = vst [vmem:[#allocation2 + $0x8] sm:$0xff] %v2647
        %2687 = vst [vmem:[#allocation2 + $0x10] sm:$0xff] %v2648
        %2688 = vst [vmem:[#allocation2 + $0x18] sm:$0xff] %v2649
        %2689 = vst [vmem:[#allocation2 + $0x20] sm:$0xff] %v2650
        %2690 = vst [vmem:[#allocation2 + $0x28] sm:$0xff] %v2651
        %2691 = vst [vmem:[#allocation2 + $0x30] sm:$0xff] %v2652
        %2692 = vst [vmem:[#allocation2 + $0x38] sm:$0xff] %v2653
        %2693 = vst [vmem:[#allocation2 + $0x40] sm:$0xff] %v2654
        %2694 = vst [vmem:[#allocation2 + $0x48] sm:$0xff] %v2655
        %2695 = vst [vmem:[#allocation2 + $0x50] sm:$0xff] %v2656
        %2696 = vst [vmem:[#allocation2 + $0x58] sm:$0xff] %v2657
        %2697 = vst [vmem:[#allocation2 + $0x60] sm:$0xff] %v2658
        %2698 = vst [vmem:[#allocation2 + $0x68] sm:$0xff] %v2659
        %2699 = vst [vmem:[#allocation2 + $0x70] sm:$0xff] %v2660
        %2700 = vst [vmem:[#allocation2 + $0x78] sm:$0xff] %v2661
        %2701 = vst [vmem:[#allocation2 + $0x80] sm:$0xff] %v2662
        %2702 = vst [vmem:[#allocation2 + $0x88] sm:$0xff] %v2663
        %2703 = vst [vmem:[#allocation2 + $0x90] sm:$0xff] %v2664
        %2704 = vst [vmem:[#allocation2 + $0x98] sm:$0xff] %v2665
        %2705 = vst [vmem:[#allocation2 + $0xa0] sm:$0xff] %v2666
        %2706 = vst [vmem:[#allocation2 + $0xa8] sm:$0xff] %v2667
        %2707 = vst [vmem:[#allocation2 + $0xb0] sm:$0xff] %v2668
        %2708 = vst [vmem:[#allocation2 + $0xb8] sm:$0xff] %v2669
        %2709 = vst [vmem:[#allocation2 + $0xc0] sm:$0xff] %v2670
        %2710 = vst [vmem:[#allocation2 + $0xc8] sm:$0xff] %v2671
        %2711 = vst [vmem:[#allocation2 + $0xd0] sm:$0xff] %v2672
        %2712 = vst [vmem:[#allocation2 + $0xd8] sm:$0xff] %v2673
        %2713 = vst [vmem:[#allocation2 + $0xe0] sm:$0xff] %v2674
        %2714 = vst [vmem:[#allocation2 + $0xe8] sm:$0xff] %v2675
        %2715 = vst [vmem:[#allocation2 + $0xf0] sm:$0xff] %v2676
        %2716 = vst [vmem:[#allocation2 + $0xf8] sm:$0xff] %v2677
        %2717 = vst [vmem:[#allocation2 + $0x100] sm:$0xff] %v2678
        %2718 = vst [vmem:[#allocation2 + $0x108] sm:$0xff] %v2679
        %2719 = vst [vmem:[#allocation2 + $0x110] sm:$0xff] %v2680
        %2720 = vst [vmem:[#allocation2 + $0x118] sm:$0xff] %v2681
        %2721 = vst [vmem:[#allocation2 + $0x120] sm:$0xff] %v2682
        %2722 = vst [vmem:[#allocation2 + $0x128] sm:$0xff] %v2683
        %2723 = vst [vmem:[#allocation2 + $0x130] sm:$0xff] %v2684
        %v2724 = vld [vmem:[#allocation2] ss:$2 sm:$0xff]
        %s2725 = scalar_lea.vmem [#allocation2], 16
        %v2726 = vld [vmem:[%s2725] ss:$2 sm:$0xff]
        %s2727 = scalar_lea.vmem [#allocation2], 32
        %v2728 = vld [vmem:[%s2727] ss:$2 sm:$0xff]
        %s2729 = scalar_lea.vmem [#allocation2], 48
        %v2730 = vld [vmem:[%s2729] ss:$2 sm:$0xff]
        %s2731 = scalar_lea.vmem [#allocation2], 64
        %v2732 = vld [vmem:[%s2731] ss:$2 sm:$0xff]
        %s2733 = scalar_lea.vmem [#allocation2], 80
        %v2734 = vld [vmem:[%s2733] ss:$2 sm:$0xff]
        %s2735 = scalar_lea.vmem [#allocation2], 96
        %v2736 = vld [vmem:[%s2735] ss:$2 sm:$0xff]
        %s2737 = scalar_lea.vmem [#allocation2], 112
        %v2738 = vld [vmem:[%s2737] ss:$2 sm:$0xff]
        %s2739 = scalar_lea.vmem [#allocation2], 128
        %v2740 = vld [vmem:[%s2739] ss:$2 sm:$0xff]
        %s2741 = scalar_lea.vmem [#allocation2], 144
        %v2742 = vld [vmem:[%s2741] ss:$2 sm:$0xff]
        %s2743 = scalar_lea.vmem [#allocation2], 160
        %v2744 = vld [vmem:[%s2743] ss:$2 sm:$0xff]
        %s2745 = scalar_lea.vmem [#allocation2], 176
        %v2746 = vld [vmem:[%s2745] ss:$2 sm:$0xff]
        %s2747 = scalar_lea.vmem [#allocation2], 192
        %v2748 = vld [vmem:[%s2747] ss:$2 sm:$0xff]
        %s2749 = scalar_lea.vmem [#allocation2], 208
        %v2750 = vld [vmem:[%s2749] ss:$2 sm:$0xff]
        %s2751 = scalar_lea.vmem [#allocation2], 224
        %v2752 = vld [vmem:[%s2751] ss:$2 sm:$0xff]
        %s2753 = scalar_lea.vmem [#allocation2], 240
        %v2754 = vld [vmem:[%s2753] ss:$2 sm:$0xff]
        %s2755 = scalar_lea.vmem [#allocation2], 256
        %v2756 = vld [vmem:[%s2755] ss:$2 sm:$0xff]
        %s2757 = scalar_lea.vmem [#allocation2], 272
        %v2758 = vld [vmem:[%s2757] ss:$2 sm:$0xff]
        %s2759 = scalar_lea.vmem [#allocation2], 288
        %v2760 = vld [vmem:[%s2759] ss:$2 sm:$0xff]
        %s2761 = scalar_lea.vmem [#allocation2], 304
        %v2762 = vld [vmem:[%s2761] ss:$2 sm:$0xf]
        %s2763 = scalar_lea.vmem [#allocation2], 1
        %v2764 = vld [vmem:[%s2763] ss:$2 sm:$0xff]
        %s2765 = scalar_lea.vmem [#allocation2], 17
        %v2766 = vld [vmem:[%s2765] ss:$2 sm:$0xff]
        %s2767 = scalar_lea.vmem [#allocation2], 33
        %v2768 = vld [vmem:[%s2767] ss:$2 sm:$0xff]
        %s2769 = scalar_lea.vmem [#allocation2], 49
        %v2770 = vld [vmem:[%s2769] ss:$2 sm:$0xff]
        %s2771 = scalar_lea.vmem [#allocation2], 65
        %v2772 = vld [vmem:[%s2771] ss:$2 sm:$0xff]
        %s2773 = scalar_lea.vmem [#allocation2], 81
        %v2774 = vld [vmem:[%s2773] ss:$2 sm:$0xff]
        %s2775 = scalar_lea.vmem [#allocation2], 97
        %v2776 = vld [vmem:[%s2775] ss:$2 sm:$0xff]
        %s2777 = scalar_lea.vmem [#allocation2], 113
        %v2778 = vld [vmem:[%s2777] ss:$2 sm:$0xff]
        %s2779 = scalar_lea.vmem [#allocation2], 129
        %v2780 = vld [vmem:[%s2779] ss:$2 sm:$0xff]
        %s2781 = scalar_lea.vmem [#allocation2], 145
        %v2782 = vld [vmem:[%s2781] ss:$2 sm:$0xff]
        %s2783 = scalar_lea.vmem [#allocation2], 161
        %v2784 = vld [vmem:[%s2783] ss:$2 sm:$0xff]
        %s2785 = scalar_lea.vmem [#allocation2], 177
        %v2786 = vld [vmem:[%s2785] ss:$2 sm:$0xff]
        %s2787 = scalar_lea.vmem [#allocation2], 193
        %v2788 = vld [vmem:[%s2787] ss:$2 sm:$0xff]
        %s2789 = scalar_lea.vmem [#allocation2], 209
        %v2790 = vld [vmem:[%s2789] ss:$2 sm:$0xff]
        %s2791 = scalar_lea.vmem [#allocation2], 225
        %v2792 = vld [vmem:[%s2791] ss:$2 sm:$0xff]
        %s2793 = scalar_lea.vmem [#allocation2], 241
        %v2794 = vld [vmem:[%s2793] ss:$2 sm:$0xff]
        %s2795 = scalar_lea.vmem [#allocation2], 257
        %v2796 = vld [vmem:[%s2795] ss:$2 sm:$0xff]
        %s2797 = scalar_lea.vmem [#allocation2], 273
        %v2798 = vld [vmem:[%s2797] ss:$2 sm:$0xff]
        %s2799 = scalar_lea.vmem [#allocation2], 289
        %v2800 = vld [vmem:[%s2799] ss:$2 sm:$0xff]
        %s2801 = scalar_lea.vmem [#allocation2], 305
        %v2802 = vld [vmem:[%s2801] ss:$2 sm:$0xf]
        %v2803 = vmax.f32 %v2724, %v2764
        %v2804 = vmax.f32 %v2726, %v2766
        %v2805 = vmax.f32 %v2728, %v2768
        %v2806 = vmax.f32 %v2730, %v2770
        %v2807 = vmax.f32 %v2732, %v2772
        %v2808 = vmax.f32 %v2734, %v2774
        %v2809 = vmax.f32 %v2736, %v2776
        %v2810 = vmax.f32 %v2738, %v2778
        %v2811 = vmax.f32 %v2740, %v2780
        %v2812 = vmax.f32 %v2742, %v2782
        %v2813 = vmax.f32 %v2744, %v2784
        %v2814 = vmax.f32 %v2746, %v2786
        %v2815 = vmax.f32 %v2748, %v2788
        %v2816 = vmax.f32 %v2750, %v2790
        %v2817 = vmax.f32 %v2752, %v2792
        %v2818 = vmax.f32 %v2754, %v2794
        %v2819 = vmax.f32 %v2756, %v2796
        %v2820 = vmax.f32 %v2758, %v2798
        %v2821 = vmax.f32 %v2760, %v2800
        %v2822 = vmax.f32 %v2762, %v2802
        %v2823 = vpack.c.bf16 %v2804, %v2803
        %v2824 = vpack.c.bf16 %v2806, %v2805
        %v2825 = vpack.c.bf16 %v2808, %v2807
        %v2826 = vpack.c.bf16 %v2810, %v2809
        %v2827 = vpack.c.bf16 %v2812, %v2811
        %v2828 = vpack.c.bf16 %v2814, %v2813
        %v2829 = vpack.c.bf16 %v2816, %v2815
        %v2830 = vpack.c.bf16 %v2818, %v2817
        %v2831 = vpack.c.bf16 %v2820, %v2819
        %v2832 = vpack.c.bf16 %v2821, %v2821
        %v2833 = vld [vmem:[%s3] sm:$0xff]
        %v2834 = vld [vmem:[%s3 + $0x8] sm:$0xff]
        %v2835 = vld [vmem:[%s3 + $0x10] sm:$0xff]
        %v2836 = vld [vmem:[%s3 + $0x18] sm:$0xff]
        %v2837 = vld [vmem:[%s3 + $0x20] sm:$0xff]
        %v2838 = vld [vmem:[%s3 + $0x28] sm:$0xff]
        %v2839 = vld [vmem:[%s3 + $0x30] sm:$0xff]
        %v2840 = vld [vmem:[%s3 + $0x38] sm:$0xff]
        %v2841 = vld [vmem:[%s3 + $0x40] sm:$0xff]
        %v2842 = vld [vmem:[%s3 + $0x48] sm:$0xff]
        %v2843 = vld [vmem:[%s3 + $0x50] sm:$0xff]
        %v2844 = vld [vmem:[%s3 + $0x58] sm:$0xff]
        %v2845 = vld [vmem:[%s3 + $0x60] sm:$0xff]
        %v2846 = vld [vmem:[%s3 + $0x68] sm:$0xff]
        %v2847 = vld [vmem:[%s3 + $0x70] sm:$0xff]
        %v2848 = vld [vmem:[%s3 + $0x78] sm:$0xff]
        %v2849 = vpack.c.bf16 %v2822, %v2821
        %s2850 = scalar_lea.vmem %s3, 128
        %v2851 = vld [vmem:[%s2850] sm:$0xff]
        %v2852 = vld [vmem:[%s2850 + $0x8] sm:$0xff]
        %v2853 = vld [vmem:[%s2850 + $0x10] sm:$0xff]
        %v2854 = vld [vmem:[%s2850 + $0x18] sm:$0xff]
        %v2855 = vld [vmem:[%s2850 + $0x20] sm:$0xff]
        %v2856 = vld [vmem:[%s2850 + $0x28] sm:$0xff]
        %v2857 = vld [vmem:[%s2850 + $0x30] sm:$0xff]
        %v2858 = vld [vmem:[%s2850 + $0x38] sm:$0xff]
        %v2859 = vld [vmem:[%s2850 + $0x40] sm:$0xff]
        %v2860 = vld [vmem:[%s2850 + $0x48] sm:$0xff]
        %v2861 = vld [vmem:[%s2850 + $0x50] sm:$0xff]
        %v2862 = vld [vmem:[%s2850 + $0x58] sm:$0xff]
        %v2863 = vld [vmem:[%s2850 + $0x60] sm:$0xff]
        %v2864 = vld [vmem:[%s2850 + $0x68] sm:$0xff]
        %v2865 = vld [vmem:[%s2850 + $0x70] sm:$0xff]
        %v2866 = vld [vmem:[%s2850 + $0x78] sm:$0xff]
        %vm2867 = vsmask.f32 7424
        %v2869 = vshrl.u32 %v2823, 16
        %v2871 = vshll.u32 %v2823, 16
        %v2873 = vrot.slane %v2871, 1
        %v2874 = vor.u32 %v2869, %v2873
        %v2876 = vshll.u32 %v2824, 16
        %v2878 = vrot.slane %v2876, 1
        %v2879 = vsel %vm2867, %v2874, %v2878
        %v2880 = vshrl.u32 %v2824, 16
        %v2882 = vor.u32 %v2880, %v2878
        %v2884 = vshll.u32 %v2825, 16
        %v2886 = vrot.slane %v2884, 1
        %v2887 = vsel %vm2867, %v2882, %v2886
        %v2888 = vshrl.u32 %v2825, 16
        %v2890 = vor.u32 %v2888, %v2886
        %v2892 = vshll.u32 %v2826, 16
        %v2894 = vrot.slane %v2892, 1
        %v2895 = vsel %vm2867, %v2890, %v2894
        %v2896 = vshrl.u32 %v2826, 16
        %v2898 = vor.u32 %v2896, %v2894
        %v2900 = vshll.u32 %v2827, 16
        %v2902 = vrot.slane %v2900, 1
        %v2903 = vsel %vm2867, %v2898, %v2902
        %v2904 = vshrl.u32 %v2827, 16
        %v2906 = vor.u32 %v2904, %v2902
        %v2908 = vshll.u32 %v2828, 16
        %v2910 = vrot.slane %v2908, 1
        %v2911 = vsel %vm2867, %v2906, %v2910
        %v2912 = vshrl.u32 %v2828, 16
        %v2914 = vor.u32 %v2912, %v2910
        %v2916 = vshll.u32 %v2829, 16
        %v2918 = vrot.slane %v2916, 1
        %v2919 = vsel %vm2867, %v2914, %v2918
        %v2920 = vshrl.u32 %v2829, 16
        %v2922 = vor.u32 %v2920, %v2918
        %v2924 = vshll.u32 %v2830, 16
        %v2926 = vrot.slane %v2924, 1
        %v2927 = vsel %vm2867, %v2922, %v2926
        %v2928 = vshrl.u32 %v2830, 16
        %v2930 = vor.u32 %v2928, %v2926
        %v2932 = vshll.u32 %v2831, 16
        %v2934 = vrot.slane %v2932, 1
        %v2935 = vsel %vm2867, %v2930, %v2934
        %v2936 = vshrl.u32 %v2831, 16
        %v2938 = vor.u32 %v2936, %v2934
        %v2940 = vshll.u32 %v2849, 16
        %v2942 = vrot.slane %v2940, 1
        %v2943 = vsel %vm2867, %v2938, %v2942
        %v2944 = vshrl.u32 %v2849, 16
        %v2946 = vor.u32 %v2944, %v2942
        %v2973 = vunpack.c.l.b16 %v2851
        %v2974 = vunpack.c.h.b16 %v2851
        %v2975 = vunpack.c.l.b16 %v2852
        %v2976 = vunpack.c.h.b16 %v2852
        %v2977 = vunpack.c.l.b16 %v2853
        %v2978 = vunpack.c.h.b16 %v2853
        %v2979 = vunpack.c.l.b16 %v2854
        %v2980 = vunpack.c.h.b16 %v2854
        %v2981 = vunpack.c.l.b16 %v2855
        %v2982 = vunpack.c.h.b16 %v2855
        %v2983 = vunpack.c.l.b16 %v2856
        %v2984 = vunpack.c.h.b16 %v2856
        %v2985 = vunpack.c.l.b16 %v2857
        %v2986 = vunpack.c.h.b16 %v2857
        %v2987 = vunpack.c.l.b16 %v2858
        %v2988 = vunpack.c.h.b16 %v2858
        %v2989 = vunpack.c.l.b16 %v2859
        %v2990 = vunpack.c.h.b16 %v2859
        %v2991 = vunpack.c.l.b16 %v2860
        %v2992 = vunpack.c.h.b16 %v2860
        %v2993 = vunpack.c.l.b16 %v2861
        %v2994 = vunpack.c.h.b16 %v2861
        %v2995 = vunpack.c.l.b16 %v2862
        %v2996 = vunpack.c.h.b16 %v2862
        %v2997 = vunpack.c.l.b16 %v2863
        %v2998 = vunpack.c.h.b16 %v2863
        %v2999 = vunpack.c.l.b16 %v2864
        %v3000 = vunpack.c.h.b16 %v2864
        %v3001 = vunpack.c.l.b16 %v2865
        %v3002 = vunpack.c.h.b16 %v2865
        %v3003 = vunpack.c.l.b16 %v2866
        %v3004 = vunpack.c.h.b16 %v2866
        %v3005 = vpack.c.b16 %v2975, %v2973
        %v3006 = vpack.c.b16 %v2976, %v2974
        %v3007 = vpack.c.b16 %v2979, %v2977
        %v3008 = vpack.c.b16 %v2980, %v2978
        %v3009 = vpack.c.b16 %v2983, %v2981
        %v3010 = vpack.c.b16 %v2984, %v2982
        %v3011 = vpack.c.b16 %v2987, %v2985
        %v3012 = vpack.c.b16 %v2988, %v2986
        %v3013 = vpack.c.b16 %v2991, %v2989
        %v3014 = vpack.c.b16 %v2992, %v2990
        %v3015 = vpack.c.b16 %v2995, %v2993
        %v3016 = vpack.c.b16 %v2996, %v2994
        %v3017 = vpack.c.b16 %v2999, %v2997
        %v3018 = vpack.c.b16 %v3000, %v2998
        %v3019 = vpack.c.b16 %v3003, %v3001
        %v3020 = vpack.c.b16 %v3004, %v3002
        %3037 = vmatprep.subr.bf16.mxu0 %v3006
        %3038 = vmatpush1.bf16.msra.mxu0 %v3005
        %3039 = vmatprep.subr.bf16.mxu0 %v3008
        %3040 = vmatpush1.bf16.msra.mxu0 %v3007
        %3041 = vmatprep.subr.bf16.mxu0 %v3010
        %3042 = vmatpush1.bf16.msra.mxu0 %v3009
        %3043 = vmatprep.subr.bf16.mxu0 %v3012
        %3044 = vmatpush1.bf16.msra.mxu0 %v3011
        %3045 = vmatprep.subr.bf16.mxu0 %v3014
        %3046 = vmatpush1.bf16.msra.mxu0 %v3013
        %3047 = vmatprep.subr.bf16.mxu0 %v3016
        %3048 = vmatpush1.bf16.msra.mxu0 %v3015
        %3049 = vmatprep.subr.bf16.mxu0 %v3018
        %3050 = vmatpush1.bf16.msra.mxu0 %v3017
        %3051 = vmatprep.subr.bf16.mxu0 %v3020
        %3052 = vmatpush1.bf16.msra.mxu0 %v3019
        %3053 = vmatprep.subr.bf16.mxu0 0
        %3054 = vmatpush1.bf16.msra.mxu0 0
        %3055 = vmatprep.subr.bf16.mxu0 0
        %3056 = vmatpush1.bf16.msra.mxu0 0
        %3057 = vmatprep.subr.bf16.mxu0 0
        %3058 = vmatpush1.bf16.msra.mxu0 0
        %3059 = vmatprep.subr.bf16.mxu0 0
        %3060 = vmatpush1.bf16.msra.mxu0 0
        %3061 = vmatprep.subr.bf16.mxu0 0
        %3062 = vmatpush1.bf16.msra.mxu0 0
        %3063 = vmatprep.subr.bf16.mxu0 0
        %3064 = vmatpush1.bf16.msra.mxu0 0
        %3065 = vmatprep.subr.bf16.mxu0 0
        %3066 = vmatpush1.bf16.msra.mxu0 0
        %3067 = vmatprep.subr.bf16.mxu0 0
        %3068 = vmatpush1.bf16.msra.mxu0 0
        %3069 = vmatprep.mubr.bf16.mxu0 0
        %3070 = vmatmul.mubr.bf16.gmra.mrb[0].mxu0 %v2879
        %v3071 = vpop.f32.mrb[0].mxu0
        %v3072 = vadd.f32 0.0, %v3071
        %v3073 = vpop.f32.mrb[0].mxu0
        %v3074 = vadd.f32 0.0, %v3073
        %v3075 = vpop.f32.mrb[0].mxu0
        %v3076 = vadd.f32 0.0, %v3075
        %v3077 = vpop.f32.mrb[0].mxu0
        %v3078 = vadd.f32 0.0, %v3077
        %3079 = vmatprep.mubr.bf16.mxu0 0
        %3080 = vmatmul.mubr.bf16.gmra.mrb[0].mxu0 %v2887
        %v3081 = vpop.f32.mrb[0].mxu0
        %v3082 = vadd.f32 0.0, %v3081
        %v3083 = vpop.f32.mrb[0].mxu0
        %v3084 = vadd.f32 0.0, %v3083
        %v3085 = vpop.f32.mrb[0].mxu0
        %v3086 = vadd.f32 0.0, %v3085
        %v3087 = vpop.f32.mrb[0].mxu0
        %v3088 = vadd.f32 0.0, %v3087
        %3089 = vmatprep.mubr.bf16.mxu0 0
        %3090 = vmatmul.mubr.bf16.gmra.mrb[0].mxu0 %v2895
        %v3091 = vpop.f32.mrb[0].mxu0
        %v3092 = vadd.f32 0.0, %v3091
        %v3093 = vpop.f32.mrb[0].mxu0
        %v3094 = vadd.f32 0.0, %v3093
        %v3095 = vpop.f32.mrb[0].mxu0
        %v3096 = vadd.f32 0.0, %v3095
        %v3097 = vpop.f32.mrb[0].mxu0
        %v3098 = vadd.f32 0.0, %v3097
        %3099 = vmatprep.mubr.bf16.mxu0 0
        %3100 = vmatmul.mubr.bf16.gmra.mrb[0].mxu0 %v2903
        %v3101 = vpop.f32.mrb[0].mxu0
        %v3102 = vadd.f32 0.0, %v3101
        %v3103 = vpop.f32.mrb[0].mxu0
        %v3104 = vadd.f32 0.0, %v3103
        %v3105 = vpop.f32.mrb[0].mxu0
        %v3106 = vadd.f32 0.0, %v3105
        %v3107 = vpop.f32.mrb[0].mxu0
        %v3108 = vadd.f32 0.0, %v3107
        %3109 = vmatprep.mubr.bf16.mxu0 0
        %3110 = vmatmul.mubr.bf16.gmra.mrb[0].mxu0 %v2911
        %v3111 = vpop.f32.mrb[0].mxu0
        %v3112 = vadd.f32 0.0, %v3111
        %v3113 = vpop.f32.mrb[0].mxu0
        %v3114 = vadd.f32 0.0, %v3113
        %v3115 = vpop.f32.mrb[0].mxu0
        %v3116 = vadd.f32 0.0, %v3115
        %v3117 = vpop.f32.mrb[0].mxu0
        %v3118 = vadd.f32 0.0, %v3117
        %3119 = vmatprep.mubr.bf16.mxu0 0
        %3120 = vmatmul.mubr.bf16.gmra.mrb[0].mxu0 %v2919
        %v3121 = vpop.f32.mrb[0].mxu0
        %v3122 = vadd.f32 0.0, %v3121
        %v3123 = vpop.f32.mrb[0].mxu0
        %v3124 = vadd.f32 0.0, %v3123
        %v3125 = vpop.f32.mrb[0].mxu0
        %v3126 = vadd.f32 0.0, %v3125
        %v3127 = vpop.f32.mrb[0].mxu0
        %v3128 = vadd.f32 0.0, %v3127
        %3129 = vmatprep.mubr.bf16.mxu0 0
        %3130 = vmatmul.mubr.bf16.gmra.mrb[0].mxu0 %v2927
        %v3131 = vpop.f32.mrb[0].mxu0
        %v3132 = vadd.f32 0.0, %v3131
        %v3133 = vpop.f32.mrb[0].mxu0
        %v3134 = vadd.f32 0.0, %v3133
        %v3135 = vpop.f32.mrb[0].mxu0
        %v3136 = vadd.f32 0.0, %v3135
        %v3137 = vpop.f32.mrb[0].mxu0
        %v3138 = vadd.f32 0.0, %v3137
        %3139 = vmatprep.mubr.bf16.mxu0 0
        %3140 = vmatmul.mubr.bf16.gmra.mrb[0].mxu0 %v2935
        %v3141 = vpop.f32.mrb[0].mxu0
        %v3142 = vadd.f32 0.0, %v3141
        %v3143 = vpop.f32.mrb[0].mxu0
        %v3144 = vadd.f32 0.0, %v3143
        %v3145 = vpop.f32.mrb[0].mxu0
        %v3146 = vadd.f32 0.0, %v3145
        %v3147 = vpop.f32.mrb[0].mxu0
        %v3148 = vadd.f32 0.0, %v3147
        %3149 = vmatprep.mubr.bf16.mxu0 0
        %3150 = vmatmul.mubr.bf16.gmra.mrb[0].mxu0 %v2943
        %v3151 = vpop.f32.mrb[0].mxu0
        %v3152 = vadd.f32 0.0, %v3151
        %v3153 = vpop.f32.mrb[0].mxu0
        %v3154 = vadd.f32 0.0, %v3153
        %v3155 = vpop.f32.mrb[0].mxu0
        %v3156 = vadd.f32 0.0, %v3155
        %v3157 = vpop.f32.mrb[0].mxu0
        %v3158 = vadd.f32 0.0, %v3157
        %3159 = vmatprep.mubr.bf16.mxu0 0
        %3160 = vmatmul.mubr.bf16.gmra.mrb[0].mxu0 %v2946
        %v3161 = vpop.f32.mrb[0].mxu0
        %v3162 = vadd.f32 0.0, %v3161
        %v3163 = vpop.f32.mrb[0].mxu0
        %v3164 = vadd.f32 0.0, %v3163
        %v3165 = vpop.f32.mrb[0].mxu0
        %v3166 = vpop.f32.mrb[0].mxu0
        %3167 = vdwg.mxu0
        %v3184 = vunpack.c.l.b16 %v2833
        %v3185 = vunpack.c.h.b16 %v2833
        %v3186 = vunpack.c.l.b16 %v2834
        %v3187 = vunpack.c.h.b16 %v2834
        %v3188 = vunpack.c.l.b16 %v2835
        %v3189 = vunpack.c.h.b16 %v2835
        %v3190 = vunpack.c.l.b16 %v2836
        %v3191 = vunpack.c.h.b16 %v2836
        %v3192 = vunpack.c.l.b16 %v2837
        %v3193 = vunpack.c.h.b16 %v2837
        %v3194 = vunpack.c.l.b16 %v2838
        %v3195 = vunpack.c.h.b16 %v2838
        %v3196 = vunpack.c.l.b16 %v2839
        %v3197 = vunpack.c.h.b16 %v2839
        %v3198 = vunpack.c.l.b16 %v2840
        %v3199 = vunpack.c.h.b16 %v2840
        %v3200 = vunpack.c.l.b16 %v2841
        %v3201 = vunpack.c.h.b16 %v2841
        %v3202 = vunpack.c.l.b16 %v2842
        %v3203 = vunpack.c.h.b16 %v2842
        %v3204 = vunpack.c.l.b16 %v2843
        %v3205 = vunpack.c.h.b16 %v2843
        %v3206 = vunpack.c.l.b16 %v2844
        %v3207 = vunpack.c.h.b16 %v2844
        %v3208 = vunpack.c.l.b16 %v2845
        %v3209 = vunpack.c.h.b16 %v2845
        %v3210 = vunpack.c.l.b16 %v2846
        %v3211 = vunpack.c.h.b16 %v2846
        %v3212 = vunpack.c.l.b16 %v2847
        %v3213 = vunpack.c.h.b16 %v2847
        %v3214 = vunpack.c.l.b16 %v2848
        %v3215 = vunpack.c.h.b16 %v2848
        %v3216 = vpack.c.b16 %v3186, %v3184
        %v3217 = vpack.c.b16 %v3187, %v3185
        %v3218 = vpack.c.b16 %v3190, %v3188
        %v3219 = vpack.c.b16 %v3191, %v3189
        %v3220 = vpack.c.b16 %v3194, %v3192
        %v3221 = vpack.c.b16 %v3195, %v3193
        %v3222 = vpack.c.b16 %v3198, %v3196
        %v3223 = vpack.c.b16 %v3199, %v3197
        %v3224 = vpack.c.b16 %v3202, %v3200
        %v3225 = vpack.c.b16 %v3203, %v3201
        %v3226 = vpack.c.b16 %v3206, %v3204
        %v3227 = vpack.c.b16 %v3207, %v3205
        %v3228 = vpack.c.b16 %v3210, %v3208
        %v3229 = vpack.c.b16 %v3211, %v3209
        %v3230 = vpack.c.b16 %v3214, %v3212
        %v3231 = vpack.c.b16 %v3215, %v3213
        %3248 = vmatprep.subr.bf16.mxu0 %v3217
        %3249 = vmatpush1.bf16.msra.mxu0 %v3216
        %3250 = vmatprep.subr.bf16.mxu0 %v3219
        %3251 = vmatpush1.bf16.msra.mxu0 %v3218
        %3252 = vmatprep.subr.bf16.mxu0 %v3221
        %3253 = vmatpush1.bf16.msra.mxu0 %v3220
        %3254 = vmatprep.subr.bf16.mxu0 %v3223
        %3255 = vmatpush1.bf16.msra.mxu0 %v3222
        %3256 = vmatprep.subr.bf16.mxu0 %v3225
        %3257 = vmatpush1.bf16.msra.mxu0 %v3224
        %3258 = vmatprep.subr.bf16.mxu0 %v3227
        %3259 = vmatpush1.bf16.msra.mxu0 %v3226
        %3260 = vmatprep.subr.bf16.mxu0 %v3229
        %3261 = vmatpush1.bf16.msra.mxu0 %v3228
        %3262 = vmatprep.subr.bf16.mxu0 %v3231
        %3263 = vmatpush1.bf16.msra.mxu0 %v3230
        %3264 = vmatprep.subr.bf16.mxu0 0
        %3265 = vmatpush1.bf16.msra.mxu0 0
        %3266 = vmatprep.subr.bf16.mxu0 0
        %3267 = vmatpush1.bf16.msra.mxu0 0
        %3268 = vmatprep.subr.bf16.mxu0 0
        %3269 = vmatpush1.bf16.msra.mxu0 0
        %3270 = vmatprep.subr.bf16.mxu0 0
        %3271 = vmatpush1.bf16.msra.mxu0 0
        %3272 = vmatprep.subr.bf16.mxu0 0
        %3273 = vmatpush1.bf16.msra.mxu0 0
        %3274 = vmatprep.subr.bf16.mxu0 0
        %3275 = vmatpush1.bf16.msra.mxu0 0
        %3276 = vmatprep.subr.bf16.mxu0 0
        %3277 = vmatpush1.bf16.msra.mxu0 0
        %3278 = vmatprep.subr.bf16.mxu0 0
        %3279 = vmatpush1.bf16.msra.mxu0 0
        %3280 = vmatprep.mubr.bf16.mxu0 0
        %3281 = vmatmul.mubr.bf16.gmra.mrb[0].mxu0 %v2823
        %v3282 = vpop.f32.mrb[0].mxu0
        %v3283 = vadd.f32 %v3072, %v3282
        %v3284 = vpop.f32.mrb[0].mxu0
        %v3285 = vadd.f32 %v3074, %v3284
        %v3286 = vpop.f32.mrb[0].mxu0
        %v3287 = vadd.f32 %v3076, %v3286
        %v3288 = vpop.f32.mrb[0].mxu0
        %v3289 = vadd.f32 %v3078, %v3288
        %3290 = vmatprep.mubr.bf16.mxu0 0
        %3291 = vmatmul.mubr.bf16.gmra.mrb[0].mxu0 %v2824
        %v3292 = vpop.f32.mrb[0].mxu0
        %v3293 = vadd.f32 %v3082, %v3292
        %v3294 = vpop.f32.mrb[0].mxu0
        %v3295 = vadd.f32 %v3084, %v3294
        %v3296 = vpop.f32.mrb[0].mxu0
        %v3297 = vadd.f32 %v3086, %v3296
        %v3298 = vpop.f32.mrb[0].mxu0
        %v3299 = vadd.f32 %v3088, %v3298
        %3300 = vmatprep.mubr.bf16.mxu0 0
        %3301 = vmatmul.mubr.bf16.gmra.mrb[0].mxu0 %v2825
        %v3302 = vpop.f32.mrb[0].mxu0
        %v3303 = vadd.f32 %v3092, %v3302
        %v3304 = vpop.f32.mrb[0].mxu0
        %v3305 = vadd.f32 %v3094, %v3304
        %v3306 = vpop.f32.mrb[0].mxu0
        %v3307 = vadd.f32 %v3096, %v3306
        %v3308 = vpop.f32.mrb[0].mxu0
        %v3309 = vadd.f32 %v3098, %v3308
        %3310 = vmatprep.mubr.bf16.mxu0 0
        %3311 = vmatmul.mubr.bf16.gmra.mrb[0].mxu0 %v2826
        %v3312 = vpop.f32.mrb[0].mxu0
        %v3313 = vadd.f32 %v3102, %v3312
        %v3314 = vpop.f32.mrb[0].mxu0
        %v3315 = vadd.f32 %v3104, %v3314
        %v3316 = vpop.f32.mrb[0].mxu0
        %v3317 = vadd.f32 %v3106, %v3316
        %v3318 = vpop.f32.mrb[0].mxu0
        %v3319 = vadd.f32 %v3108, %v3318
        %3320 = vmatprep.mubr.bf16.mxu0 0
        %3321 = vmatmul.mubr.bf16.gmra.mrb[0].mxu0 %v2827
        %v3322 = vpop.f32.mrb[0].mxu0
        %v3323 = vadd.f32 %v3112, %v3322
        %v3324 = vpop.f32.mrb[0].mxu0
        %v3325 = vadd.f32 %v3114, %v3324
        %v3326 = vpop.f32.mrb[0].mxu0
        %v3327 = vadd.f32 %v3116, %v3326
        %v3328 = vpop.f32.mrb[0].mxu0
        %v3329 = vadd.f32 %v3118, %v3328
        %3330 = vmatprep.mubr.bf16.mxu0 0
        %3331 = vmatmul.mubr.bf16.gmra.mrb[0].mxu0 %v2828
        %v3332 = vpop.f32.mrb[0].mxu0
        %v3333 = vadd.f32 %v3122, %v3332
        %v3334 = vpop.f32.mrb[0].mxu0
        %v3335 = vadd.f32 %v3124, %v3334
        %v3336 = vpop.f32.mrb[0].mxu0
        %v3337 = vadd.f32 %v3126, %v3336
        %v3338 = vpop.f32.mrb[0].mxu0
        %v3339 = vadd.f32 %v3128, %v3338
        %3340 = vmatprep.mubr.bf16.mxu0 0
        %3341 = vmatmul.mubr.bf16.gmra.mrb[0].mxu0 %v2829
        %v3342 = vpop.f32.mrb[0].mxu0
        %v3343 = vadd.f32 %v3132, %v3342
        %v3344 = vpop.f32.mrb[0].mxu0
        %v3345 = vadd.f32 %v3134, %v3344
        %v3346 = vpop.f32.mrb[0].mxu0
        %v3347 = vadd.f32 %v3136, %v3346
        %v3348 = vpop.f32.mrb[0].mxu0
        %v3349 = vadd.f32 %v3138, %v3348
        %3350 = vmatprep.mubr.bf16.mxu0 0
        %3351 = vmatmul.mubr.bf16.gmra.mrb[0].mxu0 %v2830
        %v3352 = vpop.f32.mrb[0].mxu0
        %v3353 = vadd.f32 %v3142, %v3352
        %v3354 = vpop.f32.mrb[0].mxu0
        %v3355 = vadd.f32 %v3144, %v3354
        %v3356 = vpop.f32.mrb[0].mxu0
        %v3357 = vadd.f32 %v3146, %v3356
        %v3358 = vpop.f32.mrb[0].mxu0
        %v3359 = vadd.f32 %v3148, %v3358
        %3360 = vmatprep.mubr.bf16.mxu0 0
        %3361 = vmatmul.mubr.bf16.gmra.mrb[0].mxu0 %v2831
        %v3362 = vpop.f32.mrb[0].mxu0
        %v3363 = vadd.f32 %v3152, %v3362
        %v3364 = vpop.f32.mrb[0].mxu0
        %v3365 = vadd.f32 %v3154, %v3364
        %v3366 = vpop.f32.mrb[0].mxu0
        %v3367 = vadd.f32 %v3156, %v3366
        %v3368 = vpop.f32.mrb[0].mxu0
        %v3369 = vadd.f32 %v3158, %v3368
        %3370 = vmatprep.mubr.bf16.mxu0 0
        %3371 = vmatmul.mubr.bf16.gmra.mrb[0].mxu0 %v2832
        %v3372 = vpop.f32.mrb[0].mxu0
        %v3373 = vadd.f32 %v3162, %v3372
        %v3374 = vpop.f32.mrb[0].mxu0
        %v3375 = vadd.f32 %v3164, %v3374
        %v3376 = vpop.f32.mrb[0].mxu0
        %v3377 = vpop.f32.mrb[0].mxu0
        %3378 = vdwg.mxu0
        %s3379 = scalar_lea.vmem %s3, 256
        %v3380 = vld [vmem:[%s3379] sm:$0xff]
        %v3381 = vld [vmem:[%s3379 + $0x8] sm:$0xff]
        %v3382 = vld [vmem:[%s3379 + $0x10] sm:$0xff]
        %v3383 = vld [vmem:[%s3379 + $0x18] sm:$0xff]
        %v3384 = vld [vmem:[%s3379 + $0x20] sm:$0xff]
        %v3385 = vld [vmem:[%s3379 + $0x28] sm:$0xff]
        %v3386 = vld [vmem:[%s3379 + $0x30] sm:$0xff]
        %v3387 = vld [vmem:[%s3379 + $0x38] sm:$0xff]
        %v3388 = vld [vmem:[%s3379 + $0x40] sm:$0xff]
        %v3389 = vld [vmem:[%s3379 + $0x48] sm:$0xff]
        %v3390 = vld [vmem:[%s3379 + $0x50] sm:$0xff]
        %v3391 = vld [vmem:[%s3379 + $0x58] sm:$0xff]
        %v3392 = vld [vmem:[%s3379 + $0x60] sm:$0xff]
        %v3393 = vld [vmem:[%s3379 + $0x68] sm:$0xff]
        %v3394 = vld [vmem:[%s3379 + $0x70] sm:$0xff]
        %v3395 = vld [vmem:[%s3379 + $0x78] sm:$0xff]
        %vm3406 = vcmask 1046528
        %v3407 = vrot.slane %v2823, 1
        %v3408 = vrot.slane %v2824, 1
        %v3409 = vsel %vm3406, %v3407, %v3408
        %v3410 = vrot.slane %v2825, 1
        %v3411 = vsel %vm3406, %v3408, %v3410
        %v3412 = vrot.slane %v2826, 1
        %v3413 = vsel %vm3406, %v3410, %v3412
        %v3414 = vrot.slane %v2827, 1
        %v3415 = vsel %vm3406, %v3412, %v3414
        %v3416 = vrot.slane %v2828, 1
        %v3417 = vsel %vm3406, %v3414, %v3416
        %v3418 = vrot.slane %v2829, 1
        %v3419 = vsel %vm3406, %v3416, %v3418
        %v3420 = vrot.slane %v2830, 1
        %v3421 = vsel %vm3406, %v3418, %v3420
        %v3422 = vrot.slane %v2831, 1
        %v3423 = vsel %vm3406, %v3420, %v3422
        %v3424 = vrot.slane %v2849, 1
        %v3425 = vsel %vm3406, %v3422, %v3424
        %v3452 = vunpack.c.l.b16 %v3380
        %v3453 = vunpack.c.h.b16 %v3380
        %v3454 = vunpack.c.l.b16 %v3381
        %v3455 = vunpack.c.h.b16 %v3381
        %v3456 = vunpack.c.l.b16 %v3382
        %v3457 = vunpack.c.h.b16 %v3382
        %v3458 = vunpack.c.l.b16 %v3383
        %v3459 = vunpack.c.h.b16 %v3383
        %v3460 = vunpack.c.l.b16 %v3384
        %v3461 = vunpack.c.h.b16 %v3384
        %v3462 = vunpack.c.l.b16 %v3385
        %v3463 = vunpack.c.h.b16 %v3385
        %v3464 = vunpack.c.l.b16 %v3386
        %v3465 = vunpack.c.h.b16 %v3386
        %v3466 = vunpack.c.l.b16 %v3387
        %v3467 = vunpack.c.h.b16 %v3387
        %v3468 = vunpack.c.l.b16 %v3388
        %v3469 = vunpack.c.h.b16 %v3388
        %v3470 = vunpack.c.l.b16 %v3389
        %v3471 = vunpack.c.h.b16 %v3389
        %v3472 = vunpack.c.l.b16 %v3390
        %v3473 = vunpack.c.h.b16 %v3390
        %v3474 = vunpack.c.l.b16 %v3391
        %v3475 = vunpack.c.h.b16 %v3391
        %v3476 = vunpack.c.l.b16 %v3392
        %v3477 = vunpack.c.h.b16 %v3392
        %v3478 = vunpack.c.l.b16 %v3393
        %v3479 = vunpack.c.h.b16 %v3393
        %v3480 = vunpack.c.l.b16 %v3394
        %v3481 = vunpack.c.h.b16 %v3394
        %v3482 = vunpack.c.l.b16 %v3395
        %v3483 = vunpack.c.h.b16 %v3395
        %v3484 = vpack.c.b16 %v3454, %v3452
        %v3485 = vpack.c.b16 %v3455, %v3453
        %v3486 = vpack.c.b16 %v3458, %v3456
        %v3487 = vpack.c.b16 %v3459, %v3457
        %v3488 = vpack.c.b16 %v3462, %v3460
        %v3489 = vpack.c.b16 %v3463, %v3461
        %v3490 = vpack.c.b16 %v3466, %v3464
        %v3491 = vpack.c.b16 %v3467, %v3465
        %v3492 = vpack.c.b16 %v3470, %v3468
        %v3493 = vpack.c.b16 %v3471, %v3469
        %v3494 = vpack.c.b16 %v3474, %v3472
        %v3495 = vpack.c.b16 %v3475, %v3473
        %v3496 = vpack.c.b16 %v3478, %v3476
        %v3497 = vpack.c.b16 %v3479, %v3477
        %v3498 = vpack.c.b16 %v3482, %v3480
        %v3499 = vpack.c.b16 %v3483, %v3481
        %3516 = vmatprep.subr.bf16.mxu0 %v3485
        %3517 = vmatpush1.bf16.msra.mxu0 %v3484
        %3518 = vmatprep.subr.bf16.mxu0 %v3487
        %3519 = vmatpush1.bf16.msra.mxu0 %v3486
        %3520 = vmatprep.subr.bf16.mxu0 %v3489
        %3521 = vmatpush1.bf16.msra.mxu0 %v3488
        %3522 = vmatprep.subr.bf16.mxu0 %v3491
        %3523 = vmatpush1.bf16.msra.mxu0 %v3490
        %3524 = vmatprep.subr.bf16.mxu0 %v3493
        %3525 = vmatpush1.bf16.msra.mxu0 %v3492
        %3526 = vmatprep.subr.bf16.mxu0 %v3495
        %3527 = vmatpush1.bf16.msra.mxu0 %v3494
        %3528 = vmatprep.subr.bf16.mxu0 %v3497
        %3529 = vmatpush1.bf16.msra.mxu0 %v3496
        %3530 = vmatprep.subr.bf16.mxu0 %v3499
        %3531 = vmatpush1.bf16.msra.mxu0 %v3498
        %3532 = vmatprep.subr.bf16.mxu0 0
        %3533 = vmatpush1.bf16.msra.mxu0 0
        %3534 = vmatprep.subr.bf16.mxu0 0
        %3535 = vmatpush1.bf16.msra.mxu0 0
        %3536 = vmatprep.subr.bf16.mxu0 0
        %3537 = vmatpush1.bf16.msra.mxu0 0
        %3538 = vmatprep.subr.bf16.mxu0 0
        %3539 = vmatpush1.bf16.msra.mxu0 0
        %3540 = vmatprep.subr.bf16.mxu0 0
        %3541 = vmatpush1.bf16.msra.mxu0 0
        %3542 = vmatprep.subr.bf16.mxu0 0
        %3543 = vmatpush1.bf16.msra.mxu0 0
        %3544 = vmatprep.subr.bf16.mxu0 0
        %3545 = vmatpush1.bf16.msra.mxu0 0
        %3546 = vmatprep.subr.bf16.mxu0 0
        %3547 = vmatpush1.bf16.msra.mxu0 0
        %3548 = vmatprep.mubr.bf16.mxu0 0
        %3549 = vmatmul.mubr.bf16.gmra.mrb[0].mxu0 %v3409
        %v3550 = vpop.f32.mrb[0].mxu0
        %v3551 = vadd.f32 0.0, %v3550
        %v3552 = vpop.f32.mrb[0].mxu0
        %v3553 = vadd.f32 0.0, %v3552
        %v3554 = vpop.f32.mrb[0].mxu0
        %v3555 = vadd.f32 0.0, %v3554
        %v3556 = vpop.f32.mrb[0].mxu0
        %v3557 = vadd.f32 0.0, %v3556
        %3558 = vmatprep.mubr.bf16.mxu0 0
        %3559 = vmatmul.mubr.bf16.gmra.mrb[0].mxu0 %v3411
        %v3560 = vpop.f32.mrb[0].mxu0
        %v3561 = vadd.f32 0.0, %v3560
        %v3562 = vpop.f32.mrb[0].mxu0
        %v3563 = vadd.f32 0.0, %v3562
        %v3564 = vpop.f32.mrb[0].mxu0
        %v3565 = vadd.f32 0.0, %v3564
        %v3566 = vpop.f32.mrb[0].mxu0
        %v3567 = vadd.f32 0.0, %v3566
        %3568 = vmatprep.mubr.bf16.mxu0 0
        %3569 = vmatmul.mubr.bf16.gmra.mrb[0].mxu0 %v3413
        %v3570 = vpop.f32.mrb[0].mxu0
        %v3571 = vadd.f32 0.0, %v3570
        %v3572 = vpop.f32.mrb[0].mxu0
        %v3573 = vadd.f32 0.0, %v3572
        %v3574 = vpop.f32.mrb[0].mxu0
        %v3575 = vadd.f32 0.0, %v3574
        %v3576 = vpop.f32.mrb[0].mxu0
        %v3577 = vadd.f32 0.0, %v3576
        %3578 = vmatprep.mubr.bf16.mxu0 0
        %3579 = vmatmul.mubr.bf16.gmra.mrb[0].mxu0 %v3415
        %v3580 = vpop.f32.mrb[0].mxu0
        %v3581 = vadd.f32 0.0, %v3580
        %v3582 = vpop.f32.mrb[0].mxu0
        %v3583 = vadd.f32 0.0, %v3582
        %v3584 = vpop.f32.mrb[0].mxu0
        %v3585 = vadd.f32 0.0, %v3584
        %v3586 = vpop.f32.mrb[0].mxu0
        %v3587 = vadd.f32 0.0, %v3586
        %3588 = vmatprep.mubr.bf16.mxu0 0
        %3589 = vmatmul.mubr.bf16.gmra.mrb[0].mxu0 %v3417
        %v3590 = vpop.f32.mrb[0].mxu0
        %v3591 = vadd.f32 0.0, %v3590
        %v3592 = vpop.f32.mrb[0].mxu0
        %v3593 = vadd.f32 0.0, %v3592
        %v3594 = vpop.f32.mrb[0].mxu0
        %v3595 = vadd.f32 0.0, %v3594
        %v3596 = vpop.f32.mrb[0].mxu0
        %v3597 = vadd.f32 0.0, %v3596
        %3598 = vmatprep.mubr.bf16.mxu0 0
        %3599 = vmatmul.mubr.bf16.gmra.mrb[0].mxu0 %v3419
        %v3600 = vpop.f32.mrb[0].mxu0
        %v3601 = vadd.f32 0.0, %v3600
        %v3602 = vpop.f32.mrb[0].mxu0
        %v3603 = vadd.f32 0.0, %v3602
        %v3604 = vpop.f32.mrb[0].mxu0
        %v3605 = vadd.f32 0.0, %v3604
        %v3606 = vpop.f32.mrb[0].mxu0
        %v3607 = vadd.f32 0.0, %v3606
        %3608 = vmatprep.mubr.bf16.mxu0 0
        %3609 = vmatmul.mubr.bf16.gmra.mrb[0].mxu0 %v3421
        %v3610 = vpop.f32.mrb[0].mxu0
        %v3611 = vadd.f32 0.0, %v3610
        %v3612 = vpop.f32.mrb[0].mxu0
        %v3613 = vadd.f32 0.0, %v3612
        %v3614 = vpop.f32.mrb[0].mxu0
        %v3615 = vadd.f32 0.0, %v3614
        %v3616 = vpop.f32.mrb[0].mxu0
        %v3617 = vadd.f32 0.0, %v3616
        %3618 = vmatprep.mubr.bf16.mxu0 0
        %3619 = vmatmul.mubr.bf16.gmra.mrb[0].mxu0 %v3423
        %v3620 = vpop.f32.mrb[0].mxu0
        %v3621 = vadd.f32 0.0, %v3620
        %v3622 = vpop.f32.mrb[0].mxu0
        %v3623 = vadd.f32 0.0, %v3622
        %v3624 = vpop.f32.mrb[0].mxu0
        %v3625 = vadd.f32 0.0, %v3624
        %v3626 = vpop.f32.mrb[0].mxu0
        %v3627 = vadd.f32 0.0, %v3626
        %3628 = vmatprep.mubr.bf16.mxu0 0
        %3629 = vmatmul.mubr.bf16.gmra.mrb[0].mxu0 %v3425
        %v3630 = vpop.f32.mrb[0].mxu0
        %v3631 = vadd.f32 0.0, %v3630
        %v3632 = vpop.f32.mrb[0].mxu0
        %v3633 = vadd.f32 0.0, %v3632
        %v3634 = vpop.f32.mrb[0].mxu0
        %v3635 = vadd.f32 0.0, %v3634
        %v3636 = vpop.f32.mrb[0].mxu0
        %v3637 = vadd.f32 0.0, %v3636
        %3638 = vmatprep.mubr.bf16.mxu0 0
        %3639 = vmatmul.mubr.bf16.gmra.mrb[0].mxu0 %v3424
        %v3640 = vpop.f32.mrb[0].mxu0
        %v3641 = vadd.f32 0.0, %v3640
        %v3642 = vpop.f32.mrb[0].mxu0
        %v3643 = vadd.f32 0.0, %v3642
        %v3644 = vpop.f32.mrb[0].mxu0
        %v3645 = vpop.f32.mrb[0].mxu0
        %3646 = vdwg.mxu0
        %v3647 = vadd.f32 %v3283, %v3551
        %v3648 = vadd.f32 %v3285, %v3553
        %v3649 = vadd.f32 %v3287, %v3555
        %v3650 = vadd.f32 %v3289, %v3557
        %v3651 = vadd.f32 %v3293, %v3561
        %v3652 = vadd.f32 %v3295, %v3563
        %v3653 = vadd.f32 %v3297, %v3565
        %v3654 = vadd.f32 %v3299, %v3567
        %v3655 = vadd.f32 %v3303, %v3571
        %v3656 = vadd.f32 %v3305, %v3573
        %v3657 = vadd.f32 %v3307, %v3575
        %v3658 = vadd.f32 %v3309, %v3577
        %v3659 = vadd.f32 %v3313, %v3581
        %v3660 = vadd.f32 %v3315, %v3583
        %v3661 = vadd.f32 %v3317, %v3585
        %v3662 = vadd.f32 %v3319, %v3587
        %v3663 = vadd.f32 %v3323, %v3591
        %v3664 = vadd.f32 %v3325, %v3593
        %v3665 = vadd.f32 %v3327, %v3595
        %v3666 = vadd.f32 %v3329, %v3597
        %v3667 = vadd.f32 %v3333, %v3601
        %v3668 = vadd.f32 %v3335, %v3603
        %v3669 = vadd.f32 %v3337, %v3605
        %v3670 = vadd.f32 %v3339, %v3607
        %v3671 = vadd.f32 %v3343, %v3611
        %v3672 = vadd.f32 %v3345, %v3613
        %v3673 = vadd.f32 %v3347, %v3615
        %v3674 = vadd.f32 %v3349, %v3617
        %v3675 = vadd.f32 %v3353, %v3621
        %v3676 = vadd.f32 %v3355, %v3623
        %v3677 = vadd.f32 %v3357, %v3625
        %v3678 = vadd.f32 %v3359, %v3627
        %v3679 = vadd.f32 %v3363, %v3631
        %v3680 = vadd.f32 %v3365, %v3633
        %v3681 = vadd.f32 %v3367, %v3635
        %v3682 = vadd.f32 %v3369, %v3637
        %v3683 = vadd.f32 %v3373, %v3641
        %v3684 = vadd.f32 %v3375, %v3643
        %s3685 = scalar_lea.vmem %s3, 384
        %v3686 = vld [vmem:[%s3685] sm:$0xff]
        %v3687 = vld [vmem:[%s3685 + $0x8] sm:$0xff]
        %v3688 = vld [vmem:[%s3685 + $0x10] sm:$0xff]
        %v3689 = vld [vmem:[%s3685 + $0x18] sm:$0xff]
        %v3690 = vld [vmem:[%s3685 + $0x20] sm:$0xff]
        %v3691 = vld [vmem:[%s3685 + $0x28] sm:$0xff]
        %v3692 = vld [vmem:[%s3685 + $0x30] sm:$0xff]
        %v3693 = vld [vmem:[%s3685 + $0x38] sm:$0xff]
        %v3694 = vld [vmem:[%s3685 + $0x40] sm:$0xff]
        %v3695 = vld [vmem:[%s3685 + $0x48] sm:$0xff]
        %v3696 = vld [vmem:[%s3685 + $0x50] sm:$0xff]
        %v3697 = vld [vmem:[%s3685 + $0x58] sm:$0xff]
        %v3698 = vld [vmem:[%s3685 + $0x60] sm:$0xff]
        %v3699 = vld [vmem:[%s3685 + $0x68] sm:$0xff]
        %v3700 = vld [vmem:[%s3685 + $0x70] sm:$0xff]
        %v3701 = vld [vmem:[%s3685 + $0x78] sm:$0xff]
        %vm3702 = vsmask.f32 6400
        %v3703 = vrot.slane %v2869, 1
        %v3704 = vrot.slane %v2871, 2
        %v3705 = vor.u32 %v3703, %v3704
        %v3706 = vrot.slane %v2880, 1
        %v3707 = vrot.slane %v2876, 2
        %v3708 = vor.u32 %v3706, %v3707
        %v3709 = vsel %vm3702, %v3705, %v3708
        %v3710 = vrot.slane %v2888, 1
        %v3711 = vrot.slane %v2884, 2
        %v3712 = vor.u32 %v3710, %v3711
        %v3713 = vsel %vm3702, %v3708, %v3712
        %v3714 = vrot.slane %v2896, 1
        %v3715 = vrot.slane %v2892, 2
        %v3716 = vor.u32 %v3714, %v3715
        %v3717 = vsel %vm3702, %v3712, %v3716
        %v3718 = vrot.slane %v2904, 1
        %v3719 = vrot.slane %v2900, 2
        %v3720 = vor.u32 %v3718, %v3719
        %v3721 = vsel %vm3702, %v3716, %v3720
        %v3722 = vrot.slane %v2912, 1
        %v3723 = vrot.slane %v2908, 2
        %v3724 = vor.u32 %v3722, %v3723
        %v3725 = vsel %vm3702, %v3720, %v3724
        %v3726 = vrot.slane %v2920, 1
        %v3727 = vrot.slane %v2916, 2
        %v3728 = vor.u32 %v3726, %v3727
        %v3729 = vsel %vm3702, %v3724, %v3728
        %v3730 = vrot.slane %v2928, 1
        %v3731 = vrot.slane %v2924, 2
        %v3732 = vor.u32 %v3730, %v3731
        %v3733 = vsel %vm3702, %v3728, %v3732
        %v3734 = vrot.slane %v2936, 1
        %v3735 = vrot.slane %v2932, 2
        %v3736 = vor.u32 %v3734, %v3735
        %v3737 = vsel %vm3702, %v3732, %v3736
        %v3738 = vrot.slane %v2944, 1
        %v3739 = vrot.slane %v2940, 2
        %v3740 = vor.u32 %v3738, %v3739
        %v3741 = vsel %vm3702, %v3736, %v3740
        %v3768 = vunpack.c.l.b16 %v3686
        %v3769 = vunpack.c.h.b16 %v3686
        %v3770 = vunpack.c.l.b16 %v3687
        %v3771 = vunpack.c.h.b16 %v3687
        %v3772 = vunpack.c.l.b16 %v3688
        %v3773 = vunpack.c.h.b16 %v3688
        %v3774 = vunpack.c.l.b16 %v3689
        %v3775 = vunpack.c.h.b16 %v3689
        %v3776 = vunpack.c.l.b16 %v3690
        %v3777 = vunpack.c.h.b16 %v3690
        %v3778 = vunpack.c.l.b16 %v3691
        %v3779 = vunpack.c.h.b16 %v3691
        %v3780 = vunpack.c.l.b16 %v3692
        %v3781 = vunpack.c.h.b16 %v3692
        %v3782 = vunpack.c.l.b16 %v3693
        %v3783 = vunpack.c.h.b16 %v3693
        %v3784 = vunpack.c.l.b16 %v3694
        %v3785 = vunpack.c.h.b16 %v3694
        %v3786 = vunpack.c.l.b16 %v3695
        %v3787 = vunpack.c.h.b16 %v3695
        %v3788 = vunpack.c.l.b16 %v3696
        %v3789 = vunpack.c.h.b16 %v3696
        %v3790 = vunpack.c.l.b16 %v3697
        %v3791 = vunpack.c.h.b16 %v3697
        %v3792 = vunpack.c.l.b16 %v3698
        %v3793 = vunpack.c.h.b16 %v3698
        %v3794 = vunpack.c.l.b16 %v3699
        %v3795 = vunpack.c.h.b16 %v3699
        %v3796 = vunpack.c.l.b16 %v3700
        %v3797 = vunpack.c.h.b16 %v3700
        %v3798 = vunpack.c.l.b16 %v3701
        %v3799 = vunpack.c.h.b16 %v3701
        %v3800 = vpack.c.b16 %v3770, %v3768
        %v3801 = vpack.c.b16 %v3771, %v3769
        %v3802 = vpack.c.b16 %v3774, %v3772
        %v3803 = vpack.c.b16 %v3775, %v3773
        %v3804 = vpack.c.b16 %v3778, %v3776
        %v3805 = vpack.c.b16 %v3779, %v3777
        %v3806 = vpack.c.b16 %v3782, %v3780
        %v3807 = vpack.c.b16 %v3783, %v3781
        %v3808 = vpack.c.b16 %v3786, %v3784
        %v3809 = vpack.c.b16 %v3787, %v3785
        %v3810 = vpack.c.b16 %v3790, %v3788
        %v3811 = vpack.c.b16 %v3791, %v3789
        %v3812 = vpack.c.b16 %v3794, %v3792
        %v3813 = vpack.c.b16 %v3795, %v3793
        %v3814 = vpack.c.b16 %v3798, %v3796
        %v3815 = vpack.c.b16 %v3799, %v3797
        %3832 = vmatprep.subr.bf16.mxu0 %v3801
        %3833 = vmatpush1.bf16.msra.mxu0 %v3800
        %3834 = vmatprep.subr.bf16.mxu0 %v3803
        %3835 = vmatpush1.bf16.msra.mxu0 %v3802
        %3836 = vmatprep.subr.bf16.mxu0 %v3805
        %3837 = vmatpush1.bf16.msra.mxu0 %v3804
        %3838 = vmatprep.subr.bf16.mxu0 %v3807
        %3839 = vmatpush1.bf16.msra.mxu0 %v3806
        %3840 = vmatprep.subr.bf16.mxu0 %v3809
        %3841 = vmatpush1.bf16.msra.mxu0 %v3808
        %3842 = vmatprep.subr.bf16.mxu0 %v3811
        %3843 = vmatpush1.bf16.msra.mxu0 %v3810
        %3844 = vmatprep.subr.bf16.mxu0 %v3813
        %3845 = vmatpush1.bf16.msra.mxu0 %v3812
        %3846 = vmatprep.subr.bf16.mxu0 %v3815
        %3847 = vmatpush1.bf16.msra.mxu0 %v3814
        %3848 = vmatprep.subr.bf16.mxu0 0
        %3849 = vmatpush1.bf16.msra.mxu0 0
        %3850 = vmatprep.subr.bf16.mxu0 0
        %3851 = vmatpush1.bf16.msra.mxu0 0
        %3852 = vmatprep.subr.bf16.mxu0 0
        %3853 = vmatpush1.bf16.msra.mxu0 0
        %3854 = vmatprep.subr.bf16.mxu0 0
        %3855 = vmatpush1.bf16.msra.mxu0 0
        %3856 = vmatprep.subr.bf16.mxu0 0
        %3857 = vmatpush1.bf16.msra.mxu0 0
        %3858 = vmatprep.subr.bf16.mxu0 0
        %3859 = vmatpush1.bf16.msra.mxu0 0
        %3860 = vmatprep.subr.bf16.mxu0 0
        %3861 = vmatpush1.bf16.msra.mxu0 0
        %3862 = vmatprep.subr.bf16.mxu0 0
        %3863 = vmatpush1.bf16.msra.mxu0 0
        %3864 = vmatprep.mubr.bf16.mxu0 0
        %3865 = vmatmul.mubr.bf16.gmra.mrb[0].mxu0 %v3709
        %v3866 = vpop.f32.mrb[0].mxu0
        %v3867 = vadd.f32 0.0, %v3866
        %v3868 = vpop.f32.mrb[0].mxu0
        %v3869 = vadd.f32 0.0, %v3868
        %v3870 = vpop.f32.mrb[0].mxu0
        %v3871 = vadd.f32 0.0, %v3870
        %v3872 = vpop.f32.mrb[0].mxu0
        %v3873 = vadd.f32 0.0, %v3872
        %3874 = vmatprep.mubr.bf16.mxu0 0
        %3875 = vmatmul.mubr.bf16.gmra.mrb[0].mxu0 %v3713
        %v3876 = vpop.f32.mrb[0].mxu0
        %v3877 = vadd.f32 0.0, %v3876
        %v3878 = vpop.f32.mrb[0].mxu0
        %v3879 = vadd.f32 0.0, %v3878
        %v3880 = vpop.f32.mrb[0].mxu0
        %v3881 = vadd.f32 0.0, %v3880
        %v3882 = vpop.f32.mrb[0].mxu0
        %v3883 = vadd.f32 0.0, %v3882
        %3884 = vmatprep.mubr.bf16.mxu0 0
        %3885 = vmatmul.mubr.bf16.gmra.mrb[0].mxu0 %v3717
        %v3886 = vpop.f32.mrb[0].mxu0
        %v3887 = vadd.f32 0.0, %v3886
        %v3888 = vpop.f32.mrb[0].mxu0
        %v3889 = vadd.f32 0.0, %v3888
        %v3890 = vpop.f32.mrb[0].mxu0
        %v3891 = vadd.f32 0.0, %v3890
        %v3892 = vpop.f32.mrb[0].mxu0
        %v3893 = vadd.f32 0.0, %v3892
        %3894 = vmatprep.mubr.bf16.mxu0 0
        %3895 = vmatmul.mubr.bf16.gmra.mrb[0].mxu0 %v3721
        %v3896 = vpop.f32.mrb[0].mxu0
        %v3897 = vadd.f32 0.0, %v3896
        %v3898 = vpop.f32.mrb[0].mxu0
        %v3899 = vadd.f32 0.0, %v3898
        %v3900 = vpop.f32.mrb[0].mxu0
        %v3901 = vadd.f32 0.0, %v3900
        %v3902 = vpop.f32.mrb[0].mxu0
        %v3903 = vadd.f32 0.0, %v3902
        %3904 = vmatprep.mubr.bf16.mxu0 0
        %3905 = vmatmul.mubr.bf16.gmra.mrb[0].mxu0 %v3725
        %v3906 = vpop.f32.mrb[0].mxu0
        %v3907 = vadd.f32 0.0, %v3906
        %v3908 = vpop.f32.mrb[0].mxu0
        %v3909 = vadd.f32 0.0, %v3908
        %v3910 = vpop.f32.mrb[0].mxu0
        %v3911 = vadd.f32 0.0, %v3910
        %v3912 = vpop.f32.mrb[0].mxu0
        %v3913 = vadd.f32 0.0, %v3912
        %3914 = vmatprep.mubr.bf16.mxu0 0
        %3915 = vmatmul.mubr.bf16.gmra.mrb[0].mxu0 %v3729
        %v3916 = vpop.f32.mrb[0].mxu0
        %v3917 = vadd.f32 0.0, %v3916
        %v3918 = vpop.f32.mrb[0].mxu0
        %v3919 = vadd.f32 0.0, %v3918
        %v3920 = vpop.f32.mrb[0].mxu0
        %v3921 = vadd.f32 0.0, %v3920
        %v3922 = vpop.f32.mrb[0].mxu0
        %v3923 = vadd.f32 0.0, %v3922
        %3924 = vmatprep.mubr.bf16.mxu0 0
        %3925 = vmatmul.mubr.bf16.gmra.mrb[0].mxu0 %v3733
        %v3926 = vpop.f32.mrb[0].mxu0
        %v3927 = vadd.f32 0.0, %v3926
        %v3928 = vpop.f32.mrb[0].mxu0
        %v3929 = vadd.f32 0.0, %v3928
        %v3930 = vpop.f32.mrb[0].mxu0
        %v3931 = vadd.f32 0.0, %v3930
        %v3932 = vpop.f32.mrb[0].mxu0
        %v3933 = vadd.f32 0.0, %v3932
        %3934 = vmatprep.mubr.bf16.mxu0 0
        %3935 = vmatmul.mubr.bf16.gmra.mrb[0].mxu0 %v3737
        %v3936 = vpop.f32.mrb[0].mxu0
        %v3937 = vadd.f32 0.0, %v3936
        %v3938 = vpop.f32.mrb[0].mxu0
        %v3939 = vadd.f32 0.0, %v3938
        %v3940 = vpop.f32.mrb[0].mxu0
        %v3941 = vadd.f32 0.0, %v3940
        %v3942 = vpop.f32.mrb[0].mxu0
        %v3943 = vadd.f32 0.0, %v3942
        %3944 = vmatprep.mubr.bf16.mxu0 0
        %3945 = vmatmul.mubr.bf16.gmra.mrb[0].mxu0 %v3741
        %v3946 = vpop.f32.mrb[0].mxu0
        %v3947 = vadd.f32 0.0, %v3946
        %v3948 = vpop.f32.mrb[0].mxu0
        %v3949 = vadd.f32 0.0, %v3948
        %v3950 = vpop.f32.mrb[0].mxu0
        %v3951 = vadd.f32 0.0, %v3950
        %v3952 = vpop.f32.mrb[0].mxu0
        %v3953 = vadd.f32 0.0, %v3952
        %3954 = vmatprep.mubr.bf16.mxu0 0
        %3955 = vmatmul.mubr.bf16.gmra.mrb[0].mxu0 %v3740
        %v3956 = vpop.f32.mrb[0].mxu0
        %v3957 = vadd.f32 0.0, %v3956
        %v3958 = vpop.f32.mrb[0].mxu0
        %v3959 = vadd.f32 0.0, %v3958
        %v3960 = vpop.f32.mrb[0].mxu0
        %v3961 = vpop.f32.mrb[0].mxu0
        %3962 = vdwg.mxu0
        %v3963 = vadd.f32 %v3647, %v3867
        %v3964 = vadd.f32 %v3648, %v3869
        %v3965 = vadd.f32 %v3649, %v3871
        %v3966 = vadd.f32 %v3650, %v3873
        %v3967 = vadd.f32 %v3651, %v3877
        %v3968 = vadd.f32 %v3652, %v3879
        %v3969 = vadd.f32 %v3653, %v3881
        %v3970 = vadd.f32 %v3654, %v3883
        %v3971 = vadd.f32 %v3655, %v3887
        %v3972 = vadd.f32 %v3656, %v3889
        %v3973 = vadd.f32 %v3657, %v3891
        %v3974 = vadd.f32 %v3658, %v3893
        %v3975 = vadd.f32 %v3659, %v3897
        %v3976 = vadd.f32 %v3660, %v3899
        %v3977 = vadd.f32 %v3661, %v3901
        %v3978 = vadd.f32 %v3662, %v3903
        %v3979 = vadd.f32 %v3663, %v3907
        %v3980 = vadd.f32 %v3664, %v3909
        %v3981 = vadd.f32 %v3665, %v3911
        %v3982 = vadd.f32 %v3666, %v3913
        %v3983 = vadd.f32 %v3667, %v3917
        %v3984 = vadd.f32 %v3668, %v3919
        %v3985 = vadd.f32 %v3669, %v3921
        %v3986 = vadd.f32 %v3670, %v3923
        %v3987 = vadd.f32 %v3671, %v3927
        %v3988 = vadd.f32 %v3672, %v3929
        %v3989 = vadd.f32 %v3673, %v3931
        %v3990 = vadd.f32 %v3674, %v3933
        %v3991 = vadd.f32 %v3675, %v3937
        %v3992 = vadd.f32 %v3676, %v3939
        %v3993 = vadd.f32 %v3677, %v3941
        %v3994 = vadd.f32 %v3678, %v3943
        %v3995 = vadd.f32 %v3679, %v3947
        %v3996 = vadd.f32 %v3680, %v3949
        %v3997 = vadd.f32 %v3681, %v3951
        %v3998 = vadd.f32 %v3682, %v3953
        %v3999 = vadd.f32 %v3683, %v3957
        %v4000 = vadd.f32 %v3684, %v3959
        %s4001 = scalar_lea.vmem %s3, 512
        %v4002 = vld [vmem:[%s4001] sm:$0xff]
        %v4003 = vld [vmem:[%s4001 + $0x8] sm:$0xff]
        %v4004 = vld [vmem:[%s4001 + $0x10] sm:$0xff]
        %v4005 = vld [vmem:[%s4001 + $0x18] sm:$0xff]
        %v4006 = vld [vmem:[%s4001 + $0x20] sm:$0xff]
        %v4007 = vld [vmem:[%s4001 + $0x28] sm:$0xff]
        %v4008 = vld [vmem:[%s4001 + $0x30] sm:$0xff]
        %v4009 = vld [vmem:[%s4001 + $0x38] sm:$0xff]
        %v4010 = vld [vmem:[%s4001 + $0x40] sm:$0xff]
        %v4011 = vld [vmem:[%s4001 + $0x48] sm:$0xff]
        %v4012 = vld [vmem:[%s4001 + $0x50] sm:$0xff]
        %v4013 = vld [vmem:[%s4001 + $0x58] sm:$0xff]
        %v4014 = vld [vmem:[%s4001 + $0x60] sm:$0xff]
        %v4015 = vld [vmem:[%s4001 + $0x68] sm:$0xff]
        %v4016 = vld [vmem:[%s4001 + $0x70] sm:$0xff]
        %v4017 = vld [vmem:[%s4001 + $0x78] sm:$0xff]
        %vm4018 = vcmask 1045504
        %v4019 = vrot.slane %v2823, 2
        %v4020 = vrot.slane %v2824, 2
        %v4021 = vsel %vm4018, %v4019, %v4020
        %v4022 = vrot.slane %v2825, 2
        %v4023 = vsel %vm4018, %v4020, %v4022
        %v4024 = vrot.slane %v2826, 2
        %v4025 = vsel %vm4018, %v4022, %v4024
        %v4026 = vrot.slane %v2827, 2
        %v4027 = vsel %vm4018, %v4024, %v4026
        %v4028 = vrot.slane %v2828, 2
        %v4029 = vsel %vm4018, %v4026, %v4028
        %v4030 = vrot.slane %v2829, 2
        %v4031 = vsel %vm4018, %v4028, %v4030
        %v4032 = vrot.slane %v2830, 2
        %v4033 = vsel %vm4018, %v4030, %v4032
        %v4034 = vrot.slane %v2831, 2
        %v4035 = vsel %vm4018, %v4032, %v4034
        %v4036 = vrot.slane %v2849, 2
        %v4037 = vsel %vm4018, %v4034, %v4036
        %v4064 = vunpack.c.l.b16 %v4002
        %v4065 = vunpack.c.h.b16 %v4002
        %v4066 = vunpack.c.l.b16 %v4003
        %v4067 = vunpack.c.h.b16 %v4003
        %v4068 = vunpack.c.l.b16 %v4004
        %v4069 = vunpack.c.h.b16 %v4004
        %v4070 = vunpack.c.l.b16 %v4005
        %v4071 = vunpack.c.h.b16 %v4005
        %v4072 = vunpack.c.l.b16 %v4006
        %v4073 = vunpack.c.h.b16 %v4006
        %v4074 = vunpack.c.l.b16 %v4007
        %v4075 = vunpack.c.h.b16 %v4007
        %v4076 = vunpack.c.l.b16 %v4008
        %v4077 = vunpack.c.h.b16 %v4008
        %v4078 = vunpack.c.l.b16 %v4009
        %v4079 = vunpack.c.h.b16 %v4009
        %v4080 = vunpack.c.l.b16 %v4010
        %v4081 = vunpack.c.h.b16 %v4010
        %v4082 = vunpack.c.l.b16 %v4011
        %v4083 = vunpack.c.h.b16 %v4011
        %v4084 = vunpack.c.l.b16 %v4012
        %v4085 = vunpack.c.h.b16 %v4012
        %v4086 = vunpack.c.l.b16 %v4013
        %v4087 = vunpack.c.h.b16 %v4013
        %v4088 = vunpack.c.l.b16 %v4014
        %v4089 = vunpack.c.h.b16 %v4014
        %v4090 = vunpack.c.l.b16 %v4015
        %v4091 = vunpack.c.h.b16 %v4015
        %v4092 = vunpack.c.l.b16 %v4016
        %v4093 = vunpack.c.h.b16 %v4016
        %v4094 = vunpack.c.l.b16 %v4017
        %v4095 = vunpack.c.h.b16 %v4017
        %v4096 = vpack.c.b16 %v4066, %v4064
        %v4097 = vpack.c.b16 %v4067, %v4065
        %v4098 = vpack.c.b16 %v4070, %v4068
        %v4099 = vpack.c.b16 %v4071, %v4069
        %v4100 = vpack.c.b16 %v4074, %v4072
        %v4101 = vpack.c.b16 %v4075, %v4073
        %v4102 = vpack.c.b16 %v4078, %v4076
        %v4103 = vpack.c.b16 %v4079, %v4077
        %v4104 = vpack.c.b16 %v4082, %v4080
        %v4105 = vpack.c.b16 %v4083, %v4081
        %v4106 = vpack.c.b16 %v4086, %v4084
        %v4107 = vpack.c.b16 %v4087, %v4085
        %v4108 = vpack.c.b16 %v4090, %v4088
        %v4109 = vpack.c.b16 %v4091, %v4089
        %v4110 = vpack.c.b16 %v4094, %v4092
        %v4111 = vpack.c.b16 %v4095, %v4093
        %4128 = vmatprep.subr.bf16.mxu0 %v4097
        %4129 = vmatpush1.bf16.msra.mxu0 %v4096
        %4130 = vmatprep.subr.bf16.mxu0 %v4099
        %4131 = vmatpush1.bf16.msra.mxu0 %v4098
        %4132 = vmatprep.subr.bf16.mxu0 %v4101
        %4133 = vmatpush1.bf16.msra.mxu0 %v4100
        %4134 = vmatprep.subr.bf16.mxu0 %v4103
        %4135 = vmatpush1.bf16.msra.mxu0 %v4102
        %4136 = vmatprep.subr.bf16.mxu0 %v4105
        %4137 = vmatpush1.bf16.msra.mxu0 %v4104
        %4138 = vmatprep.subr.bf16.mxu0 %v4107
        %4139 = vmatpush1.bf16.msra.mxu0 %v4106
        %4140 = vmatprep.subr.bf16.mxu0 %v4109
        %4141 = vmatpush1.bf16.msra.mxu0 %v4108
        %4142 = vmatprep.subr.bf16.mxu0 %v4111
        %4143 = vmatpush1.bf16.msra.mxu0 %v4110
        %4144 = vmatprep.subr.bf16.mxu0 0
        %4145 = vmatpush1.bf16.msra.mxu0 0
        %4146 = vmatprep.subr.bf16.mxu0 0
        %4147 = vmatpush1.bf16.msra.mxu0 0
        %4148 = vmatprep.subr.bf16.mxu0 0
        %4149 = vmatpush1.bf16.msra.mxu0 0
        %4150 = vmatprep.subr.bf16.mxu0 0
        %4151 = vmatpush1.bf16.msra.mxu0 0
        %4152 = vmatprep.subr.bf16.mxu0 0
        %4153 = vmatpush1.bf16.msra.mxu0 0
        %4154 = vmatprep.subr.bf16.mxu0 0
        %4155 = vmatpush1.bf16.msra.mxu0 0
        %4156 = vmatprep.subr.bf16.mxu0 0
        %4157 = vmatpush1.bf16.msra.mxu0 0
        %4158 = vmatprep.subr.bf16.mxu0 0
        %4159 = vmatpush1.bf16.msra.mxu0 0
        %4160 = vmatprep.mubr.bf16.mxu0 0
        %4161 = vmatmul.mubr.bf16.gmra.mrb[0].mxu0 %v4021
        %v4162 = vpop.f32.mrb[0].mxu0
        %v4163 = vadd.f32 0.0, %v4162
        %v4164 = vpop.f32.mrb[0].mxu0
        %v4165 = vadd.f32 0.0, %v4164
        %v4166 = vpop.f32.mrb[0].mxu0
        %v4167 = vadd.f32 0.0, %v4166
        %v4168 = vpop.f32.mrb[0].mxu0
        %v4169 = vadd.f32 0.0, %v4168
        %4170 = vmatprep.mubr.bf16.mxu0 0
        %4171 = vmatmul.mubr.bf16.gmra.mrb[0].mxu0 %v4023
        %v4172 = vpop.f32.mrb[0].mxu0
        %v4173 = vadd.f32 0.0, %v4172
        %v4174 = vpop.f32.mrb[0].mxu0
        %v4175 = vadd.f32 0.0, %v4174
        %v4176 = vpop.f32.mrb[0].mxu0
        %v4177 = vadd.f32 0.0, %v4176
        %v4178 = vpop.f32.mrb[0].mxu0
        %v4179 = vadd.f32 0.0, %v4178
        %4180 = vmatprep.mubr.bf16.mxu0 0
        %4181 = vmatmul.mubr.bf16.gmra.mrb[0].mxu0 %v4025
        %v4182 = vpop.f32.mrb[0].mxu0
        %v4183 = vadd.f32 0.0, %v4182
        %v4184 = vpop.f32.mrb[0].mxu0
        %v4185 = vadd.f32 0.0, %v4184
        %v4186 = vpop.f32.mrb[0].mxu0
        %v4187 = vadd.f32 0.0, %v4186
        %v4188 = vpop.f32.mrb[0].mxu0
        %v4189 = vadd.f32 0.0, %v4188
        %4190 = vmatprep.mubr.bf16.mxu0 0
        %4191 = vmatmul.mubr.bf16.gmra.mrb[0].mxu0 %v4027
        %v4192 = vpop.f32.mrb[0].mxu0
        %v4193 = vadd.f32 0.0, %v4192
        %v4194 = vpop.f32.mrb[0].mxu0
        %v4195 = vadd.f32 0.0, %v4194
        %v4196 = vpop.f32.mrb[0].mxu0
        %v4197 = vadd.f32 0.0, %v4196
        %v4198 = vpop.f32.mrb[0].mxu0
        %v4199 = vadd.f32 0.0, %v4198
        %4200 = vmatprep.mubr.bf16.mxu0 0
        %4201 = vmatmul.mubr.bf16.gmra.mrb[0].mxu0 %v4029
        %v4202 = vpop.f32.mrb[0].mxu0
        %v4203 = vadd.f32 0.0, %v4202
        %v4204 = vpop.f32.mrb[0].mxu0
        %v4205 = vadd.f32 0.0, %v4204
        %v4206 = vpop.f32.mrb[0].mxu0
        %v4207 = vadd.f32 0.0, %v4206
        %v4208 = vpop.f32.mrb[0].mxu0
        %v4209 = vadd.f32 0.0, %v4208
        %4210 = vmatprep.mubr.bf16.mxu0 0
        %4211 = vmatmul.mubr.bf16.gmra.mrb[0].mxu0 %v4031
        %v4212 = vpop.f32.mrb[0].mxu0
        %v4213 = vadd.f32 0.0, %v4212
        %v4214 = vpop.f32.mrb[0].mxu0
        %v4215 = vadd.f32 0.0, %v4214
        %v4216 = vpop.f32.mrb[0].mxu0
        %v4217 = vadd.f32 0.0, %v4216
        %v4218 = vpop.f32.mrb[0].mxu0
        %v4219 = vadd.f32 0.0, %v4218
        %4220 = vmatprep.mubr.bf16.mxu0 0
        %4221 = vmatmul.mubr.bf16.gmra.mrb[0].mxu0 %v4033
        %v4222 = vpop.f32.mrb[0].mxu0
        %v4223 = vadd.f32 0.0, %v4222
        %v4224 = vpop.f32.mrb[0].mxu0
        %v4225 = vadd.f32 0.0, %v4224
        %v4226 = vpop.f32.mrb[0].mxu0
        %v4227 = vadd.f32 0.0, %v4226
        %v4228 = vpop.f32.mrb[0].mxu0
        %v4229 = vadd.f32 0.0, %v4228
        %4230 = vmatprep.mubr.bf16.mxu0 0
        %4231 = vmatmul.mubr.bf16.gmra.mrb[0].mxu0 %v4035
        %v4232 = vpop.f32.mrb[0].mxu0
        %v4233 = vadd.f32 0.0, %v4232
        %v4234 = vpop.f32.mrb[0].mxu0
        %v4235 = vadd.f32 0.0, %v4234
        %v4236 = vpop.f32.mrb[0].mxu0
        %v4237 = vadd.f32 0.0, %v4236
        %v4238 = vpop.f32.mrb[0].mxu0
        %v4239 = vadd.f32 0.0, %v4238
        %4240 = vmatprep.mubr.bf16.mxu0 0
        %4241 = vmatmul.mubr.bf16.gmra.mrb[0].mxu0 %v4037
        %v4242 = vpop.f32.mrb[0].mxu0
        %v4243 = vadd.f32 0.0, %v4242
        %v4244 = vpop.f32.mrb[0].mxu0
        %v4245 = vadd.f32 0.0, %v4244
        %v4246 = vpop.f32.mrb[0].mxu0
        %v4247 = vadd.f32 0.0, %v4246
        %v4248 = vpop.f32.mrb[0].mxu0
        %v4249 = vadd.f32 0.0, %v4248
        %4250 = vmatprep.mubr.bf16.mxu0 0
        %4251 = vmatmul.mubr.bf16.gmra.mrb[0].mxu0 %v4036
        %v4252 = vpop.f32.mrb[0].mxu0
        %v4253 = vadd.f32 0.0, %v4252
        %v4254 = vpop.f32.mrb[0].mxu0
        %v4255 = vadd.f32 0.0, %v4254
        %v4256 = vpop.f32.mrb[0].mxu0
        %v4257 = vpop.f32.mrb[0].mxu0
        %4258 = vdwg.mxu0
        %v4259 = vadd.f32 %v3963, %v4163
        %v4260 = vadd.f32 %v3964, %v4165
        %v4261 = vadd.f32 %v3965, %v4167
        %v4262 = vadd.f32 %v3966, %v4169
        %v4263 = vadd.f32 %v3967, %v4173
        %v4264 = vadd.f32 %v3968, %v4175
        %v4265 = vadd.f32 %v3969, %v4177
        %v4266 = vadd.f32 %v3970, %v4179
        %v4267 = vadd.f32 %v3971, %v4183
        %v4268 = vadd.f32 %v3972, %v4185
        %v4269 = vadd.f32 %v3973, %v4187
        %v4270 = vadd.f32 %v3974, %v4189
        %v4271 = vadd.f32 %v3975, %v4193
        %v4272 = vadd.f32 %v3976, %v4195
        %v4273 = vadd.f32 %v3977, %v4197
        %v4274 = vadd.f32 %v3978, %v4199
        %v4275 = vadd.f32 %v3979, %v4203
        %v4276 = vadd.f32 %v3980, %v4205
        %v4277 = vadd.f32 %v3981, %v4207
        %v4278 = vadd.f32 %v3982, %v4209
        %v4279 = vadd.f32 %v3983, %v4213
        %v4280 = vadd.f32 %v3984, %v4215
        %v4281 = vadd.f32 %v3985, %v4217
        %v4282 = vadd.f32 %v3986, %v4219
        %v4283 = vadd.f32 %v3987, %v4223
        %v4284 = vadd.f32 %v3988, %v4225
        %v4285 = vadd.f32 %v3989, %v4227
        %v4286 = vadd.f32 %v3990, %v4229
        %v4287 = vadd.f32 %v3991, %v4233
        %v4288 = vadd.f32 %v3992, %v4235
        %v4289 = vadd.f32 %v3993, %v4237
        %v4290 = vadd.f32 %v3994, %v4239
        %v4291 = vadd.f32 %v3995, %v4243
        %v4292 = vadd.f32 %v3996, %v4245
        %v4293 = vadd.f32 %v3997, %v4247
        %v4294 = vadd.f32 %v3998, %v4249
        %v4295 = vadd.f32 %v3999, %v4253
        %v4296 = vadd.f32 %v4000, %v4255
        %v4297 = vld [vmem:[%s4] sm:$0x3]
        %v4299 = vlaneseq
        %v4300 = vshrl.u32 %v4299, 7
        %v4301 = vsub.s32 0, %v4300
        %v4302 = vrot.slane %v4297, %v4301
        %v4303 = vlaneseq
        %v4304 = vshrl.u32 %v4303, 7
        %v4305 = vsub.s32 1, %v4304
        %v4306 = vrot.slane %v4297, %v4305
        %v4309 = vadd.f32 %v4259, %v4302
        %v4310 = vadd.f32 %v4260, %v4306
        %v4311 = vadd.f32 %v4261, %v4302
        %v4312 = vadd.f32 %v4262, %v4306
        %v4313 = vadd.f32 %v4263, %v4302
        %v4314 = vadd.f32 %v4264, %v4306
        %v4315 = vadd.f32 %v4265, %v4302
        %v4316 = vadd.f32 %v4266, %v4306
        %v4317 = vadd.f32 %v4267, %v4302
        %v4318 = vadd.f32 %v4268, %v4306
        %v4319 = vadd.f32 %v4269, %v4302
        %v4320 = vadd.f32 %v4270, %v4306
        %v4321 = vadd.f32 %v4271, %v4302
        %v4322 = vadd.f32 %v4272, %v4306
        %v4323 = vadd.f32 %v4273, %v4302
        %v4324 = vadd.f32 %v4274, %v4306
        %v4325 = vadd.f32 %v4275, %v4302
        %v4326 = vadd.f32 %v4276, %v4306
        %v4327 = vadd.f32 %v4277, %v4302
        %v4328 = vadd.f32 %v4278, %v4306
        %v4329 = vadd.f32 %v4279, %v4302
        %v4330 = vadd.f32 %v4280, %v4306
        %v4331 = vadd.f32 %v4281, %v4302
        %v4332 = vadd.f32 %v4282, %v4306
        %v4333 = vadd.f32 %v4283, %v4302
        %v4334 = vadd.f32 %v4284, %v4306
        %v4335 = vadd.f32 %v4285, %v4302
        %v4336 = vadd.f32 %v4286, %v4306
        %v4337 = vadd.f32 %v4287, %v4302
        %v4338 = vadd.f32 %v4288, %v4306
        %v4339 = vadd.f32 %v4289, %v4302
        %v4340 = vadd.f32 %v4290, %v4306
        %v4341 = vadd.f32 %v4291, %v4302
        %v4342 = vadd.f32 %v4292, %v4306
        %v4343 = vadd.f32 %v4293, %v4302
        %v4344 = vadd.f32 %v4294, %v4306
        %v4345 = vadd.f32 %v4295, %v4302
        %v4346 = vadd.f32 %v4296, %v4306
        %v4347 = vmax.f32 %v4309, %v4310
        %v4348 = vmax.f32 %v4311, %v4312
        %v4349 = vmax.f32 %v4313, %v4314
        %v4350 = vmax.f32 %v4315, %v4316
        %v4351 = vmax.f32 %v4317, %v4318
        %v4352 = vmax.f32 %v4319, %v4320
        %v4353 = vmax.f32 %v4321, %v4322
        %v4354 = vmax.f32 %v4323, %v4324
        %v4355 = vmax.f32 %v4325, %v4326
        %v4356 = vmax.f32 %v4327, %v4328
        %v4357 = vmax.f32 %v4329, %v4330
        %v4358 = vmax.f32 %v4331, %v4332
        %v4359 = vmax.f32 %v4333, %v4334
        %v4360 = vmax.f32 %v4335, %v4336
        %v4361 = vmax.f32 %v4337, %v4338
        %v4362 = vmax.f32 %v4339, %v4340
        %v4363 = vmax.f32 %v4341, %v4342
        %v4364 = vmax.f32 %v4343, %v4344
        %v4365 = vmax.f32 %v4345, %v4346
        %4366 = vst [vmem:[#allocation3] sm:$0xff] %v4347
        %4367 = vst [vmem:[#allocation3 + $0x8] sm:$0xff] %v4348
        %4368 = vst [vmem:[#allocation3 + $0x10] sm:$0xff] %v4349
        %4369 = vst [vmem:[#allocation3 + $0x18] sm:$0xff] %v4350
        %4370 = vst [vmem:[#allocation3 + $0x20] sm:$0xff] %v4351
        %4371 = vst [vmem:[#allocation3 + $0x28] sm:$0xff] %v4352
        %4372 = vst [vmem:[#allocation3 + $0x30] sm:$0xff] %v4353
        %4373 = vst [vmem:[#allocation3 + $0x38] sm:$0xff] %v4354
        %4374 = vst [vmem:[#allocation3 + $0x40] sm:$0xff] %v4355
        %4375 = vst [vmem:[#allocation3 + $0x48] sm:$0xff] %v4356
        %4376 = vst [vmem:[#allocation3 + $0x50] sm:$0xff] %v4357
        %4377 = vst [vmem:[#allocation3 + $0x58] sm:$0xff] %v4358
        %4378 = vst [vmem:[#allocation3 + $0x60] sm:$0xff] %v4359
        %4379 = vst [vmem:[#allocation3 + $0x68] sm:$0xff] %v4360
        %4380 = vst [vmem:[#allocation3 + $0x70] sm:$0xff] %v4361
        %4381 = vst [vmem:[#allocation3 + $0x78] sm:$0xff] %v4362
        %4382 = vst [vmem:[#allocation3 + $0x80] sm:$0xff] %v4363
        %4383 = vst [vmem:[#allocation3 + $0x88] sm:$0xff] %v4364
        %4384 = vst [vmem:[#allocation3 + $0x90] sm:$0xff] %v4365
        %v4385 = vld [vmem:[#allocation3] ss:$20 sm:$0xff]
        %s4386 = scalar_lea.vmem [#allocation3], 1
        %v4387 = vld [vmem:[%s4386] ss:$20 sm:$0xff]
        %v4388 = vmax.f32 %v4385, %v4387
        %v4389 = vpack.c.bf16 %v4388, %v4388
        %v4390 = vld [vmem:[%s5] sm:$0xf]
        %v4391 = vld [vmem:[%s5 + $0x4] sm:$0xf]
        %v4392 = vld [vmem:[%s5 + $0x8] sm:$0xf]
        %v4393 = vld [vmem:[%s5 + $0xc] sm:$0xf]
        %v4394 = vld [vmem:[%s5 + $0x10] sm:$0xf]
        %v4395 = vld [vmem:[%s5 + $0x14] sm:$0xf]
        %v4396 = vld [vmem:[%s5 + $0x18] sm:$0xf]
        %v4397 = vld [vmem:[%s5 + $0x1c] sm:$0xf]
        %v4398 = vld [vmem:[%s5 + $0x20] sm:$0xf]
        %v4399 = vld [vmem:[%s5 + $0x24] sm:$0xf]
        %v4400 = vld [vmem:[%s5 + $0x28] sm:$0xf]
        %v4401 = vld [vmem:[%s5 + $0x2c] sm:$0xf]
        %v4402 = vld [vmem:[%s5 + $0x30] sm:$0xf]
        %v4403 = vld [vmem:[%s5 + $0x34] sm:$0xf]
        %v4404 = vld [vmem:[%s5 + $0x38] sm:$0xf]
        %v4405 = vld [vmem:[%s5 + $0x3c] sm:$0xf]
        %s4406 = scalar_lea.vmem [#allocation3], 2
        %v4407 = vld [vmem:[%s4406] ss:$20 sm:$0xff]
        %s4408 = scalar_lea.vmem [#allocation3], 3
        %v4409 = vld [vmem:[%s4408] ss:$20 sm:$0xff]
        %v4410 = vmax.f32 %v4407, %v4409
        %v4411 = vpack.c.bf16 %v4410, %v4410
        %s4412 = scalar_lea.vmem %s5, 64
        %v4413 = vld [vmem:[%s4412] sm:$0xf]
        %v4414 = vld [vmem:[%s4412 + $0x4] sm:$0xf]
        %v4415 = vld [vmem:[%s4412 + $0x8] sm:$0xf]
        %v4416 = vld [vmem:[%s4412 + $0xc] sm:$0xf]
        %v4417 = vld [vmem:[%s4412 + $0x10] sm:$0xf]
        %v4418 = vld [vmem:[%s4412 + $0x14] sm:$0xf]
        %v4419 = vld [vmem:[%s4412 + $0x18] sm:$0xf]
        %v4420 = vld [vmem:[%s4412 + $0x1c] sm:$0xf]
        %v4421 = vld [vmem:[%s4412 + $0x20] sm:$0xf]
        %v4422 = vld [vmem:[%s4412 + $0x24] sm:$0xf]
        %v4423 = vld [vmem:[%s4412 + $0x28] sm:$0xf]
        %v4424 = vld [vmem:[%s4412 + $0x2c] sm:$0xf]
        %v4425 = vld [vmem:[%s4412 + $0x30] sm:$0xf]
        %v4426 = vld [vmem:[%s4412 + $0x34] sm:$0xf]
        %v4427 = vld [vmem:[%s4412 + $0x38] sm:$0xf]
        %v4428 = vld [vmem:[%s4412 + $0x3c] sm:$0xf]
        %v4445 = vunpack.c.l.b16 %v4413
        %v4446 = vunpack.c.l.b16 %v4414
        %v4447 = vunpack.c.l.b16 %v4415
        %v4448 = vunpack.c.l.b16 %v4416
        %v4449 = vunpack.c.l.b16 %v4417
        %v4450 = vunpack.c.l.b16 %v4418
        %v4451 = vunpack.c.l.b16 %v4419
        %v4452 = vunpack.c.l.b16 %v4420
        %v4453 = vunpack.c.l.b16 %v4421
        %v4454 = vunpack.c.l.b16 %v4422
        %v4455 = vunpack.c.l.b16 %v4423
        %v4456 = vunpack.c.l.b16 %v4424
        %v4457 = vunpack.c.l.b16 %v4425
        %v4458 = vunpack.c.l.b16 %v4426
        %v4459 = vunpack.c.l.b16 %v4427
        %v4460 = vunpack.c.l.b16 %v4428
        %v4461 = vpack.c.b16 %v4446, %v4445
        %v4462 = vpack.c.b16 %v4448, %v4447
        %v4463 = vpack.c.b16 %v4450, %v4449
        %v4464 = vpack.c.b16 %v4452, %v4451
        %v4465 = vpack.c.b16 %v4454, %v4453
        %v4466 = vpack.c.b16 %v4456, %v4455
        %v4467 = vpack.c.b16 %v4458, %v4457
        %v4468 = vpack.c.b16 %v4460, %v4459
        %4477 = vmatprep.subr.bf16.mxu0 0
        %4478 = vmatpush1.bf16.msra.mxu0 %v4461
        %4479 = vmatprep.subr.bf16.mxu0 0
        %4480 = vmatpush1.bf16.msra.mxu0 %v4462
        %4481 = vmatprep.subr.bf16.mxu0 0
        %4482 = vmatpush1.bf16.msra.mxu0 %v4463
        %4483 = vmatprep.subr.bf16.mxu0 0
        %4484 = vmatpush1.bf16.msra.mxu0 %v4464
        %4485 = vmatprep.subr.bf16.mxu0 0
        %4486 = vmatpush1.bf16.msra.mxu0 %v4465
        %4487 = vmatprep.subr.bf16.mxu0 0
        %4488 = vmatpush1.bf16.msra.mxu0 %v4466
        %4489 = vmatprep.subr.bf16.mxu0 0
        %4490 = vmatpush1.bf16.msra.mxu0 %v4467
        %4491 = vmatprep.subr.bf16.mxu0 0
        %4492 = vmatpush1.bf16.msra.mxu0 %v4468
        %4493 = vmatprep.subr.bf16.mxu0 0
        %4494 = vmatpush1.bf16.msra.mxu0 0
        %4495 = vmatprep.subr.bf16.mxu0 0
        %4496 = vmatpush1.bf16.msra.mxu0 0
        %4497 = vmatprep.subr.bf16.mxu0 0
        %4498 = vmatpush1.bf16.msra.mxu0 0
        %4499 = vmatprep.subr.bf16.mxu0 0
        %4500 = vmatpush1.bf16.msra.mxu0 0
        %4501 = vmatprep.subr.bf16.mxu0 0
        %4502 = vmatpush1.bf16.msra.mxu0 0
        %4503 = vmatprep.subr.bf16.mxu0 0
        %4504 = vmatpush1.bf16.msra.mxu0 0
        %4505 = vmatprep.subr.bf16.mxu0 0
        %4506 = vmatpush1.bf16.msra.mxu0 0
        %4507 = vmatprep.subr.bf16.mxu0 0
        %4508 = vmatpush1.bf16.msra.mxu0 0
        %4509 = vmatprep.mubr.bf16.mxu0 0
        %4510 = vmatmul.mubr.bf16.gmra.mrb[0].mxu0 %v4411
        %v4511 = vpop.f32.mrb[0].mxu0
        %v4512 = vadd.f32 0.0, %v4511
        %v4513 = vpop.f32.mrb[0].mxu0
        %v4514 = vpop.f32.mrb[0].mxu0
        %v4515 = vpop.f32.mrb[0].mxu0
        %4516 = vdwg.mxu0
        %v4533 = vunpack.c.l.b16 %v4390
        %v4534 = vunpack.c.l.b16 %v4391
        %v4535 = vunpack.c.l.b16 %v4392
        %v4536 = vunpack.c.l.b16 %v4393
        %v4537 = vunpack.c.l.b16 %v4394
        %v4538 = vunpack.c.l.b16 %v4395
        %v4539 = vunpack.c.l.b16 %v4396
        %v4540 = vunpack.c.l.b16 %v4397
        %v4541 = vunpack.c.l.b16 %v4398
        %v4542 = vunpack.c.l.b16 %v4399
        %v4543 = vunpack.c.l.b16 %v4400
        %v4544 = vunpack.c.l.b16 %v4401
        %v4545 = vunpack.c.l.b16 %v4402
        %v4546 = vunpack.c.l.b16 %v4403
        %v4547 = vunpack.c.l.b16 %v4404
        %v4548 = vunpack.c.l.b16 %v4405
        %v4549 = vpack.c.b16 %v4534, %v4533
        %v4550 = vpack.c.b16 %v4536, %v4535
        %v4551 = vpack.c.b16 %v4538, %v4537
        %v4552 = vpack.c.b16 %v4540, %v4539
        %v4553 = vpack.c.b16 %v4542, %v4541
        %v4554 = vpack.c.b16 %v4544, %v4543
        %v4555 = vpack.c.b16 %v4546, %v4545
        %v4556 = vpack.c.b16 %v4548, %v4547
        %4565 = vmatprep.subr.bf16.mxu0 0
        %4566 = vmatpush1.bf16.msra.mxu0 %v4549
        %4567 = vmatprep.subr.bf16.mxu0 0
        %4568 = vmatpush1.bf16.msra.mxu0 %v4550
        %4569 = vmatprep.subr.bf16.mxu0 0
        %4570 = vmatpush1.bf16.msra.mxu0 %v4551
        %4571 = vmatprep.subr.bf16.mxu0 0
        %4572 = vmatpush1.bf16.msra.mxu0 %v4552
        %4573 = vmatprep.subr.bf16.mxu0 0
        %4574 = vmatpush1.bf16.msra.mxu0 %v4553
        %4575 = vmatprep.subr.bf16.mxu0 0
        %4576 = vmatpush1.bf16.msra.mxu0 %v4554
        %4577 = vmatprep.subr.bf16.mxu0 0
        %4578 = vmatpush1.bf16.msra.mxu0 %v4555
        %4579 = vmatprep.subr.bf16.mxu0 0
        %4580 = vmatpush1.bf16.msra.mxu0 %v4556
        %4581 = vmatprep.subr.bf16.mxu0 0
        %4582 = vmatpush1.bf16.msra.mxu0 0
        %4583 = vmatprep.subr.bf16.mxu0 0
        %4584 = vmatpush1.bf16.msra.mxu0 0
        %4585 = vmatprep.subr.bf16.mxu0 0
        %4586 = vmatpush1.bf16.msra.mxu0 0
        %4587 = vmatprep.subr.bf16.mxu0 0
        %4588 = vmatpush1.bf16.msra.mxu0 0
        %4589 = vmatprep.subr.bf16.mxu0 0
        %4590 = vmatpush1.bf16.msra.mxu0 0
        %4591 = vmatprep.subr.bf16.mxu0 0
        %4592 = vmatpush1.bf16.msra.mxu0 0
        %4593 = vmatprep.subr.bf16.mxu0 0
        %4594 = vmatpush1.bf16.msra.mxu0 0
        %4595 = vmatprep.subr.bf16.mxu0 0
        %4596 = vmatpush1.bf16.msra.mxu0 0
        %4597 = vmatprep.mubr.bf16.mxu0 0
        %4598 = vmatmul.mubr.bf16.gmra.mrb[0].mxu0 %v4389
        %v4599 = vpop.f32.mrb[0].mxu0
        %v4600 = vadd.f32 %v4512, %v4599
        %v4601 = vpop.f32.mrb[0].mxu0
        %v4602 = vpop.f32.mrb[0].mxu0
        %v4603 = vpop.f32.mrb[0].mxu0
        %4604 = vdwg.mxu0
        %s4605 = scalar_lea.vmem [#allocation3], 4
        %v4606 = vld [vmem:[%s4605] ss:$20 sm:$0xff]
        %s4607 = scalar_lea.vmem [#allocation3], 5
        %v4608 = vld [vmem:[%s4607] ss:$20 sm:$0xff]
        %v4609 = vmax.f32 %v4606, %v4608
        %v4610 = vpack.c.bf16 %v4609, %v4609
        %s4611 = scalar_lea.vmem %s5, 128
        %v4612 = vld [vmem:[%s4611] sm:$0xf]
        %v4613 = vld [vmem:[%s4611 + $0x4] sm:$0xf]
        %v4614 = vld [vmem:[%s4611 + $0x8] sm:$0xf]
        %v4615 = vld [vmem:[%s4611 + $0xc] sm:$0xf]
        %v4616 = vld [vmem:[%s4611 + $0x10] sm:$0xf]
        %v4617 = vld [vmem:[%s4611 + $0x14] sm:$0xf]
        %v4618 = vld [vmem:[%s4611 + $0x18] sm:$0xf]
        %v4619 = vld [vmem:[%s4611 + $0x1c] sm:$0xf]
        %v4620 = vld [vmem:[%s4611 + $0x20] sm:$0xf]
        %v4621 = vld [vmem:[%s4611 + $0x24] sm:$0xf]
        %v4622 = vld [vmem:[%s4611 + $0x28] sm:$0xf]
        %v4623 = vld [vmem:[%s4611 + $0x2c] sm:$0xf]
        %v4624 = vld [vmem:[%s4611 + $0x30] sm:$0xf]
        %v4625 = vld [vmem:[%s4611 + $0x34] sm:$0xf]
        %v4626 = vld [vmem:[%s4611 + $0x38] sm:$0xf]
        %v4627 = vld [vmem:[%s4611 + $0x3c] sm:$0xf]
        %v4644 = vunpack.c.l.b16 %v4612
        %v4645 = vunpack.c.l.b16 %v4613
        %v4646 = vunpack.c.l.b16 %v4614
        %v4647 = vunpack.c.l.b16 %v4615
        %v4648 = vunpack.c.l.b16 %v4616
        %v4649 = vunpack.c.l.b16 %v4617
        %v4650 = vunpack.c.l.b16 %v4618
        %v4651 = vunpack.c.l.b16 %v4619
        %v4652 = vunpack.c.l.b16 %v4620
        %v4653 = vunpack.c.l.b16 %v4621
        %v4654 = vunpack.c.l.b16 %v4622
        %v4655 = vunpack.c.l.b16 %v4623
        %v4656 = vunpack.c.l.b16 %v4624
        %v4657 = vunpack.c.l.b16 %v4625
        %v4658 = vunpack.c.l.b16 %v4626
        %v4659 = vunpack.c.l.b16 %v4627
        %v4660 = vpack.c.b16 %v4645, %v4644
        %v4661 = vpack.c.b16 %v4647, %v4646
        %v4662 = vpack.c.b16 %v4649, %v4648
        %v4663 = vpack.c.b16 %v4651, %v4650
        %v4664 = vpack.c.b16 %v4653, %v4652
        %v4665 = vpack.c.b16 %v4655, %v4654
        %v4666 = vpack.c.b16 %v4657, %v4656
        %v4667 = vpack.c.b16 %v4659, %v4658
        %4676 = vmatprep.subr.bf16.mxu0 0
        %4677 = vmatpush1.bf16.msra.mxu0 %v4660
        %4678 = vmatprep.subr.bf16.mxu0 0
        %4679 = vmatpush1.bf16.msra.mxu0 %v4661
        %4680 = vmatprep.subr.bf16.mxu0 0
        %4681 = vmatpush1.bf16.msra.mxu0 %v4662
        %4682 = vmatprep.subr.bf16.mxu0 0
        %4683 = vmatpush1.bf16.msra.mxu0 %v4663
        %4684 = vmatprep.subr.bf16.mxu0 0
        %4685 = vmatpush1.bf16.msra.mxu0 %v4664
        %4686 = vmatprep.subr.bf16.mxu0 0
        %4687 = vmatpush1.bf16.msra.mxu0 %v4665
        %4688 = vmatprep.subr.bf16.mxu0 0
        %4689 = vmatpush1.bf16.msra.mxu0 %v4666
        %4690 = vmatprep.subr.bf16.mxu0 0
        %4691 = vmatpush1.bf16.msra.mxu0 %v4667
        %4692 = vmatprep.subr.bf16.mxu0 0
        %4693 = vmatpush1.bf16.msra.mxu0 0
        %4694 = vmatprep.subr.bf16.mxu0 0
        %4695 = vmatpush1.bf16.msra.mxu0 0
        %4696 = vmatprep.subr.bf16.mxu0 0
        %4697 = vmatpush1.bf16.msra.mxu0 0
        %4698 = vmatprep.subr.bf16.mxu0 0
        %4699 = vmatpush1.bf16.msra.mxu0 0
        %4700 = vmatprep.subr.bf16.mxu0 0
        %4701 = vmatpush1.bf16.msra.mxu0 0
        %4702 = vmatprep.subr.bf16.mxu0 0
        %4703 = vmatpush1.bf16.msra.mxu0 0
        %4704 = vmatprep.subr.bf16.mxu0 0
        %4705 = vmatpush1.bf16.msra.mxu0 0
        %4706 = vmatprep.subr.bf16.mxu0 0
        %4707 = vmatpush1.bf16.msra.mxu0 0
        %4708 = vmatprep.mubr.bf16.mxu0 0
        %4709 = vmatmul.mubr.bf16.gmra.mrb[0].mxu0 %v4610
        %v4710 = vpop.f32.mrb[0].mxu0
        %v4711 = vadd.f32 0.0, %v4710
        %v4712 = vpop.f32.mrb[0].mxu0
        %v4713 = vpop.f32.mrb[0].mxu0
        %v4714 = vpop.f32.mrb[0].mxu0
        %4715 = vdwg.mxu0
        %v4716 = vadd.f32 %v4600, %v4711
        %s4717 = scalar_lea.vmem [#allocation3], 6
        %v4718 = vld [vmem:[%s4717] ss:$20 sm:$0xff]
        %s4719 = scalar_lea.vmem [#allocation3], 7
        %v4720 = vld [vmem:[%s4719] ss:$20 sm:$0xff]
        %v4721 = vmax.f32 %v4718, %v4720
        %v4722 = vpack.c.bf16 %v4721, %v4721
        %s4723 = scalar_lea.vmem %s5, 192
        %v4724 = vld [vmem:[%s4723] sm:$0xf]
        %v4725 = vld [vmem:[%s4723 + $0x4] sm:$0xf]
        %v4726 = vld [vmem:[%s4723 + $0x8] sm:$0xf]
        %v4727 = vld [vmem:[%s4723 + $0xc] sm:$0xf]
        %v4728 = vld [vmem:[%s4723 + $0x10] sm:$0xf]
        %v4729 = vld [vmem:[%s4723 + $0x14] sm:$0xf]
        %v4730 = vld [vmem:[%s4723 + $0x18] sm:$0xf]
        %v4731 = vld [vmem:[%s4723 + $0x1c] sm:$0xf]
        %v4732 = vld [vmem:[%s4723 + $0x20] sm:$0xf]
        %v4733 = vld [vmem:[%s4723 + $0x24] sm:$0xf]
        %v4734 = vld [vmem:[%s4723 + $0x28] sm:$0xf]
        %v4735 = vld [vmem:[%s4723 + $0x2c] sm:$0xf]
        %v4736 = vld [vmem:[%s4723 + $0x30] sm:$0xf]
        %v4737 = vld [vmem:[%s4723 + $0x34] sm:$0xf]
        %v4738 = vld [vmem:[%s4723 + $0x38] sm:$0xf]
        %v4739 = vld [vmem:[%s4723 + $0x3c] sm:$0xf]
        %v4756 = vunpack.c.l.b16 %v4724
        %v4757 = vunpack.c.l.b16 %v4725
        %v4758 = vunpack.c.l.b16 %v4726
        %v4759 = vunpack.c.l.b16 %v4727
        %v4760 = vunpack.c.l.b16 %v4728
        %v4761 = vunpack.c.l.b16 %v4729
        %v4762 = vunpack.c.l.b16 %v4730
        %v4763 = vunpack.c.l.b16 %v4731
        %v4764 = vunpack.c.l.b16 %v4732
        %v4765 = vunpack.c.l.b16 %v4733
        %v4766 = vunpack.c.l.b16 %v4734
        %v4767 = vunpack.c.l.b16 %v4735
        %v4768 = vunpack.c.l.b16 %v4736
        %v4769 = vunpack.c.l.b16 %v4737
        %v4770 = vunpack.c.l.b16 %v4738
        %v4771 = vunpack.c.l.b16 %v4739
        %v4772 = vpack.c.b16 %v4757, %v4756
        %v4773 = vpack.c.b16 %v4759, %v4758
        %v4774 = vpack.c.b16 %v4761, %v4760
        %v4775 = vpack.c.b16 %v4763, %v4762
        %v4776 = vpack.c.b16 %v4765, %v4764
        %v4777 = vpack.c.b16 %v4767, %v4766
        %v4778 = vpack.c.b16 %v4769, %v4768
        %v4779 = vpack.c.b16 %v4771, %v4770
        %4788 = vmatprep.subr.bf16.mxu0 0
        %4789 = vmatpush1.bf16.msra.mxu0 %v4772
        %4790 = vmatprep.subr.bf16.mxu0 0
        %4791 = vmatpush1.bf16.msra.mxu0 %v4773
        %4792 = vmatprep.subr.bf16.mxu0 0
        %4793 = vmatpush1.bf16.msra.mxu0 %v4774
        %4794 = vmatprep.subr.bf16.mxu0 0
        %4795 = vmatpush1.bf16.msra.mxu0 %v4775
        %4796 = vmatprep.subr.bf16.mxu0 0
        %4797 = vmatpush1.bf16.msra.mxu0 %v4776
        %4798 = vmatprep.subr.bf16.mxu0 0
        %4799 = vmatpush1.bf16.msra.mxu0 %v4777
        %4800 = vmatprep.subr.bf16.mxu0 0
        %4801 = vmatpush1.bf16.msra.mxu0 %v4778
        %4802 = vmatprep.subr.bf16.mxu0 0
        %4803 = vmatpush1.bf16.msra.mxu0 %v4779
        %4804 = vmatprep.subr.bf16.mxu0 0
        %4805 = vmatpush1.bf16.msra.mxu0 0
        %4806 = vmatprep.subr.bf16.mxu0 0
        %4807 = vmatpush1.bf16.msra.mxu0 0
        %4808 = vmatprep.subr.bf16.mxu0 0
        %4809 = vmatpush1.bf16.msra.mxu0 0
        %4810 = vmatprep.subr.bf16.mxu0 0
        %4811 = vmatpush1.bf16.msra.mxu0 0
        %4812 = vmatprep.subr.bf16.mxu0 0
        %4813 = vmatpush1.bf16.msra.mxu0 0
        %4814 = vmatprep.subr.bf16.mxu0 0
        %4815 = vmatpush1.bf16.msra.mxu0 0
        %4816 = vmatprep.subr.bf16.mxu0 0
        %4817 = vmatpush1.bf16.msra.mxu0 0
        %4818 = vmatprep.subr.bf16.mxu0 0
        %4819 = vmatpush1.bf16.msra.mxu0 0
        %4820 = vmatprep.mubr.bf16.mxu0 0
        %4821 = vmatmul.mubr.bf16.gmra.mrb[0].mxu0 %v4722
        %v4822 = vpop.f32.mrb[0].mxu0
        %v4823 = vadd.f32 0.0, %v4822
        %v4824 = vpop.f32.mrb[0].mxu0
        %v4825 = vpop.f32.mrb[0].mxu0
        %v4826 = vpop.f32.mrb[0].mxu0
        %4827 = vdwg.mxu0
        %v4828 = vadd.f32 %v4716, %v4823
        %s4829 = scalar_lea.vmem [#allocation3], 8
        %v4830 = vld [vmem:[%s4829] ss:$20 sm:$0xff]
        %s4831 = scalar_lea.vmem [#allocation3], 9
        %v4832 = vld [vmem:[%s4831] ss:$20 sm:$0xff]
        %v4833 = vmax.f32 %v4830, %v4832
        %v4834 = vpack.c.bf16 %v4833, %v4833
        %s4835 = scalar_lea.vmem %s5, 256
        %v4836 = vld [vmem:[%s4835] sm:$0xf]
        %v4837 = vld [vmem:[%s4835 + $0x4] sm:$0xf]
        %v4838 = vld [vmem:[%s4835 + $0x8] sm:$0xf]
        %v4839 = vld [vmem:[%s4835 + $0xc] sm:$0xf]
        %v4840 = vld [vmem:[%s4835 + $0x10] sm:$0xf]
        %v4841 = vld [vmem:[%s4835 + $0x14] sm:$0xf]
        %v4842 = vld [vmem:[%s4835 + $0x18] sm:$0xf]
        %v4843 = vld [vmem:[%s4835 + $0x1c] sm:$0xf]
        %v4844 = vld [vmem:[%s4835 + $0x20] sm:$0xf]
        %v4845 = vld [vmem:[%s4835 + $0x24] sm:$0xf]
        %v4846 = vld [vmem:[%s4835 + $0x28] sm:$0xf]
        %v4847 = vld [vmem:[%s4835 + $0x2c] sm:$0xf]
        %v4848 = vld [vmem:[%s4835 + $0x30] sm:$0xf]
        %v4849 = vld [vmem:[%s4835 + $0x34] sm:$0xf]
        %v4850 = vld [vmem:[%s4835 + $0x38] sm:$0xf]
        %v4851 = vld [vmem:[%s4835 + $0x3c] sm:$0xf]
        %v4868 = vunpack.c.l.b16 %v4836
        %v4869 = vunpack.c.l.b16 %v4837
        %v4870 = vunpack.c.l.b16 %v4838
        %v4871 = vunpack.c.l.b16 %v4839
        %v4872 = vunpack.c.l.b16 %v4840
        %v4873 = vunpack.c.l.b16 %v4841
        %v4874 = vunpack.c.l.b16 %v4842
        %v4875 = vunpack.c.l.b16 %v4843
        %v4876 = vunpack.c.l.b16 %v4844
        %v4877 = vunpack.c.l.b16 %v4845
        %v4878 = vunpack.c.l.b16 %v4846
        %v4879 = vunpack.c.l.b16 %v4847
        %v4880 = vunpack.c.l.b16 %v4848
        %v4881 = vunpack.c.l.b16 %v4849
        %v4882 = vunpack.c.l.b16 %v4850
        %v4883 = vunpack.c.l.b16 %v4851
        %v4884 = vpack.c.b16 %v4869, %v4868
        %v4885 = vpack.c.b16 %v4871, %v4870
        %v4886 = vpack.c.b16 %v4873, %v4872
        %v4887 = vpack.c.b16 %v4875, %v4874
        %v4888 = vpack.c.b16 %v4877, %v4876
        %v4889 = vpack.c.b16 %v4879, %v4878
        %v4890 = vpack.c.b16 %v4881, %v4880
        %v4891 = vpack.c.b16 %v4883, %v4882
        %4900 = vmatprep.subr.bf16.mxu0 0
        %4901 = vmatpush1.bf16.msra.mxu0 %v4884
        %4902 = vmatprep.subr.bf16.mxu0 0
        %4903 = vmatpush1.bf16.msra.mxu0 %v4885
        %4904 = vmatprep.subr.bf16.mxu0 0
        %4905 = vmatpush1.bf16.msra.mxu0 %v4886
        %4906 = vmatprep.subr.bf16.mxu0 0
        %4907 = vmatpush1.bf16.msra.mxu0 %v4887
        %4908 = vmatprep.subr.bf16.mxu0 0
        %4909 = vmatpush1.bf16.msra.mxu0 %v4888
        %4910 = vmatprep.subr.bf16.mxu0 0
        %4911 = vmatpush1.bf16.msra.mxu0 %v4889
        %4912 = vmatprep.subr.bf16.mxu0 0
        %4913 = vmatpush1.bf16.msra.mxu0 %v4890
        %4914 = vmatprep.subr.bf16.mxu0 0
        %4915 = vmatpush1.bf16.msra.mxu0 %v4891
        %4916 = vmatprep.subr.bf16.mxu0 0
        %4917 = vmatpush1.bf16.msra.mxu0 0
        %4918 = vmatprep.subr.bf16.mxu0 0
        %4919 = vmatpush1.bf16.msra.mxu0 0
        %4920 = vmatprep.subr.bf16.mxu0 0
        %4921 = vmatpush1.bf16.msra.mxu0 0
        %4922 = vmatprep.subr.bf16.mxu0 0
        %4923 = vmatpush1.bf16.msra.mxu0 0
        %4924 = vmatprep.subr.bf16.mxu0 0
        %4925 = vmatpush1.bf16.msra.mxu0 0
        %4926 = vmatprep.subr.bf16.mxu0 0
        %4927 = vmatpush1.bf16.msra.mxu0 0
        %4928 = vmatprep.subr.bf16.mxu0 0
        %4929 = vmatpush1.bf16.msra.mxu0 0
        %4930 = vmatprep.subr.bf16.mxu0 0
        %4931 = vmatpush1.bf16.msra.mxu0 0
        %4932 = vmatprep.mubr.bf16.mxu0 0
        %4933 = vmatmul.mubr.bf16.gmra.mrb[0].mxu0 %v4834
        %v4934 = vpop.f32.mrb[0].mxu0
        %v4935 = vadd.f32 0.0, %v4934
        %v4936 = vpop.f32.mrb[0].mxu0
        %v4937 = vpop.f32.mrb[0].mxu0
        %v4938 = vpop.f32.mrb[0].mxu0
        %4939 = vdwg.mxu0
        %v4940 = vadd.f32 %v4828, %v4935
        %v4941 = vld [vmem:[%s6] sm:$0x1]
        %v4943 = vlaneseq
        %v4944 = vshrl.u32 %v4943, 7
        %v4945 = vsub.s32 0, %v4944
        %v4946 = vrot.slane %v4941, %v4945
        %v4948 = vadd.f32 %v4940, %v4946
        %v4949 = vmax.f32 %v4948, 0.0
        %v4950 = vpack.c.bf16 %v4949, %v4949
        %v4951 = vld [vmem:[%s7] sm:$0xf]
        %v4952 = vld [vmem:[%s7 + $0x4] sm:$0xf]
        %v4953 = vld [vmem:[%s7 + $0x8] sm:$0xf]
        %v4954 = vld [vmem:[%s7 + $0xc] sm:$0xf]
        %v4955 = vld [vmem:[%s7 + $0x10] sm:$0xf]
        %v4956 = vld [vmem:[%s7 + $0x14] sm:$0xf]
        %v4957 = vld [vmem:[%s7 + $0x18] sm:$0xf]
        %v4958 = vld [vmem:[%s7 + $0x1c] sm:$0xf]
        %v4959 = vld [vmem:[%s7 + $0x20] sm:$0xf]
        %v4960 = vld [vmem:[%s7 + $0x24] sm:$0xf]
        %v4961 = vld [vmem:[%s7 + $0x28] sm:$0xf]
        %v4962 = vld [vmem:[%s7 + $0x2c] sm:$0xf]
        %v4963 = vld [vmem:[%s7 + $0x30] sm:$0xf]
        %v4964 = vld [vmem:[%s7 + $0x34] sm:$0xf]
        %v4965 = vld [vmem:[%s7 + $0x38] sm:$0xf]
        %v4966 = vld [vmem:[%s7 + $0x3c] sm:$0xf]
        %v4967 = vld [vmem:[%s8] sm:$0x1]
        %v4969 = vlaneseq
        %v4970 = vshrl.u32 %v4969, 7
        %v4971 = vsub.s32 0, %v4970
        %v4972 = vrot.slane %v4967, %v4971
        %v4990 = vunpack.c.l.b16 %v4951
        %v4991 = vunpack.c.l.b16 %v4952
        %v4992 = vunpack.c.l.b16 %v4953
        %v4993 = vunpack.c.l.b16 %v4954
        %v4994 = vunpack.c.l.b16 %v4955
        %v4995 = vunpack.c.l.b16 %v4956
        %v4996 = vunpack.c.l.b16 %v4957
        %v4997 = vunpack.c.l.b16 %v4958
        %v4998 = vunpack.c.l.b16 %v4959
        %v4999 = vunpack.c.l.b16 %v4960
        %v5000 = vunpack.c.l.b16 %v4961
        %v5001 = vunpack.c.l.b16 %v4962
        %v5002 = vunpack.c.l.b16 %v4963
        %v5003 = vunpack.c.l.b16 %v4964
        %v5004 = vunpack.c.l.b16 %v4965
        %v5005 = vunpack.c.l.b16 %v4966
        %v5006 = vpack.c.b16 %v4991, %v4990
        %v5007 = vpack.c.b16 %v4993, %v4992
        %v5008 = vpack.c.b16 %v4995, %v4994
        %v5009 = vpack.c.b16 %v4997, %v4996
        %v5010 = vpack.c.b16 %v4999, %v4998
        %v5011 = vpack.c.b16 %v5001, %v5000
        %v5012 = vpack.c.b16 %v5003, %v5002
        %v5013 = vpack.c.b16 %v5005, %v5004
        %5022 = vmatprep.subr.bf16.mxu0 0
        %5023 = vmatpush1.bf16.msra.mxu0 %v5006
        %5024 = vmatprep.subr.bf16.mxu0 0
        %5025 = vmatpush1.bf16.msra.mxu0 %v5007
        %5026 = vmatprep.subr.bf16.mxu0 0
        %5027 = vmatpush1.bf16.msra.mxu0 %v5008
        %5028 = vmatprep.subr.bf16.mxu0 0
        %5029 = vmatpush1.bf16.msra.mxu0 %v5009
        %5030 = vmatprep.subr.bf16.mxu0 0
        %5031 = vmatpush1.bf16.msra.mxu0 %v5010
        %5032 = vmatprep.subr.bf16.mxu0 0
        %5033 = vmatpush1.bf16.msra.mxu0 %v5011
        %5034 = vmatprep.subr.bf16.mxu0 0
        %5035 = vmatpush1.bf16.msra.mxu0 %v5012
        %5036 = vmatprep.subr.bf16.mxu0 0
        %5037 = vmatpush1.bf16.msra.mxu0 %v5013
        %5038 = vmatprep.subr.bf16.mxu0 0
        %5039 = vmatpush1.bf16.msra.mxu0 0
        %5040 = vmatprep.subr.bf16.mxu0 0
        %5041 = vmatpush1.bf16.msra.mxu0 0
        %5042 = vmatprep.subr.bf16.mxu0 0
        %5043 = vmatpush1.bf16.msra.mxu0 0
        %5044 = vmatprep.subr.bf16.mxu0 0
        %5045 = vmatpush1.bf16.msra.mxu0 0
        %5046 = vmatprep.subr.bf16.mxu0 0
        %5047 = vmatpush1.bf16.msra.mxu0 0
        %5048 = vmatprep.subr.bf16.mxu0 0
        %5049 = vmatpush1.bf16.msra.mxu0 0
        %5050 = vmatprep.subr.bf16.mxu0 0
        %5051 = vmatpush1.bf16.msra.mxu0 0
        %5052 = vmatprep.subr.bf16.mxu0 0
        %5053 = vmatpush1.bf16.msra.mxu0 0
        %5054 = vmatprep.mubr.bf16.mxu0 0
        %5055 = vmatmul.mubr.bf16.gmra.mrb[0].mxu0 %v4950
        %v5056 = vpop.f32.mrb[0].mxu0
        %v5057 = vadd.f32 %v4972, %v5056
        %v5058 = vpop.f32.mrb[0].mxu0
        %v5059 = vpop.f32.mrb[0].mxu0
        %v5060 = vpop.f32.mrb[0].mxu0
        %5061 = vdwg.mxu0
        %v5062 = vmax.f32 %v5057, 0.0
        %v5063 = vpack.c.bf16 %v5062, %v5062
        %v5064 = vld [vmem:[%s9] sm:$0xf]
        %v5065 = vld [vmem:[%s9 + $0x4] sm:$0xf]
        %v5066 = vld [vmem:[%s9 + $0x8] sm:$0xf]
        %v5067 = vld [vmem:[%s9 + $0xc] sm:$0xf]
        %v5068 = vld [vmem:[%s9 + $0x10] sm:$0xf]
        %v5069 = vld [vmem:[%s9 + $0x14] sm:$0xf]
        %v5070 = vld [vmem:[%s9 + $0x18] sm:$0xf]
        %v5071 = vld [vmem:[%s9 + $0x1c] sm:$0xf]
        %v5072 = vld [vmem:[%s9 + $0x20] sm:$0xf]
        %v5073 = vld [vmem:[%s9 + $0x24] sm:$0xf]
        %v5074 = vld [vmem:[%s9 + $0x28] sm:$0xf]
        %v5075 = vld [vmem:[%s9 + $0x2c] sm:$0xf]
        %v5076 = vld [vmem:[%s9 + $0x30] sm:$0xf]
        %v5077 = vld [vmem:[%s9 + $0x34] sm:$0xf]
        %v5078 = vld [vmem:[%s9 + $0x38] sm:$0xf]
        %v5079 = vld [vmem:[%s9 + $0x3c] sm:$0xf]
        %v5080 = vld [vmem:[%s10] sm:$0x1]
        %v5082 = vlaneseq
        %v5083 = vshrl.u32 %v5082, 7
        %v5084 = vsub.s32 0, %v5083
        %v5085 = vrot.slane %v5080, %v5084
        %v5103 = vunpack.c.l.b16 %v5064
        %v5104 = vunpack.c.l.b16 %v5065
        %v5105 = vunpack.c.l.b16 %v5066
        %v5106 = vunpack.c.l.b16 %v5067
        %v5107 = vunpack.c.l.b16 %v5068
        %v5108 = vunpack.c.l.b16 %v5069
        %v5109 = vunpack.c.l.b16 %v5070
        %v5110 = vunpack.c.l.b16 %v5071
        %v5111 = vunpack.c.l.b16 %v5072
        %v5112 = vunpack.c.l.b16 %v5073
        %v5113 = vunpack.c.l.b16 %v5074
        %v5114 = vunpack.c.l.b16 %v5075
        %v5115 = vunpack.c.l.b16 %v5076
        %v5116 = vunpack.c.l.b16 %v5077
        %v5117 = vunpack.c.l.b16 %v5078
        %v5118 = vunpack.c.l.b16 %v5079
        %v5119 = vpack.c.b16 %v5104, %v5103
        %v5120 = vpack.c.b16 %v5106, %v5105
        %v5121 = vpack.c.b16 %v5108, %v5107
        %v5122 = vpack.c.b16 %v5110, %v5109
        %v5123 = vpack.c.b16 %v5112, %v5111
        %v5124 = vpack.c.b16 %v5114, %v5113
        %v5125 = vpack.c.b16 %v5116, %v5115
        %v5126 = vpack.c.b16 %v5118, %v5117
        %5135 = vmatprep.subr.bf16.mxu0 0
        %5136 = vmatpush1.bf16.msra.mxu0 %v5119
        %5137 = vmatprep.subr.bf16.mxu0 0
        %5138 = vmatpush1.bf16.msra.mxu0 %v5120
        %5139 = vmatprep.subr.bf16.mxu0 0
        %5140 = vmatpush1.bf16.msra.mxu0 %v5121
        %5141 = vmatprep.subr.bf16.mxu0 0
        %5142 = vmatpush1.bf16.msra.mxu0 %v5122
        %5143 = vmatprep.subr.bf16.mxu0 0
        %5144 = vmatpush1.bf16.msra.mxu0 %v5123
        %5145 = vmatprep.subr.bf16.mxu0 0
        %5146 = vmatpush1.bf16.msra.mxu0 %v5124
        %5147 = vmatprep.subr.bf16.mxu0 0
        %5148 = vmatpush1.bf16.msra.mxu0 %v5125
        %5149 = vmatprep.subr.bf16.mxu0 0
        %5150 = vmatpush1.bf16.msra.mxu0 %v5126
        %5151 = vmatprep.subr.bf16.mxu0 0
        %5152 = vmatpush1.bf16.msra.mxu0 0
        %5153 = vmatprep.subr.bf16.mxu0 0
        %5154 = vmatpush1.bf16.msra.mxu0 0
        %5155 = vmatprep.subr.bf16.mxu0 0
        %5156 = vmatpush1.bf16.msra.mxu0 0
        %5157 = vmatprep.subr.bf16.mxu0 0
        %5158 = vmatpush1.bf16.msra.mxu0 0
        %5159 = vmatprep.subr.bf16.mxu0 0
        %5160 = vmatpush1.bf16.msra.mxu0 0
        %5161 = vmatprep.subr.bf16.mxu0 0
        %5162 = vmatpush1.bf16.msra.mxu0 0
        %5163 = vmatprep.subr.bf16.mxu0 0
        %5164 = vmatpush1.bf16.msra.mxu0 0
        %5165 = vmatprep.subr.bf16.mxu0 0
        %5166 = vmatpush1.bf16.msra.mxu0 0
        %5167 = vmatprep.mubr.bf16.mxu0 0
        %5168 = vmatmul.mubr.bf16.gmra.mrb[0].mxu0 %v5063
        %v5169 = vpop.f32.mrb[0].mxu0
        %v5170 = vadd.f32 %v5085, %v5169
        %v5171 = vpop.f32.mrb[0].mxu0
        %v5172 = vpop.f32.mrb[0].mxu0
        %v5173 = vpop.f32.mrb[0].mxu0
        %5174 = vdwg.mxu0
        %5175 = vst [vmem:[%s380] sm:$0xff] %v5170
        %s5176 = sand.u32 %s269, 1
        %s5177 = scalar_lea.sflag [#allocation5], %s5176
        %s5178 = sand.u32 %s269, 1
        %s5179 = smul.addr %s5178, 8
        %s5180 = scalar_lea.vmem [#allocation4], %s5179
        // Predicated region
        $region65: #{_lambda_.1} parent=63 // pred_check
          %p5181 = pneg %p279
        $region66: #{_lambda_.1} parent=63 // pred_check_branch
          %5183 = sbr.rel (%p5181) target = $region68
        $region67: #{_lambda_.1} parent=63 // pred_region
          %s5185 = ssub.s32 128, 128
          %5186 = vsyncadd %s5177, %s5185
          %s5187 = smul.addr %s25, 128
          %s5188 = scalar_lea.hbm %s11, %s5187
          %s5190 = sshll.u32 %s5180, 4
          %s5191 = int_to_ptr.vmem [resolvable:$true] %s5190
          %5193 = dma.vmem_to_hbm [thread:$0]  %s5191, 128, %s5188, %s5177
        $region68: #{_lambda_.1} parent=63 // pred_fallthru
          _
      $region64: #{_lambda_.1} parent=5 // pred_fallthru
        _
      %p5194 = scmp.le.s32.totalorder 2, %s20
      // Predicated region
      $region69: #{_lambda_.1} parent=5 // pred_check
        %p5195 = pneg %p5194
      $region70: #{_lambda_.1} parent=5 // pred_check_branch
        %5197 = sbr.rel (%p5195) target = $region72
      $region71: #{_lambda_.1} parent=5 // pred_region
        %s5198 = ssub.s32 %s20, 2
        // Predicated region
        $region73: #{_lambda_.1} parent=71 // pred_check
          %p5199 = pneg %p285
        $region74: #{_lambda_.1} parent=71 // pred_check_branch
          %5201 = sbr.rel (%p5199) target = $region76
        $region75: #{_lambda_.1} parent=71 // pred_region
          %s5202 = sand.u32 %s270, 1
          %s5203 = scalar_lea.sflag [#allocation5], %s5202
          %s5204 = sand.u32 %s270, 1
          %s5205 = smul.addr %s5204, 8
          %s5206 = scalar_lea.vmem [#allocation4], %s5205
          %5207 = dma.done %s5203, 128
        $region76: #{_lambda_.1} parent=71 // pred_fallthru
          _
      $region72: #{_lambda_.1} parent=5 // pred_fallthru
        _
    $region6: #{_lambda_.1} parent=1 // loop_footer
      %s24 = sadd.s32 1, %s20
    $region7: #{_lambda_.1} parent=1 // loop_footer_branch
      %19 = sbr.rel target = $region3
    $region8: #{_lambda_.1} parent=1 // loop_exit
      _
    %5208 = vsyncpa [#allocation5], 1
    %s5209 = scalar_lea.sflag [#allocation5], 1
    %5210 = vsyncpa %s5209, 1

</llo_original>
